<compile_context>
chip_gen: v6e
topology: v6e:2x2x1
jax: 0.10.0
libtpu: 0.0.40
codegen_flags: <defaults>
</compile_context>

<pallas_src>
import jax
import jax.numpy as jnp
from jax import lax
from jax.experimental import pallas as pl
from jax.experimental.pallas import tpu as pltpu


def make_gru_core_kernel(num_layers: int, hidden: int, time_chunk: int, compute_dtype):
    H = hidden
    L = num_layers
    Tc = time_chunk

    def kernel(*refs):
        gi0_ref = refs[0]            # (Tc, 3H, bb)  layer-0 input proj (+ folded biases)
        w_refs = refs[1:-2]          # per-layer weights / folded biases
        o_ref = refs[-2]             # (Tc, H, bb)   last-layer hidden states
        h_ref = refs[-1]             # VMEM scratch (L, H, bb) persistent hidden state

        c = pl.program_id(1)         # time-chunk index (innermost, sequential)

        @pl.when(c == 0)             # new batch block -> reset hidden state
        def _():
            h_ref[...] = jnp.zeros_like(h_ref)

        # Load weights once per grid step (values reused across the chunk).
        whh0 = w_refs[0][...]                          # (3H, H)  compute dtype
        b_nh0 = w_refs[1][...]                         # (H, 1)   f32
        layers = []
        for l in range(1, L):
            base = 2 + 2 * (l - 1)
            layers.append((w_refs[base][...],          # (4H, 2H) fused weight
                           w_refs[base + 1][...]))     # (4H, 1)  fused bias

        def step(tt, hs):
            hs = list(hs)
            gi0 = gi0_ref[tt].astype(jnp.float32)      # (3H, bb)
            # ---- layer 0 (input-side matmul + all its biases precomputed) ----
            h = hs[0]
            gh = jnp.dot(whh0, h.astype(compute_dtype),
                         preferred_element_type=jnp.float32)           # (3H, bb)
            rz = jax.nn.sigmoid(gi0[:2 * H] + gh[:2 * H])
            r = rz[:H]
            z = rz[H:]
            n = jnp.tanh(gi0[2 * H:] + r * (gh[2 * H:] + b_nh0))
            h = n + z * (h - n)
            hs[0] = h
            inp = h
            # ---- layers 1..L-1: one fused (4H,2H)@(2H,bb) matmul per layer ----
            for l in range(1, L):
                w_big, b_big = layers[l - 1]
                h = hs[l]
                xh = jnp.concatenate([inp, h], axis=0).astype(compute_dtype)   # (2H, bb)
                pre = jnp.dot(w_big, xh, preferred_element_type=jnp.float32) + b_big
                rz = jax.nn.sigmoid(pre[:2 * H])       # rows 0:2H -> r, z
                r = rz[:H]
                z = rz[H:]
                n = jnp.tanh(pre[2 * H:3 * H] + r * pre[3 * H:])   # gi_n + r*gh_n
                h = n + z * (h - n)
                hs[l] = h
                inp = h
            o_ref[tt] = inp.astype(o_ref.dtype)        # (H, bb), lane-dense store
            return tuple(hs)

        hs = tuple(h_ref[l] for l in range(L))
        if Tc <= 8:
            for tt in range(Tc):                       # static unroll, static slices
                hs = step(tt, hs)
        else:
            # Bounded live ranges for long chunks (partial unroll of 4).
            hs = lax.fori_loop(0, Tc, step, hs, unroll=4)

        for l in range(L):
            h_ref[l] = hs[l]

    return kernel


def gru_decode(y_input, layer_params, *, hidden_size, num_layers,
               time_chunk=8, batch_block=None, compute_dtype=jnp.float32):
    """y_input: (T, BN, F_in) f32 -> last-layer hidden states, transposed (T, H, BN) f32."""
    T, BN, F_in = y_input.shape
    H = hidden_size
    assert H % 8 == 0, "hidden_size must be a multiple of 8 (sublane slicing)"
    cdt = compute_dtype

    # ---- hoisted layer-0 input projection + bias folding (no time dep) ----
    wih0, whh0, bih0, bhh0 = layer_params[0]
    b0 = jnp.concatenate([bih0[:, :2 * H] + bhh0[:, :2 * H], bih0[:, 2 * H:]], axis=1)
    gi0 = jnp.einsum('tbf,fg->tgb', y_input.astype(cdt), wih0.astype(cdt),
                     preferred_element_type=jnp.float32) + b0.T[None]      # (T, 3H, BN)
    # Store in compute dtype: bf16 halves the dominant HBM stream (v5e especially).
    gi0 = gi0.astype(cdt)

    # ---- weights in transposed, fused layout ----
    weight_args = [whh0.T.astype(cdt),                 # (3H, H)  layer-0 hidden matmul
                   bhh0[:, 2 * H:].T]                  # (H, 1)   layer-0 n-gate hidden bias
    for l in range(1, num_layers):
        wih, whh, bih, bhh = layer_params[l]
        zero = jnp.zeros((H, H), jnp.float32)
        w_big = jnp.concatenate([
            jnp.concatenate([wih[:, :2 * H].T, whh[:, :2 * H].T], axis=1),  # r,z fused
            jnp.concatenate([wih[:, 2 * H:].T, zero], axis=1),              # gi_n
            jnp.concatenate([zero, whh[:, 2 * H:].T], axis=1),              # gh_n
        ], axis=0)                                                          # (4H, 2H)
        b_big = jnp.concatenate([(bih[:, :2 * H] + bhh[:, :2 * H]).T,
                                 bih[:, 2 * H:].T,
                                 bhh[:, 2 * H:].T], axis=0)                 # (4H, 1)
        weight_args += [w_big.astype(cdt), b_big]

    # ---- grid / blocking ----
    Tc = max(1, min(time_chunk, T))
    n_chunks = pl.cdiv(T, Tc)
    Tp = n_chunks * Tc
    if Tp != T:
        gi0 = jnp.pad(gi0, ((0, Tp - T), (0, 0), (0, 0)))
    # Batch*node is the lane axis; bb must be a multiple of 128 (or the full BN).
    # On v7x pass batch_block <= BN//2 (multiple of 128) so the 2nd TensorCore
    # gets work; on v5e/v6e keep bb = BN and raise time_chunk instead.
    bb = BN if batch_block is None else batch_block
    assert BN % bb == 0 and (bb == BN or bb % 128 == 0), "invalid batch_block"
    nb = BN // bb

    in_specs = [pl.BlockSpec((Tc, 3 * H, bb), lambda b, c: (c, 0, b))]
    for arr in weight_args:
        # Constant block index: copied to VMEM once, reused across the grid.
        in_specs.append(pl.BlockSpec(arr.shape, lambda b, c: (0, 0)))
    out_spec = pl.BlockSpec((Tc, H, bb), lambda b, c: (c, 0, b))

    # Explicit VMEM budget (headroom over the 32 MiB scoped default, but capped
    # at 48 MiB so the same config stays safe on v7x's 64 MiB VMEM).
    lane = lambda n: -(-n // 128) * 128
    sub = lambda n: -(-n // 8) * 8
    gi0_block = Tc * sub(3 * H) * lane(bb) * jnp.dtype(cdt).itemsize
    out_block = Tc * sub(H) * lane(bb) * 4
    w_bytes = sum(sub(a.shape[0]) * lane(a.shape[1]) * a.dtype.itemsize for a in weight_args)
    scratch_bytes = num_layers * sub(H) * lane(bb) * 4
    need = 2 * (gi0_block + out_block) + w_bytes + scratch_bytes + (1 << 20)
    vmem_limit = int(min(48 * 2 ** 20, max(32 * 2 ** 20, 2 * need)))

    kernel = make_gru_core_kernel(num_layers, H, Tc, cdt)
    hseq = pl.pallas_call(
        kernel,
        out_shape=jax.ShapeDtypeStruct((Tp, H, BN), jnp.float32),
        grid_spec=pltpu.PrefetchScalarGridSpec(
            num_scalar_prefetch=0,
            grid=(nb, n_chunks),
            in_specs=in_specs,
            out_specs=out_spec,
            scratch_shapes=[pltpu.VMEM((num_layers, H, bb), jnp.float32)],
        ),
        compiler_params=pltpu.CompilerParams(
            # batch*node blocks are independent -> "parallel" (v7x's 2nd core);
            # the time-chunk axis carries the recurrence -> "arbitrary".
            dimension_semantics=("parallel", "arbitrary"),
            vmem_limit_bytes=vmem_limit,
        ),
    )(gi0, *weight_args)
    return hseq[:T]                                    # (T, H, BN)


def init_params(key, input_size, hidden_size, output_size, num_layers):
    """Deterministic init mirroring PyTorch shapes; weights stored pre-transposed
    so x @ W has gate order r,z,n along the 3H axis."""
    H = hidden_size
    bound = 1.0 / jnp.sqrt(jnp.float32(H))
    layers = []
    for l in range(num_layers):
        f_in = input_size if l == 0 else H
        key, k1, k2, k3, k4 = jax.random.split(key, 5)
        wih = jax.random.uniform(k1, (f_in, 3 * H), jnp.float32, -bound, bound)
        whh = jax.random.uniform(k2, (H, 3 * H), jnp.float32, -bound, bound)
        bih = jax.random.uniform(k3, (1, 3 * H), jnp.float32, -bound, bound)
        bhh = jax.random.uniform(k4, (1, 3 * H), jnp.float32, -bound, bound)
        layers.append((wih, whh, bih, bhh))
    key, k1, k2 = jax.random.split(key, 3)
    wout = jax.random.uniform(k1, (H, output_size), jnp.float32, -bound, bound)
    bout = jax.random.uniform(k2, (1, output_size), jnp.float32, -bound, bound)
    return layers, wout, bout


def gru_model_forward(data, layer_params, wout, bout, *, hidden_size, num_layers,
                      time_chunk=8, batch_block=None, compute_dtype=jnp.float32):
    x, x_attr, y, y_attr = data['x'], data['x_attr'], data['y'], data['y_attr']
    batch_num, node_num = x.shape[0], x.shape[2]
    T_x, T_y = x.shape[1], y.shape[1]
    BN = batch_num * node_num

    # glue (plain JAX): concat / permute / flatten / time-shift
    x_input = jnp.concatenate([x, x_attr], axis=-1).transpose(1, 0, 2, 3).reshape(T_x, BN, -1)
    y_in = jnp.concatenate([y, y_attr], axis=-1).transpose(1, 0, 2, 3).reshape(T_y, BN, -1)
    y_input = jnp.concatenate([x_input[-1:], y_in[:-1]], axis=0)

    hseq_t = gru_decode(y_input, layer_params, hidden_size=hidden_size,
                        num_layers=num_layers, time_chunk=time_chunk,
                        batch_block=batch_block, compute_dtype=compute_dtype)  # (T, H, BN)

    # Final Linear hoisted out of the kernel: one (H, O) matmul over all steps.
    cdt = compute_dtype
    out = jnp.einsum('thb,ho->tbo', hseq_t.astype(cdt), wout.astype(cdt),
                     preferred_element_type=jnp.float32) + bout
    out = out.reshape(T_y, batch_num, node_num, -1).transpose(1, 0, 2, 3)
    return out


def _reference_forward(data, layer_params, wout, bout, *, hidden_size, num_layers):
    """Pure-JAX reference (lax.scan, standard layout) for correctness check."""
    x, x_attr, y, y_attr = data['x'], data['x_attr'], data['y'], data['y_attr']
    batch_num, node_num = x.shape[0], x.shape[2]
    T_x, T_y = x.shape[1], y.shape[1]
    x_input = jnp.concatenate([x, x_attr], -1).transpose(1, 0, 2, 3).reshape(T_x, batch_num * node_num, -1)
    y_in = jnp.concatenate([y, y_attr], -1).transpose(1, 0, 2, 3).reshape(T_y, batch_num * node_num, -1)
    seq = jnp.concatenate([x_input[-1:], y_in[:-1]], axis=0)

    H = hidden_size
    B = seq.shape[1]

    def step(hs, x_t):
        new_hs = []
        inp = x_t
        for l in range(num_layers):
            wih, whh, bih, bhh = layer_params[l]
            h = hs[l]
            gi = inp @ wih + bih
            gh = h @ whh + bhh
            r = jax.nn.sigmoid(gi[:, :H] + gh[:, :H])
            z = jax.nn.sigmoid(gi[:, H:2 * H] + gh[:, H:2 * H])
            n = jnp.tanh(gi[:, 2 * H:] + r * gh[:, 2 * H:])
            h = (1.0 - z) * n + z * h
            new_hs.append(h)
            inp = h
        return tuple(new_hs), inp

    h0 = tuple(jnp.zeros((B, H), jnp.float32) for _ in range(num_layers))
    _, hidden_seq = jax.lax.scan(step, h0, seq)
    out = hidden_seq @ wout + bout
    return out.reshape(T_y, batch_num, node_num, -1).transpose(1, 0, 2, 3)


if __name__ == "__main__":
    # Small shapes consistent with the forward: x/x_attr/y/y_attr are
    # (batch, time, node, feat); input_size = F_x + F_attr.
    batch, T_x, T_y, node = 2, 4, 12, 4
    F_x, F_attr = 1, 2
    input_size = F_x + F_attr          # 3
    hidden_size = 32
    output_size = 1
    num_layers = 2                     # dropout ignored (eval-mode semantics)

    key = jax.random.PRNGKey(0)
    kx, kxa, ky, kya, kp = jax.random.split(key, 5)
    data = {
        'x': jax.random.normal(kx, (batch, T_x, node, F_x), jnp.float32),
        'x_attr': jax.random.normal(kxa, (batch, T_x, node, F_attr), jnp.float32),
        'y': jax.random.normal(ky, (batch, T_y, node, F_x), jnp.float32),
        'y_attr': jax.random.normal(kya, (batch, T_y, node, F_attr), jnp.float32),
    }
    layer_params, wout, bout = init_params(kp, input_size, hidden_size,
                                           output_size, num_layers)

    ref = _reference_forward(data, layer_params, wout, bout,
                             hidden_size=hidden_size, num_layers=num_layers)

    # f32 path, Tc=8 static unroll (T=12 -> 2 chunks, one time-padded).
    out = gru_model_forward(data, layer_params, wout, bout,
                            hidden_size=hidden_size, num_layers=num_layers)
    out = jax.block_until_ready(out)
    assert out.shape == (batch, T_y, node, output_size)
    assert jnp.allclose(out, ref, atol=1e-5, rtol=1e-5)

    # Larger time chunk -> in-kernel lax.fori_loop path (partial unroll).
    out2 = gru_model_forward(data, layer_params, wout, bout,
                             hidden_size=hidden_size, num_layers=num_layers,
                             time_chunk=12)
    out2 = jax.block_until_ready(out2)
    assert jnp.allclose(out2, ref, atol=1e-5, rtol=1e-5)

    # bf16 MXU-operand + bf16 gi0-storage path (f32 accumulation & gate math).
    out_bf16 = gru_model_forward(data, layer_params, wout, bout,
                                 hidden_size=hidden_size, num_layers=num_layers,
                                 compute_dtype=jnp.bfloat16)
    out_bf16 = jax.block_until_ready(out_bf16)
    assert jnp.allclose(out_bf16, ref, atol=1e-1, rtol=0.0)

    print("KERNEL_OK")
</pallas_src>

<mosaic_0001>
module attributes {stable_mosaic.version = 11 : i64} {
  func.func @kernel(%arg0: i32, %arg1: i32, %arg2: memref<8x96x8xf32, #tpu.memory_space<vmem>>, %arg3: memref<96x32xf32, #tpu.memory_space<vmem>>, %arg4: memref<32x1xf32, #tpu.memory_space<vmem>>, %arg5: memref<128x64xf32, #tpu.memory_space<vmem>>, %arg6: memref<128x1xf32, #tpu.memory_space<vmem>>, %arg7: memref<8x32x8xf32, #tpu.memory_space<vmem>>, %arg8: memref<2x32x8xf32, #tpu.memory_space<vmem>>) attributes {dimension_semantics = [#tpu.dimension_semantics<parallel>, #tpu.dimension_semantics<arbitrary>], iteration_bounds = array<i64: 1, 2>, scalar_prefetch = 0 : i64, scratch_operands = 1 : i64, tpu.core_type = #tpu.core_type<tc>, window_params = [{transform_indices = @transform_0, window_bounds = array<i64: 8, 96, 8>}, {pipeline_mode = #tpu.pipeline_mode<synchronous>, transform_indices = @transform_1, window_bounds = array<i64: 96, 32>}, {pipeline_mode = #tpu.pipeline_mode<synchronous>, transform_indices = @transform_2, window_bounds = array<i64: 32, 1>}, {pipeline_mode = #tpu.pipeline_mode<synchronous>, transform_indices = @transform_3, window_bounds = array<i64: 128, 64>}, {pipeline_mode = #tpu.pipeline_mode<synchronous>, transform_indices = @transform_4, window_bounds = array<i64: 128, 1>}, {transform_indices = @transform_5, window_bounds = array<i64: 8, 32, 8>}]} {
    %c0_i32 = arith.constant 0 : i32
    %0 = arith.cmpi eq, %arg1, %c0_i32 : i32
    %1 = arith.extui %0 : i1 to i32
    %c0_i32_0 = arith.constant 0 : i32
    %2 = arith.cmpi ne, %1, %c0_i32_0 : i32
    scf.if %2 {
      %cst_92 = arith.constant 0.000000e+00 : f32
      %385 = vector.broadcast %cst_92 : f32 to vector<2x32x8xf32>
      %c0_93 = arith.constant 0 : index
      %c0_94 = arith.constant 0 : index
      %c0_95 = arith.constant 0 : index
      %386 = vector.load %arg8[%c0_93, %c0_94, %c0_95] : memref<2x32x8xf32, #tpu.memory_space<vmem>>, vector<2x32x8xf32>
      tpu.vector_store %arg8[%c0_93, %c0_94, %c0_95], %385 {strides = array<i32>} : memref<2x32x8xf32, #tpu.memory_space<vmem>>, vector<2x32x8xf32>,
    } else {
    }
    %c0 = arith.constant 0 : index
    %c0_1 = arith.constant 0 : index
    %3 = vector.load %arg3[%c0, %c0_1] : memref<96x32xf32, #tpu.memory_space<vmem>>, vector<96x32xf32>
    %c0_2 = arith.constant 0 : index
    %c0_3 = arith.constant 0 : index
    %4 = vector.load %arg4[%c0_2, %c0_3] : memref<32x1xf32, #tpu.memory_space<vmem>>, vector<32x1xf32>
    %c0_4 = arith.constant 0 : index
    %c0_5 = arith.constant 0 : index
    %5 = vector.load %arg5[%c0_4, %c0_5] : memref<128x64xf32, #tpu.memory_space<vmem>>, vector<128x64xf32>
    %c0_6 = arith.constant 0 : index
    %c0_7 = arith.constant 0 : index
    %6 = vector.load %arg6[%c0_6, %c0_7] : memref<128x1xf32, #tpu.memory_space<vmem>>, vector<128x1xf32>
    %c0_8 = arith.constant 0 : index
    %c0_9 = arith.constant 0 : index
    %c0_10 = arith.constant 0 : index
    %7 = vector.load %arg8[%c0_8, %c0_9, %c0_10] : memref<2x32x8xf32, #tpu.memory_space<vmem>>, vector<1x32x8xf32>
    %8 = vector.shape_cast %7 : vector<1x32x8xf32> to vector<32x8xf32>
    %c1 = arith.constant 1 : index
    %c0_11 = arith.constant 0 : index
    %c0_12 = arith.constant 0 : index
    %9 = vector.load %arg8[%c1, %c0_11, %c0_12] : memref<2x32x8xf32, #tpu.memory_space<vmem>>, vector<1x32x8xf32>
    %10 = vector.shape_cast %9 : vector<1x32x8xf32> to vector<32x8xf32>
    %c0_13 = arith.constant 0 : index
    %c0_14 = arith.constant 0 : index
    %c0_15 = arith.constant 0 : index
    %11 = vector.load %arg2[%c0_13, %c0_14, %c0_15] : memref<8x96x8xf32, #tpu.memory_space<vmem>>, vector<1x96x8xf32>
    %12 = vector.shape_cast %11 : vector<1x96x8xf32> to vector<96x8xf32>
    %cst = arith.constant dense<0.000000e+00> : vector<96x8xf32>
    %13 = tpu.matmul %3, %8, %cst {dimension_numbers = #tpu.dot_dimension_numbers<[1], [0], [0], [1], [0, 0, 1, 1], [], []>} : vector<96x32xf32>, vector<32x8xf32>, vector<96x8xf32> -> vector<96x8xf32>
    %14 = vector.extract_strided_slice %12 {offsets = [0, 0], sizes = [64, 8], strides = [1, 1]} : vector<96x8xf32> to vector<64x8xf32>
    %15 = vector.extract_strided_slice %13 {offsets = [0, 0], sizes = [64, 8], strides = [1, 1]} : vector<96x8xf32> to vector<64x8xf32>
    %16 = arith.addf %14, %15 : vector<64x8xf32>
    %17 = arith.negf %16 : vector<64x8xf32>
    %18 = math.exp %17 : vector<64x8xf32>
    %cst_16 = arith.constant 1.000000e+00 : f32
    %19 = vector.broadcast %cst_16 : f32 to vector<64x8xf32>
    %20 = arith.addf %19, %18 : vector<64x8xf32>
    %21 = arith.divf %19, %20 : vector<64x8xf32>
    %22 = vector.extract_strided_slice %21 {offsets = [0, 0], sizes = [32, 8], strides = [1, 1]} : vector<64x8xf32> to vector<32x8xf32>
    %23 = vector.extract_strided_slice %21 {offsets = [32, 0], sizes = [32, 8], strides = [1, 1]} : vector<64x8xf32> to vector<32x8xf32>
    %24 = vector.extract_strided_slice %12 {offsets = [64, 0], sizes = [32, 8], strides = [1, 1]} : vector<96x8xf32> to vector<32x8xf32>
    %25 = vector.extract_strided_slice %13 {offsets = [64, 0], sizes = [32, 8], strides = [1, 1]} : vector<96x8xf32> to vector<32x8xf32>
    %26 = vector.broadcast %4 : vector<32x1xf32> to vector<32x8xf32>
    %27 = arith.addf %25, %26 : vector<32x8xf32>
    %28 = arith.mulf %22, %27 : vector<32x8xf32>
    %29 = arith.addf %24, %28 : vector<32x8xf32>
    %30 = math.tanh %29 : vector<32x8xf32>
    %31 = arith.subf %8, %30 : vector<32x8xf32>
    %32 = arith.mulf %23, %31 : vector<32x8xf32>
    %33 = arith.addf %30, %32 : vector<32x8xf32>
    %34 = tpu.concatenate %33, %10 in 0 : vector<32x8xf32>, vector<32x8xf32> -> vector<64x8xf32>
    %cst_17 = arith.constant dense<0.000000e+00> : vector<128x8xf32>
    %35 = tpu.matmul %5, %34, %cst_17 {dimension_numbers = #tpu.dot_dimension_numbers<[1], [0], [0], [1], [0, 0, 1, 1], [], []>} : vector<128x64xf32>, vector<64x8xf32>, vector<128x8xf32> -> vector<128x8xf32>
    %36 = vector.broadcast %6 : vector<128x1xf32> to vector<128x8xf32>
    %37 = arith.addf %35, %36 : vector<128x8xf32>
    %38 = vector.extract_strided_slice %37 {offsets = [0, 0], sizes = [64, 8], strides = [1, 1]} : vector<128x8xf32> to vector<64x8xf32>
    %39 = arith.negf %38 : vector<64x8xf32>
    %40 = math.exp %39 : vector<64x8xf32>
    %cst_18 = arith.constant 1.000000e+00 : f32
    %41 = vector.broadcast %cst_18 : f32 to vector<64x8xf32>
    %42 = arith.addf %41, %40 : vector<64x8xf32>
    %43 = arith.divf %41, %42 : vector<64x8xf32>
    %44 = vector.extract_strided_slice %43 {offsets = [0, 0], sizes = [32, 8], strides = [1, 1]} : vector<64x8xf32> to vector<32x8xf32>
    %45 = vector.extract_strided_slice %43 {offsets = [32, 0], sizes = [32, 8], strides = [1, 1]} : vector<64x8xf32> to vector<32x8xf32>
    %46 = vector.extract_strided_slice %37 {offsets = [64, 0], sizes = [32, 8], strides = [1, 1]} : vector<128x8xf32> to vector<32x8xf32>
    %47 = vector.extract_strided_slice %37 {offsets = [96, 0], sizes = [32, 8], strides = [1, 1]} : vector<128x8xf32> to vector<32x8xf32>
    %48 = arith.mulf %44, %47 : vector<32x8xf32>
    %49 = arith.addf %46, %48 : vector<32x8xf32>
    %50 = math.tanh %49 : vector<32x8xf32>
    %51 = arith.subf %10, %50 : vector<32x8xf32>
    %52 = arith.mulf %45, %51 : vector<32x8xf32>
    %53 = arith.addf %50, %52 : vector<32x8xf32>
    %c0_19 = arith.constant 0 : index
    %c0_20 = arith.constant 0 : index
    %c0_21 = arith.constant 0 : index
    %54 = vector.load %arg7[%c0_19, %c0_20, %c0_21] : memref<8x32x8xf32, #tpu.memory_space<vmem>>, vector<1x32x8xf32>
    %55 = vector.shape_cast %54 : vector<1x32x8xf32> to vector<32x8xf32>
    %56 = vector.shape_cast %53 : vector<32x8xf32> to vector<1x32x8xf32>
    tpu.vector_store %arg7[%c0_19, %c0_20, %c0_21], %56 {strides = array<i32>} : memref<8x32x8xf32, #tpu.memory_space<vmem>>, vector<1x32x8xf32>,
    %c1_22 = arith.constant 1 : index
    %c0_23 = arith.constant 0 : index
    %c0_24 = arith.constant 0 : index
    %57 = vector.load %arg2[%c1_22, %c0_23, %c0_24] : memref<8x96x8xf32, #tpu.memory_space<vmem>>, vector<1x96x8xf32>
    %58 = vector.shape_cast %57 : vector<1x96x8xf32> to vector<96x8xf32>
    %cst_25 = arith.constant dense<0.000000e+00> : vector<96x8xf32>
    %59 = tpu.matmul %3, %33, %cst_25 {dimension_numbers = #tpu.dot_dimension_numbers<[1], [0], [0], [1], [0, 0, 1, 1], [], []>} : vector<96x32xf32>, vector<32x8xf32>, vector<96x8xf32> -> vector<96x8xf32>
    %60 = vector.extract_strided_slice %58 {offsets = [0, 0], sizes = [64, 8], strides = [1, 1]} : vector<96x8xf32> to vector<64x8xf32>
    %61 = vector.extract_strided_slice %59 {offsets = [0, 0], sizes = [64, 8], strides = [1, 1]} : vector<96x8xf32> to vector<64x8xf32>
    %62 = arith.addf %60, %61 : vector<64x8xf32>
    %63 = arith.negf %62 : vector<64x8xf32>
    %64 = math.exp %63 : vector<64x8xf32>
    %cst_26 = arith.constant 1.000000e+00 : f32
    %65 = vector.broadcast %cst_26 : f32 to vector<64x8xf32>
    %66 = arith.addf %65, %64 : vector<64x8xf32>
    %67 = arith.divf %65, %66 : vector<64x8xf32>
    %68 = vector.extract_strided_slice %67 {offsets = [0, 0], sizes = [32, 8], strides = [1, 1]} : vector<64x8xf32> to vector<32x8xf32>
    %69 = vector.extract_strided_slice %67 {offsets = [32, 0], sizes = [32, 8], strides = [1, 1]} : vector<64x8xf32> to vector<32x8xf32>
    %70 = vector.extract_strided_slice %58 {offsets = [64, 0], sizes = [32, 8], strides = [1, 1]} : vector<96x8xf32> to vector<32x8xf32>
    %71 = vector.extract_strided_slice %59 {offsets = [64, 0], sizes = [32, 8], strides = [1, 1]} : vector<96x8xf32> to vector<32x8xf32>
    %72 = vector.broadcast %4 : vector<32x1xf32> to vector<32x8xf32>
    %73 = arith.addf %71, %72 : vector<32x8xf32>
    %74 = arith.mulf %68, %73 : vector<32x8xf32>
    %75 = arith.addf %70, %74 : vector<32x8xf32>
    %76 = math.tanh %75 : vector<32x8xf32>
    %77 = arith.subf %33, %76 : vector<32x8xf32>
    %78 = arith.mulf %69, %77 : vector<32x8xf32>
    %79 = arith.addf %76, %78 : vector<32x8xf32>
    %80 = tpu.concatenate %79, %53 in 0 : vector<32x8xf32>, vector<32x8xf32> -> vector<64x8xf32>
    %cst_27 = arith.constant dense<0.000000e+00> : vector<128x8xf32>
    %81 = tpu.matmul %5, %80, %cst_27 {dimension_numbers = #tpu.dot_dimension_numbers<[1], [0], [0], [1], [0, 0, 1, 1], [], []>} : vector<128x64xf32>, vector<64x8xf32>, vector<128x8xf32> -> vector<128x8xf32>
    %82 = vector.broadcast %6 : vector<128x1xf32> to vector<128x8xf32>
    %83 = arith.addf %81, %82 : vector<128x8xf32>
    %84 = vector.extract_strided_slice %83 {offsets = [0, 0], sizes = [64, 8], strides = [1, 1]} : vector<128x8xf32> to vector<64x8xf32>
    %85 = arith.negf %84 : vector<64x8xf32>
    %86 = math.exp %85 : vector<64x8xf32>
    %cst_28 = arith.constant 1.000000e+00 : f32
    %87 = vector.broadcast %cst_28 : f32 to vector<64x8xf32>
    %88 = arith.addf %87, %86 : vector<64x8xf32>
    %89 = arith.divf %87, %88 : vector<64x8xf32>
    %90 = vector.extract_strided_slice %89 {offsets = [0, 0], sizes = [32, 8], strides = [1, 1]} : vector<64x8xf32> to vector<32x8xf32>
    %91 = vector.extract_strided_slice %89 {offsets = [32, 0], sizes = [32, 8], strides = [1, 1]} : vector<64x8xf32> to vector<32x8xf32>
    %92 = vector.extract_strided_slice %83 {offsets = [64, 0], sizes = [32, 8], strides = [1, 1]} : vector<128x8xf32> to vector<32x8xf32>
    %93 = vector.extract_strided_slice %83 {offsets = [96, 0], sizes = [32, 8], strides = [1, 1]} : vector<128x8xf32> to vector<32x8xf32>
    %94 = arith.mulf %90, %93 : vector<32x8xf32>
    %95 = arith.addf %92, %94 : vector<32x8xf32>
    %96 = math.tanh %95 : vector<32x8xf32>
    %97 = arith.subf %53, %96 : vector<32x8xf32>
    %98 = arith.mulf %91, %97 : vector<32x8xf32>
    %99 = arith.addf %96, %98 : vector<32x8xf32>
    %c1_29 = arith.constant 1 : index
    %c0_30 = arith.constant 0 : index
    %c0_31 = arith.constant 0 : index
    %100 = vector.load %arg7[%c1_29, %c0_30, %c0_31] : memref<8x32x8xf32, #tpu.memory_space<vmem>>, vector<1x32x8xf32>
    %101 = vector.shape_cast %100 : vector<1x32x8xf32> to vector<32x8xf32>
    %102 = vector.shape_cast %99 : vector<32x8xf32> to vector<1x32x8xf32>
    tpu.vector_store %arg7[%c1_29, %c0_30, %c0_31], %102 {strides = array<i32>} : memref<8x32x8xf32, #tpu.memory_space<vmem>>, vector<1x32x8xf32>,
    %c2 = arith.constant 2 : index
    %c0_32 = arith.constant 0 : index
    %c0_33 = arith.constant 0 : index
    %103 = vector.load %arg2[%c2, %c0_32, %c0_33] : memref<8x96x8xf32, #tpu.memory_space<vmem>>, vector<1x96x8xf32>
    %104 = vector.shape_cast %103 : vector<1x96x8xf32> to vector<96x8xf32>
    %cst_34 = arith.constant dense<0.000000e+00> : vector<96x8xf32>
    %105 = tpu.matmul %3, %79, %cst_34 {dimension_numbers = #tpu.dot_dimension_numbers<[1], [0], [0], [1], [0, 0, 1, 1], [], []>} : vector<96x32xf32>, vector<32x8xf32>, vector<96x8xf32> -> vector<96x8xf32>
    %106 = vector.extract_strided_slice %104 {offsets = [0, 0], sizes = [64, 8], strides = [1, 1]} : vector<96x8xf32> to vector<64x8xf32>
    %107 = vector.extract_strided_slice %105 {offsets = [0, 0], sizes = [64, 8], strides = [1, 1]} : vector<96x8xf32> to vector<64x8xf32>
    %108 = arith.addf %106, %107 : vector<64x8xf32>
    %109 = arith.negf %108 : vector<64x8xf32>
    %110 = math.exp %109 : vector<64x8xf32>
    %cst_35 = arith.constant 1.000000e+00 : f32
    %111 = vector.broadcast %cst_35 : f32 to vector<64x8xf32>
    %112 = arith.addf %111, %110 : vector<64x8xf32>
    %113 = arith.divf %111, %112 : vector<64x8xf32>
    %114 = vector.extract_strided_slice %113 {offsets = [0, 0], sizes = [32, 8], strides = [1, 1]} : vector<64x8xf32> to vector<32x8xf32>
    %115 = vector.extract_strided_slice %113 {offsets = [32, 0], sizes = [32, 8], strides = [1, 1]} : vector<64x8xf32> to vector<32x8xf32>
    %116 = vector.extract_strided_slice %104 {offsets = [64, 0], sizes = [32, 8], strides = [1, 1]} : vector<96x8xf32> to vector<32x8xf32>
    %117 = vector.extract_strided_slice %105 {offsets = [64, 0], sizes = [32, 8], strides = [1, 1]} : vector<96x8xf32> to vector<32x8xf32>
    %118 = vector.broadcast %4 : vector<32x1xf32> to vector<32x8xf32>
    %119 = arith.addf %117, %118 : vector<32x8xf32>
    %120 = arith.mulf %114, %119 : vector<32x8xf32>
    %121 = arith.addf %116, %120 : vector<32x8xf32>
    %122 = math.tanh %121 : vector<32x8xf32>
    %123 = arith.subf %79, %122 : vector<32x8xf32>
    %124 = arith.mulf %115, %123 : vector<32x8xf32>
    %125 = arith.addf %122, %124 : vector<32x8xf32>
    %126 = tpu.concatenate %125, %99 in 0 : vector<32x8xf32>, vector<32x8xf32> -> vector<64x8xf32>
    %cst_36 = arith.constant dense<0.000000e+00> : vector<128x8xf32>
    %127 = tpu.matmul %5, %126, %cst_36 {dimension_numbers = #tpu.dot_dimension_numbers<[1], [0], [0], [1], [0, 0, 1, 1], [], []>} : vector<128x64xf32>, vector<64x8xf32>, vector<128x8xf32> -> vector<128x8xf32>
    %128 = vector.broadcast %6 : vector<128x1xf32> to vector<128x8xf32>
    %129 = arith.addf %127, %128 : vector<128x8xf32>
    %130 = vector.extract_strided_slice %129 {offsets = [0, 0], sizes = [64, 8], strides = [1, 1]} : vector<128x8xf32> to vector<64x8xf32>
    %131 = arith.negf %130 : vector<64x8xf32>
    %132 = math.exp %131 : vector<64x8xf32>
    %cst_37 = arith.constant 1.000000e+00 : f32
    %133 = vector.broadcast %cst_37 : f32 to vector<64x8xf32>
    %134 = arith.addf %133, %132 : vector<64x8xf32>
    %135 = arith.divf %133, %134 : vector<64x8xf32>
    %136 = vector.extract_strided_slice %135 {offsets = [0, 0], sizes = [32, 8], strides = [1, 1]} : vector<64x8xf32> to vector<32x8xf32>
    %137 = vector.extract_strided_slice %135 {offsets = [32, 0], sizes = [32, 8], strides = [1, 1]} : vector<64x8xf32> to vector<32x8xf32>
    %138 = vector.extract_strided_slice %129 {offsets = [64, 0], sizes = [32, 8], strides = [1, 1]} : vector<128x8xf32> to vector<32x8xf32>
    %139 = vector.extract_strided_slice %129 {offsets = [96, 0], sizes = [32, 8], strides = [1, 1]} : vector<128x8xf32> to vector<32x8xf32>
    %140 = arith.mulf %136, %139 : vector<32x8xf32>
    %141 = arith.addf %138, %140 : vector<32x8xf32>
    %142 = math.tanh %141 : vector<32x8xf32>
    %143 = arith.subf %99, %142 : vector<32x8xf32>
    %144 = arith.mulf %137, %143 : vector<32x8xf32>
    %145 = arith.addf %142, %144 : vector<32x8xf32>
    %c2_38 = arith.constant 2 : index
    %c0_39 = arith.constant 0 : index
    %c0_40 = arith.constant 0 : index
    %146 = vector.load %arg7[%c2_38, %c0_39, %c0_40] : memref<8x32x8xf32, #tpu.memory_space<vmem>>, vector<1x32x8xf32>
    %147 = vector.shape_cast %146 : vector<1x32x8xf32> to vector<32x8xf32>
    %148 = vector.shape_cast %145 : vector<32x8xf32> to vector<1x32x8xf32>
    tpu.vector_store %arg7[%c2_38, %c0_39, %c0_40], %148 {strides = array<i32>} : memref<8x32x8xf32, #tpu.memory_space<vmem>>, vector<1x32x8xf32>,
    %c3 = arith.constant 3 : index
    %c0_41 = arith.constant 0 : index
    %c0_42 = arith.constant 0 : index
    %149 = vector.load %arg2[%c3, %c0_41, %c0_42] : memref<8x96x8xf32, #tpu.memory_space<vmem>>, vector<1x96x8xf32>
    %150 = vector.shape_cast %149 : vector<1x96x8xf32> to vector<96x8xf32>
    %cst_43 = arith.constant dense<0.000000e+00> : vector<96x8xf32>
    %151 = tpu.matmul %3, %125, %cst_43 {dimension_numbers = #tpu.dot_dimension_numbers<[1], [0], [0], [1], [0, 0, 1, 1], [], []>} : vector<96x32xf32>, vector<32x8xf32>, vector<96x8xf32> -> vector<96x8xf32>
    %152 = vector.extract_strided_slice %150 {offsets = [0, 0], sizes = [64, 8], strides = [1, 1]} : vector<96x8xf32> to vector<64x8xf32>
    %153 = vector.extract_strided_slice %151 {offsets = [0, 0], sizes = [64, 8], strides = [1, 1]} : vector<96x8xf32> to vector<64x8xf32>
    %154 = arith.addf %152, %153 : vector<64x8xf32>
    %155 = arith.negf %154 : vector<64x8xf32>
    %156 = math.exp %155 : vector<64x8xf32>
    %cst_44 = arith.constant 1.000000e+00 : f32
    %157 = vector.broadcast %cst_44 : f32 to vector<64x8xf32>
    %158 = arith.addf %157, %156 : vector<64x8xf32>
    %159 = arith.divf %157, %158 : vector<64x8xf32>
    %160 = vector.extract_strided_slice %159 {offsets = [0, 0], sizes = [32, 8], strides = [1, 1]} : vector<64x8xf32> to vector<32x8xf32>
    %161 = vector.extract_strided_slice %159 {offsets = [32, 0], sizes = [32, 8], strides = [1, 1]} : vector<64x8xf32> to vector<32x8xf32>
    %162 = vector.extract_strided_slice %150 {offsets = [64, 0], sizes = [32, 8], strides = [1, 1]} : vector<96x8xf32> to vector<32x8xf32>
    %163 = vector.extract_strided_slice %151 {offsets = [64, 0], sizes = [32, 8], strides = [1, 1]} : vector<96x8xf32> to vector<32x8xf32>
    %164 = vector.broadcast %4 : vector<32x1xf32> to vector<32x8xf32>
    %165 = arith.addf %163, %164 : vector<32x8xf32>
    %166 = arith.mulf %160, %165 : vector<32x8xf32>
    %167 = arith.addf %162, %166 : vector<32x8xf32>
    %168 = math.tanh %167 : vector<32x8xf32>
    %169 = arith.subf %125, %168 : vector<32x8xf32>
    %170 = arith.mulf %161, %169 : vector<32x8xf32>
    %171 = arith.addf %168, %170 : vector<32x8xf32>
    %172 = tpu.concatenate %171, %145 in 0 : vector<32x8xf32>, vector<32x8xf32> -> vector<64x8xf32>
    %cst_45 = arith.constant dense<0.000000e+00> : vector<128x8xf32>
    %173 = tpu.matmul %5, %172, %cst_45 {dimension_numbers = #tpu.dot_dimension_numbers<[1], [0], [0], [1], [0, 0, 1, 1], [], []>} : vector<128x64xf32>, vector<64x8xf32>, vector<128x8xf32> -> vector<128x8xf32>
    %174 = vector.broadcast %6 : vector<128x1xf32> to vector<128x8xf32>
    %175 = arith.addf %173, %174 : vector<128x8xf32>
    %176 = vector.extract_strided_slice %175 {offsets = [0, 0], sizes = [64, 8], strides = [1, 1]} : vector<128x8xf32> to vector<64x8xf32>
    %177 = arith.negf %176 : vector<64x8xf32>
    %178 = math.exp %177 : vector<64x8xf32>
    %cst_46 = arith.constant 1.000000e+00 : f32
    %179 = vector.broadcast %cst_46 : f32 to vector<64x8xf32>
    %180 = arith.addf %179, %178 : vector<64x8xf32>
    %181 = arith.divf %179, %180 : vector<64x8xf32>
    %182 = vector.extract_strided_slice %181 {offsets = [0, 0], sizes = [32, 8], strides = [1, 1]} : vector<64x8xf32> to vector<32x8xf32>
    %183 = vector.extract_strided_slice %181 {offsets = [32, 0], sizes = [32, 8], strides = [1, 1]} : vector<64x8xf32> to vector<32x8xf32>
    %184 = vector.extract_strided_slice %175 {offsets = [64, 0], sizes = [32, 8], strides = [1, 1]} : vector<128x8xf32> to vector<32x8xf32>
    %185 = vector.extract_strided_slice %175 {offsets = [96, 0], sizes = [32, 8], strides = [1, 1]} : vector<128x8xf32> to vector<32x8xf32>
    %186 = arith.mulf %182, %185 : vector<32x8xf32>
    %187 = arith.addf %184, %186 : vector<32x8xf32>
    %188 = math.tanh %187 : vector<32x8xf32>
    %189 = arith.subf %145, %188 : vector<32x8xf32>
    %190 = arith.mulf %183, %189 : vector<32x8xf32>
    %191 = arith.addf %188, %190 : vector<32x8xf32>
    %c3_47 = arith.constant 3 : index
    %c0_48 = arith.constant 0 : index
    %c0_49 = arith.constant 0 : index
    %192 = vector.load %arg7[%c3_47, %c0_48, %c0_49] : memref<8x32x8xf32, #tpu.memory_space<vmem>>, vector<1x32x8xf32>
    %193 = vector.shape_cast %192 : vector<1x32x8xf32> to vector<32x8xf32>
    %194 = vector.shape_cast %191 : vector<32x8xf32> to vector<1x32x8xf32>
    tpu.vector_store %arg7[%c3_47, %c0_48, %c0_49], %194 {strides = array<i32>} : memref<8x32x8xf32, #tpu.memory_space<vmem>>, vector<1x32x8xf32>,
    %c4 = arith.constant 4 : index
    %c0_50 = arith.constant 0 : index
    %c0_51 = arith.constant 0 : index
    %195 = vector.load %arg2[%c4, %c0_50, %c0_51] : memref<8x96x8xf32, #tpu.memory_space<vmem>>, vector<1x96x8xf32>
    %196 = vector.shape_cast %195 : vector<1x96x8xf32> to vector<96x8xf32>
    %cst_52 = arith.constant dense<0.000000e+00> : vector<96x8xf32>
    %197 = tpu.matmul %3, %171, %cst_52 {dimension_numbers = #tpu.dot_dimension_numbers<[1], [0], [0], [1], [0, 0, 1, 1], [], []>} : vector<96x32xf32>, vector<32x8xf32>, vector<96x8xf32> -> vector<96x8xf32>
    %198 = vector.extract_strided_slice %196 {offsets = [0, 0], sizes = [64, 8], strides = [1, 1]} : vector<96x8xf32> to vector<64x8xf32>
    %199 = vector.extract_strided_slice %197 {offsets = [0, 0], sizes = [64, 8], strides = [1, 1]} : vector<96x8xf32> to vector<64x8xf32>
    %200 = arith.addf %198, %199 : vector<64x8xf32>
    %201 = arith.negf %200 : vector<64x8xf32>
    %202 = math.exp %201 : vector<64x8xf32>
    %cst_53 = arith.constant 1.000000e+00 : f32
    %203 = vector.broadcast %cst_53 : f32 to vector<64x8xf32>
    %204 = arith.addf %203, %202 : vector<64x8xf32>
    %205 = arith.divf %203, %204 : vector<64x8xf32>
    %206 = vector.extract_strided_slice %205 {offsets = [0, 0], sizes = [32, 8], strides = [1, 1]} : vector<64x8xf32> to vector<32x8xf32>
    %207 = vector.extract_strided_slice %205 {offsets = [32, 0], sizes = [32, 8], strides = [1, 1]} : vector<64x8xf32> to vector<32x8xf32>
    %208 = vector.extract_strided_slice %196 {offsets = [64, 0], sizes = [32, 8], strides = [1, 1]} : vector<96x8xf32> to vector<32x8xf32>
    %209 = vector.extract_strided_slice %197 {offsets = [64, 0], sizes = [32, 8], strides = [1, 1]} : vector<96x8xf32> to vector<32x8xf32>
    %210 = vector.broadcast %4 : vector<32x1xf32> to vector<32x8xf32>
    %211 = arith.addf %209, %210 : vector<32x8xf32>
    %212 = arith.mulf %206, %211 : vector<32x8xf32>
    %213 = arith.addf %208, %212 : vector<32x8xf32>
    %214 = math.tanh %213 : vector<32x8xf32>
    %215 = arith.subf %171, %214 : vector<32x8xf32>
    %216 = arith.mulf %207, %215 : vector<32x8xf32>
    %217 = arith.addf %214, %216 : vector<32x8xf32>
    %218 = tpu.concatenate %217, %191 in 0 : vector<32x8xf32>, vector<32x8xf32> -> vector<64x8xf32>
    %cst_54 = arith.constant dense<0.000000e+00> : vector<128x8xf32>
    %219 = tpu.matmul %5, %218, %cst_54 {dimension_numbers = #tpu.dot_dimension_numbers<[1], [0], [0], [1], [0, 0, 1, 1], [], []>} : vector<128x64xf32>, vector<64x8xf32>, vector<128x8xf32> -> vector<128x8xf32>
    %220 = vector.broadcast %6 : vector<128x1xf32> to vector<128x8xf32>
    %221 = arith.addf %219, %220 : vector<128x8xf32>
    %222 = vector.extract_strided_slice %221 {offsets = [0, 0], sizes = [64, 8], strides = [1, 1]} : vector<128x8xf32> to vector<64x8xf32>
    %223 = arith.negf %222 : vector<64x8xf32>
    %224 = math.exp %223 : vector<64x8xf32>
    %cst_55 = arith.constant 1.000000e+00 : f32
    %225 = vector.broadcast %cst_55 : f32 to vector<64x8xf32>
    %226 = arith.addf %225, %224 : vector<64x8xf32>
    %227 = arith.divf %225, %226 : vector<64x8xf32>
    %228 = vector.extract_strided_slice %227 {offsets = [0, 0], sizes = [32, 8], strides = [1, 1]} : vector<64x8xf32> to vector<32x8xf32>
    %229 = vector.extract_strided_slice %227 {offsets = [32, 0], sizes = [32, 8], strides = [1, 1]} : vector<64x8xf32> to vector<32x8xf32>
    %230 = vector.extract_strided_slice %221 {offsets = [64, 0], sizes = [32, 8], strides = [1, 1]} : vector<128x8xf32> to vector<32x8xf32>
    %231 = vector.extract_strided_slice %221 {offsets = [96, 0], sizes = [32, 8], strides = [1, 1]} : vector<128x8xf32> to vector<32x8xf32>
    %232 = arith.mulf %228, %231 : vector<32x8xf32>
    %233 = arith.addf %230, %232 : vector<32x8xf32>
    %234 = math.tanh %233 : vector<32x8xf32>
    %235 = arith.subf %191, %234 : vector<32x8xf32>
    %236 = arith.mulf %229, %235 : vector<32x8xf32>
    %237 = arith.addf %234, %236 : vector<32x8xf32>
    %c4_56 = arith.constant 4 : index
    %c0_57 = arith.constant 0 : index
    %c0_58 = arith.constant 0 : index
    %238 = vector.load %arg7[%c4_56, %c0_57, %c0_58] : memref<8x32x8xf32, #tpu.memory_space<vmem>>, vector<1x32x8xf32>
    %239 = vector.shape_cast %238 : vector<1x32x8xf32> to vector<32x8xf32>
    %240 = vector.shape_cast %237 : vector<32x8xf32> to vector<1x32x8xf32>
    tpu.vector_store %arg7[%c4_56, %c0_57, %c0_58], %240 {strides = array<i32>} : memref<8x32x8xf32, #tpu.memory_space<vmem>>, vector<1x32x8xf32>,
    %c5 = arith.constant 5 : index
    %c0_59 = arith.constant 0 : index
    %c0_60 = arith.constant 0 : index
    %241 = vector.load %arg2[%c5, %c0_59, %c0_60] : memref<8x96x8xf32, #tpu.memory_space<vmem>>, vector<1x96x8xf32>
    %242 = vector.shape_cast %241 : vector<1x96x8xf32> to vector<96x8xf32>
    %cst_61 = arith.constant dense<0.000000e+00> : vector<96x8xf32>
    %243 = tpu.matmul %3, %217, %cst_61 {dimension_numbers = #tpu.dot_dimension_numbers<[1], [0], [0], [1], [0, 0, 1, 1], [], []>} : vector<96x32xf32>, vector<32x8xf32>, vector<96x8xf32> -> vector<96x8xf32>
    %244 = vector.extract_strided_slice %242 {offsets = [0, 0], sizes = [64, 8], strides = [1, 1]} : vector<96x8xf32> to vector<64x8xf32>
    %245 = vector.extract_strided_slice %243 {offsets = [0, 0], sizes = [64, 8], strides = [1, 1]} : vector<96x8xf32> to vector<64x8xf32>
    %246 = arith.addf %244, %245 : vector<64x8xf32>
    %247 = arith.negf %246 : vector<64x8xf32>
    %248 = math.exp %247 : vector<64x8xf32>
    %cst_62 = arith.constant 1.000000e+00 : f32
    %249 = vector.broadcast %cst_62 : f32 to vector<64x8xf32>
    %250 = arith.addf %249, %248 : vector<64x8xf32>
    %251 = arith.divf %249, %250 : vector<64x8xf32>
    %252 = vector.extract_strided_slice %251 {offsets = [0, 0], sizes = [32, 8], strides = [1, 1]} : vector<64x8xf32> to vector<32x8xf32>
    %253 = vector.extract_strided_slice %251 {offsets = [32, 0], sizes = [32, 8], strides = [1, 1]} : vector<64x8xf32> to vector<32x8xf32>
    %254 = vector.extract_strided_slice %242 {offsets = [64, 0], sizes = [32, 8], strides = [1, 1]} : vector<96x8xf32> to vector<32x8xf32>
    %255 = vector.extract_strided_slice %243 {offsets = [64, 0], sizes = [32, 8], strides = [1, 1]} : vector<96x8xf32> to vector<32x8xf32>
    %256 = vector.broadcast %4 : vector<32x1xf32> to vector<32x8xf32>
    %257 = arith.addf %255, %256 : vector<32x8xf32>
    %258 = arith.mulf %252, %257 : vector<32x8xf32>
    %259 = arith.addf %254, %258 : vector<32x8xf32>
    %260 = math.tanh %259 : vector<32x8xf32>
    %261 = arith.subf %217, %260 : vector<32x8xf32>
    %262 = arith.mulf %253, %261 : vector<32x8xf32>
    %263 = arith.addf %260, %262 : vector<32x8xf32>
    %264 = tpu.concatenate %263, %237 in 0 : vector<32x8xf32>, vector<32x8xf32> -> vector<64x8xf32>
    %cst_63 = arith.constant dense<0.000000e+00> : vector<128x8xf32>
    %265 = tpu.matmul %5, %264, %cst_63 {dimension_numbers = #tpu.dot_dimension_numbers<[1], [0], [0], [1], [0, 0, 1, 1], [], []>} : vector<128x64xf32>, vector<64x8xf32>, vector<128x8xf32> -> vector<128x8xf32>
    %266 = vector.broadcast %6 : vector<128x1xf32> to vector<128x8xf32>
    %267 = arith.addf %265, %266 : vector<128x8xf32>
    %268 = vector.extract_strided_slice %267 {offsets = [0, 0], sizes = [64, 8], strides = [1, 1]} : vector<128x8xf32> to vector<64x8xf32>
    %269 = arith.negf %268 : vector<64x8xf32>
    %270 = math.exp %269 : vector<64x8xf32>
    %cst_64 = arith.constant 1.000000e+00 : f32
    %271 = vector.broadcast %cst_64 : f32 to vector<64x8xf32>
    %272 = arith.addf %271, %270 : vector<64x8xf32>
    %273 = arith.divf %271, %272 : vector<64x8xf32>
    %274 = vector.extract_strided_slice %273 {offsets = [0, 0], sizes = [32, 8], strides = [1, 1]} : vector<64x8xf32> to vector<32x8xf32>
    %275 = vector.extract_strided_slice %273 {offsets = [32, 0], sizes = [32, 8], strides = [1, 1]} : vector<64x8xf32> to vector<32x8xf32>
    %276 = vector.extract_strided_slice %267 {offsets = [64, 0], sizes = [32, 8], strides = [1, 1]} : vector<128x8xf32> to vector<32x8xf32>
    %277 = vector.extract_strided_slice %267 {offsets = [96, 0], sizes = [32, 8], strides = [1, 1]} : vector<128x8xf32> to vector<32x8xf32>
    %278 = arith.mulf %274, %277 : vector<32x8xf32>
    %279 = arith.addf %276, %278 : vector<32x8xf32>
    %280 = math.tanh %279 : vector<32x8xf32>
    %281 = arith.subf %237, %280 : vector<32x8xf32>
    %282 = arith.mulf %275, %281 : vector<32x8xf32>
    %283 = arith.addf %280, %282 : vector<32x8xf32>
    %c5_65 = arith.constant 5 : index
    %c0_66 = arith.constant 0 : index
    %c0_67 = arith.constant 0 : index
    %284 = vector.load %arg7[%c5_65, %c0_66, %c0_67] : memref<8x32x8xf32, #tpu.memory_space<vmem>>, vector<1x32x8xf32>
    %285 = vector.shape_cast %284 : vector<1x32x8xf32> to vector<32x8xf32>
    %286 = vector.shape_cast %283 : vector<32x8xf32> to vector<1x32x8xf32>
    tpu.vector_store %arg7[%c5_65, %c0_66, %c0_67], %286 {strides = array<i32>} : memref<8x32x8xf32, #tpu.memory_space<vmem>>, vector<1x32x8xf32>,
    %c6 = arith.constant 6 : index
    %c0_68 = arith.constant 0 : index
    %c0_69 = arith.constant 0 : index
    %287 = vector.load %arg2[%c6, %c0_68, %c0_69] : memref<8x96x8xf32, #tpu.memory_space<vmem>>, vector<1x96x8xf32>
    %288 = vector.shape_cast %287 : vector<1x96x8xf32> to vector<96x8xf32>
    %cst_70 = arith.constant dense<0.000000e+00> : vector<96x8xf32>
    %289 = tpu.matmul %3, %263, %cst_70 {dimension_numbers = #tpu.dot_dimension_numbers<[1], [0], [0], [1], [0, 0, 1, 1], [], []>} : vector<96x32xf32>, vector<32x8xf32>, vector<96x8xf32> -> vector<96x8xf32>
    %290 = vector.extract_strided_slice %288 {offsets = [0, 0], sizes = [64, 8], strides = [1, 1]} : vector<96x8xf32> to vector<64x8xf32>
    %291 = vector.extract_strided_slice %289 {offsets = [0, 0], sizes = [64, 8], strides = [1, 1]} : vector<96x8xf32> to vector<64x8xf32>
    %292 = arith.addf %290, %291 : vector<64x8xf32>
    %293 = arith.negf %292 : vector<64x8xf32>
    %294 = math.exp %293 : vector<64x8xf32>
    %cst_71 = arith.constant 1.000000e+00 : f32
    %295 = vector.broadcast %cst_71 : f32 to vector<64x8xf32>
    %296 = arith.addf %295, %294 : vector<64x8xf32>
    %297 = arith.divf %295, %296 : vector<64x8xf32>
    %298 = vector.extract_strided_slice %297 {offsets = [0, 0], sizes = [32, 8], strides = [1, 1]} : vector<64x8xf32> to vector<32x8xf32>
    %299 = vector.extract_strided_slice %297 {offsets = [32, 0], sizes = [32, 8], strides = [1, 1]} : vector<64x8xf32> to vector<32x8xf32>
    %300 = vector.extract_strided_slice %288 {offsets = [64, 0], sizes = [32, 8], strides = [1, 1]} : vector<96x8xf32> to vector<32x8xf32>
    %301 = vector.extract_strided_slice %289 {offsets = [64, 0], sizes = [32, 8], strides = [1, 1]} : vector<96x8xf32> to vector<32x8xf32>
    %302 = vector.broadcast %4 : vector<32x1xf32> to vector<32x8xf32>
    %303 = arith.addf %301, %302 : vector<32x8xf32>
    %304 = arith.mulf %298, %303 : vector<32x8xf32>
    %305 = arith.addf %300, %304 : vector<32x8xf32>
    %306 = math.tanh %305 : vector<32x8xf32>
    %307 = arith.subf %263, %306 : vector<32x8xf32>
    %308 = arith.mulf %299, %307 : vector<32x8xf32>
    %309 = arith.addf %306, %308 : vector<32x8xf32>
    %310 = tpu.concatenate %309, %283 in 0 : vector<32x8xf32>, vector<32x8xf32> -> vector<64x8xf32>
    %cst_72 = arith.constant dense<0.000000e+00> : vector<128x8xf32>
    %311 = tpu.matmul %5, %310, %cst_72 {dimension_numbers = #tpu.dot_dimension_numbers<[1], [0], [0], [1], [0, 0, 1, 1], [], []>} : vector<128x64xf32>, vector<64x8xf32>, vector<128x8xf32> -> vector<128x8xf32>
    %312 = vector.broadcast %6 : vector<128x1xf32> to vector<128x8xf32>
    %313 = arith.addf %311, %312 : vector<128x8xf32>
    %314 = vector.extract_strided_slice %313 {offsets = [0, 0], sizes = [64, 8], strides = [1, 1]} : vector<128x8xf32> to vector<64x8xf32>
    %315 = arith.negf %314 : vector<64x8xf32>
    %316 = math.exp %315 : vector<64x8xf32>
    %cst_73 = arith.constant 1.000000e+00 : f32
    %317 = vector.broadcast %cst_73 : f32 to vector<64x8xf32>
    %318 = arith.addf %317, %316 : vector<64x8xf32>
    %319 = arith.divf %317, %318 : vector<64x8xf32>
    %320 = vector.extract_strided_slice %319 {offsets = [0, 0], sizes = [32, 8], strides = [1, 1]} : vector<64x8xf32> to vector<32x8xf32>
    %321 = vector.extract_strided_slice %319 {offsets = [32, 0], sizes = [32, 8], strides = [1, 1]} : vector<64x8xf32> to vector<32x8xf32>
    %322 = vector.extract_strided_slice %313 {offsets = [64, 0], sizes = [32, 8], strides = [1, 1]} : vector<128x8xf32> to vector<32x8xf32>
    %323 = vector.extract_strided_slice %313 {offsets = [96, 0], sizes = [32, 8], strides = [1, 1]} : vector<128x8xf32> to vector<32x8xf32>
    %324 = arith.mulf %320, %323 : vector<32x8xf32>
    %325 = arith.addf %322, %324 : vector<32x8xf32>
    %326 = math.tanh %325 : vector<32x8xf32>
    %327 = arith.subf %283, %326 : vector<32x8xf32>
    %328 = arith.mulf %321, %327 : vector<32x8xf32>
    %329 = arith.addf %326, %328 : vector<32x8xf32>
    %c6_74 = arith.constant 6 : index
    %c0_75 = arith.constant 0 : index
    %c0_76 = arith.constant 0 : index
    %330 = vector.load %arg7[%c6_74, %c0_75, %c0_76] : memref<8x32x8xf32, #tpu.memory_space<vmem>>, vector<1x32x8xf32>
    %331 = vector.shape_cast %330 : vector<1x32x8xf32> to vector<32x8xf32>
    %332 = vector.shape_cast %329 : vector<32x8xf32> to vector<1x32x8xf32>
    tpu.vector_store %arg7[%c6_74, %c0_75, %c0_76], %332 {strides = array<i32>} : memref<8x32x8xf32, #tpu.memory_space<vmem>>, vector<1x32x8xf32>,
    %c7 = arith.constant 7 : index
    %c0_77 = arith.constant 0 : index
    %c0_78 = arith.constant 0 : index
    %333 = vector.load %arg2[%c7, %c0_77, %c0_78] : memref<8x96x8xf32, #tpu.memory_space<vmem>>, vector<1x96x8xf32>
    %334 = vector.shape_cast %333 : vector<1x96x8xf32> to vector<96x8xf32>
    %cst_79 = arith.constant dense<0.000000e+00> : vector<96x8xf32>
    %335 = tpu.matmul %3, %309, %cst_79 {dimension_numbers = #tpu.dot_dimension_numbers<[1], [0], [0], [1], [0, 0, 1, 1], [], []>} : vector<96x32xf32>, vector<32x8xf32>, vector<96x8xf32> -> vector<96x8xf32>
    %336 = vector.extract_strided_slice %334 {offsets = [0, 0], sizes = [64, 8], strides = [1, 1]} : vector<96x8xf32> to vector<64x8xf32>
    %337 = vector.extract_strided_slice %335 {offsets = [0, 0], sizes = [64, 8], strides = [1, 1]} : vector<96x8xf32> to vector<64x8xf32>
    %338 = arith.addf %336, %337 : vector<64x8xf32>
    %339 = arith.negf %338 : vector<64x8xf32>
    %340 = math.exp %339 : vector<64x8xf32>
    %cst_80 = arith.constant 1.000000e+00 : f32
    %341 = vector.broadcast %cst_80 : f32 to vector<64x8xf32>
    %342 = arith.addf %341, %340 : vector<64x8xf32>
    %343 = arith.divf %341, %342 : vector<64x8xf32>
    %344 = vector.extract_strided_slice %343 {offsets = [0, 0], sizes = [32, 8], strides = [1, 1]} : vector<64x8xf32> to vector<32x8xf32>
    %345 = vector.extract_strided_slice %343 {offsets = [32, 0], sizes = [32, 8], strides = [1, 1]} : vector<64x8xf32> to vector<32x8xf32>
    %346 = vector.extract_strided_slice %334 {offsets = [64, 0], sizes = [32, 8], strides = [1, 1]} : vector<96x8xf32> to vector<32x8xf32>
    %347 = vector.extract_strided_slice %335 {offsets = [64, 0], sizes = [32, 8], strides = [1, 1]} : vector<96x8xf32> to vector<32x8xf32>
    %348 = vector.broadcast %4 : vector<32x1xf32> to vector<32x8xf32>
    %349 = arith.addf %347, %348 : vector<32x8xf32>
    %350 = arith.mulf %344, %349 : vector<32x8xf32>
    %351 = arith.addf %346, %350 : vector<32x8xf32>
    %352 = math.tanh %351 : vector<32x8xf32>
    %353 = arith.subf %309, %352 : vector<32x8xf32>
    %354 = arith.mulf %345, %353 : vector<32x8xf32>
    %355 = arith.addf %352, %354 : vector<32x8xf32>
    %356 = tpu.concatenate %355, %329 in 0 : vector<32x8xf32>, vector<32x8xf32> -> vector<64x8xf32>
    %cst_81 = arith.constant dense<0.000000e+00> : vector<128x8xf32>
    %357 = tpu.matmul %5, %356, %cst_81 {dimension_numbers = #tpu.dot_dimension_numbers<[1], [0], [0], [1], [0, 0, 1, 1], [], []>} : vector<128x64xf32>, vector<64x8xf32>, vector<128x8xf32> -> vector<128x8xf32>
    %358 = vector.broadcast %6 : vector<128x1xf32> to vector<128x8xf32>
    %359 = arith.addf %357, %358 : vector<128x8xf32>
    %360 = vector.extract_strided_slice %359 {offsets = [0, 0], sizes = [64, 8], strides = [1, 1]} : vector<128x8xf32> to vector<64x8xf32>
    %361 = arith.negf %360 : vector<64x8xf32>
    %362 = math.exp %361 : vector<64x8xf32>
    %cst_82 = arith.constant 1.000000e+00 : f32
    %363 = vector.broadcast %cst_82 : f32 to vector<64x8xf32>
    %364 = arith.addf %363, %362 : vector<64x8xf32>
    %365 = arith.divf %363, %364 : vector<64x8xf32>
    %366 = vector.extract_strided_slice %365 {offsets = [0, 0], sizes = [32, 8], strides = [1, 1]} : vector<64x8xf32> to vector<32x8xf32>
    %367 = vector.extract_strided_slice %365 {offsets = [32, 0], sizes = [32, 8], strides = [1, 1]} : vector<64x8xf32> to vector<32x8xf32>
    %368 = vector.extract_strided_slice %359 {offsets = [64, 0], sizes = [32, 8], strides = [1, 1]} : vector<128x8xf32> to vector<32x8xf32>
    %369 = vector.extract_strided_slice %359 {offsets = [96, 0], sizes = [32, 8], strides = [1, 1]} : vector<128x8xf32> to vector<32x8xf32>
    %370 = arith.mulf %366, %369 : vector<32x8xf32>
    %371 = arith.addf %368, %370 : vector<32x8xf32>
    %372 = math.tanh %371 : vector<32x8xf32>
    %373 = arith.subf %329, %372 : vector<32x8xf32>
    %374 = arith.mulf %367, %373 : vector<32x8xf32>
    %375 = arith.addf %372, %374 : vector<32x8xf32>
    %c7_83 = arith.constant 7 : index
    %c0_84 = arith.constant 0 : index
    %c0_85 = arith.constant 0 : index
    %376 = vector.load %arg7[%c7_83, %c0_84, %c0_85] : memref<8x32x8xf32, #tpu.memory_space<vmem>>, vector<1x32x8xf32>
    %377 = vector.shape_cast %376 : vector<1x32x8xf32> to vector<32x8xf32>
    %378 = vector.shape_cast %375 : vector<32x8xf32> to vector<1x32x8xf32>
    tpu.vector_store %arg7[%c7_83, %c0_84, %c0_85], %378 {strides = array<i32>} : memref<8x32x8xf32, #tpu.memory_space<vmem>>, vector<1x32x8xf32>,
    %c0_86 = arith.constant 0 : index
    %c0_87 = arith.constant 0 : index
    %c0_88 = arith.constant 0 : index
    %379 = vector.load %arg8[%c0_86, %c0_87, %c0_88] : memref<2x32x8xf32, #tpu.memory_space<vmem>>, vector<1x32x8xf32>
    %380 = vector.shape_cast %379 : vector<1x32x8xf32> to vector<32x8xf32>
    %381 = vector.shape_cast %355 : vector<32x8xf32> to vector<1x32x8xf32>
    tpu.vector_store %arg8[%c0_86, %c0_87, %c0_88], %381 {strides = array<i32>} : memref<2x32x8xf32, #tpu.memory_space<vmem>>, vector<1x32x8xf32>,
    %c1_89 = arith.constant 1 : index
    %c0_90 = arith.constant 0 : index
    %c0_91 = arith.constant 0 : index
    %382 = vector.load %arg8[%c1_89, %c0_90, %c0_91] : memref<2x32x8xf32, #tpu.memory_space<vmem>>, vector<1x32x8xf32>
    %383 = vector.shape_cast %382 : vector<1x32x8xf32> to vector<32x8xf32>
    %384 = vector.shape_cast %375 : vector<32x8xf32> to vector<1x32x8xf32>
    tpu.vector_store %arg8[%c1_89, %c0_90, %c0_91], %384 {strides = array<i32>} : memref<2x32x8xf32, #tpu.memory_space<vmem>>, vector<1x32x8xf32>,
    return
  }
  func.func @transform_0(%arg0: i32, %arg1: i32) -> (i32, i32, i32) {
    %c0_i32 = arith.constant 0 : i32
    %c0_i32_0 = arith.constant 0 : i32
    return %arg1, %c0_i32, %arg0 : i32, i32, i32
  }
  func.func @transform_1(%arg0: i32, %arg1: i32) -> (i32, i32) {
    %c0_i32 = arith.constant 0 : i32
    %c0_i32_0 = arith.constant 0 : i32
    %c0_i32_1 = arith.constant 0 : i32
    return %c0_i32, %c0_i32_0 : i32, i32
  }
  func.func @transform_2(%arg0: i32, %arg1: i32) -> (i32, i32) {
    %c0_i32 = arith.constant 0 : i32
    %c0_i32_0 = arith.constant 0 : i32
    %c0_i32_1 = arith.constant 0 : i32
    return %c0_i32, %c0_i32_0 : i32, i32
  }
  func.func @transform_3(%arg0: i32, %arg1: i32) -> (i32, i32) {
    %c0_i32 = arith.constant 0 : i32
    %c0_i32_0 = arith.constant 0 : i32
    %c0_i32_1 = arith.constant 0 : i32
    return %c0_i32, %c0_i32_0 : i32, i32
  }
  func.func @transform_4(%arg0: i32, %arg1: i32) -> (i32, i32) {
    %c0_i32 = arith.constant 0 : i32
    %c0_i32_0 = arith.constant 0 : i32
    %c0_i32_1 = arith.constant 0 : i32
    return %c0_i32, %c0_i32_0 : i32, i32
  }
  func.func @transform_5(%arg0: i32, %arg1: i32) -> (i32, i32, i32) {
    %c0_i32 = arith.constant 0 : i32
    %c0_i32_0 = arith.constant 0 : i32
    return %arg1, %c0_i32, %arg0 : i32, i32, i32
  }
}

</mosaic_0001>

<llo_original>
// kernel: tpu_custom_call.1
$region0: #{tpu_custom_call.1}
  #allocation0 [shape = 'u32[]', space=smem, size = 0x4, offset = 0x4, fixed_abs, tag = 'smem constant byte address 0x4 - core index']
  #allocation1 [shape = 'u32[144,128]{1,0:T(1,128)}', space=vmem, size = 0x12000, scoped, tag = 'internal scratch']
  #allocation2 [shape = 'f32[2,32,8]{2,1,0:T(8,128)}', space=vmem, size = 0x8000, scoped, tag = 'scratch operand']
  %s0 = inlined_call_operand.vmem [shape: f32[16,96,8], index: 0, kind: input, shape index: {}]
  %s1 = inlined_call_operand.vmem [shape: f32[96,32], index: 1, kind: input, shape index: {}]
  %s2 = inlined_call_operand.vmem [shape: f32[32,1], index: 2, kind: input, shape index: {}]
  %s3 = inlined_call_operand.vmem [shape: f32[128,64], index: 3, kind: input, shape index: {}]
  %s4 = inlined_call_operand.vmem [shape: f32[128,1], index: 4, kind: input, shape index: {}]
  %s5 = inlined_call_operand.vmem [shape: f32[16,32,8], index: 5, kind: output, shape index: {}]
  %s6 = sld [smem:[#allocation0]]
  $region57: #{tpu_custom_call.1} parent=0
    _
  %s8 = ssub.s32 1, %s6
  %s9 = scalar_select 0, %s8, %s6
  loop: start=0, step=1, limit=4
  $region2: #{tpu_custom_call.1} parent=0 // loop_pre_header
    _
  $region3: #{tpu_custom_call.1} parent=0 // loop_header
    %s11 = sphi 0, %s15
    %p12 = scmp.ge.s32.totalorder %s11, 4
    %s18 = sphi 0, %s30
    %s19 = sphi 0, %s26
    %s20 = sphi 0, %s18
    %s21 = sphi 0, %s19
    %s22 = sphi 0, %s20
    %s23 = sphi 0, %s21
    %s35 = sphi 0, %s37
    %s38 = sphi 0, %s35
    %s39 = sphi 0, %s38
    %s55 = sphi 0, %s39
    %s59 = sphi 0, %s59
    %s61 = sphi 0, %s59
    %s62 = sphi 0, %s61
    %s76 = sphi 0, %s62
    %s80 = sphi 0, %s80
    %s82 = sphi 0, %s80
    %s83 = sphi 0, %s82
    %s97 = sphi 0, %s83
    %s101 = sphi 0, %s101
    %s103 = sphi 0, %s101
    %s104 = sphi 0, %s103
    %s118 = sphi 0, %s104
    %s122 = sphi 0, %s122
    %s124 = sphi 0, %s122
    %s125 = sphi 0, %s124
    %s139 = sphi 0, %s125
    %s147 = sphi 0, %s149
    %s150 = sphi 0, %s147
    %s151 = sphi 0, %s150
    %s167 = sphi 0, %s151
  $region4: #{tpu_custom_call.1} parent=0 // loop_header_branch
    %14 = sbr.rel (%p12) target = $region8
  $region5: #{tpu_custom_call.1} parent=0 // loop_body
    %s16 = ssub.s32 %s11, 1
    %s17 = ssub.s32 %s11, 2
    %s24 = sadd.s32 1, %s19
    %p25 = scmp.ge.s32.totalorder %s24, 2
    %s26 = scalar_select %p25, 0, %s24
    %s27 = sadd.s32 1, %s18
    %s28 = scalar_select %p25, %s27, %s18
    %p29 = scmp.ge.s32.totalorder %s28, 1
    %s30 = scalar_select %p29, 0, %s28
    %s31 = ssub.s32 %s19, %s26
    %s32 = ssub.s32 %s18, %s30
    %s33 = sor.u32 %s31, %s32
    %p34 = scmp.eq.s32.totalorder %s33, 0
    %s36 = sadd.s32 %s35, 1
    %s37 = scalar_select %p34, %s35, %s36
    %p40 = pneg %p34
    %p41 = scmp.eq.s32.totalorder %s11, 1
    %p42 = por %p40, %p41
    %p43 = scmp.ne.s32.totalorder %s35, %s38
    %p44 = scmp.eq.s32.totalorder %s11, 0
    %p45 = por %p43, %p44
    %p46 = scmp.ne.s32.totalorder %s35, %s38
    %p47 = scmp.eq.s32.totalorder %s16, 1
    %p48 = por %p46, %p47
    %p49 = scmp.ne.s32.totalorder %s38, %s39
    %p50 = scmp.eq.s32.totalorder %s16, 0
    %p51 = por %p49, %p50
    %p52 = scmp.ne.s32.totalorder %s38, %s39
    %p53 = scmp.eq.s32.totalorder %s17, 1
    %p54 = por %p52, %p53
    %p56 = scmp.ne.s32.totalorder %s39, %s55
    %p57 = scmp.eq.s32.totalorder %s17, 0
    %p58 = por %p56, %p57
    %s60 = sadd.s32 %s59, 1
    %p63 = scmp.eq.s32.totalorder %s11, 1
    %p64 = scmp.ne.s32.totalorder %s59, %s61
    %p65 = scmp.eq.s32.totalorder %s11, 0
    %p66 = por %p64, %p65
    %p67 = scmp.ne.s32.totalorder %s59, %s61
    %p68 = scmp.eq.s32.totalorder %s16, 1
    %p69 = por %p67, %p68
    %p70 = scmp.ne.s32.totalorder %s61, %s62
    %p71 = scmp.eq.s32.totalorder %s16, 0
    %p72 = por %p70, %p71
    %p73 = scmp.ne.s32.totalorder %s61, %s62
    %p74 = scmp.eq.s32.totalorder %s17, 1
    %p75 = por %p73, %p74
    %p77 = scmp.ne.s32.totalorder %s62, %s76
    %p78 = scmp.eq.s32.totalorder %s17, 0
    %p79 = por %p77, %p78
    %s81 = sadd.s32 %s80, 1
    %p84 = scmp.eq.s32.totalorder %s11, 1
    %p85 = scmp.ne.s32.totalorder %s80, %s82
    %p86 = scmp.eq.s32.totalorder %s11, 0
    %p87 = por %p85, %p86
    %p88 = scmp.ne.s32.totalorder %s80, %s82
    %p89 = scmp.eq.s32.totalorder %s16, 1
    %p90 = por %p88, %p89
    %p91 = scmp.ne.s32.totalorder %s82, %s83
    %p92 = scmp.eq.s32.totalorder %s16, 0
    %p93 = por %p91, %p92
    %p94 = scmp.ne.s32.totalorder %s82, %s83
    %p95 = scmp.eq.s32.totalorder %s17, 1
    %p96 = por %p94, %p95
    %p98 = scmp.ne.s32.totalorder %s83, %s97
    %p99 = scmp.eq.s32.totalorder %s17, 0
    %p100 = por %p98, %p99
    %s102 = sadd.s32 %s101, 1
    %p105 = scmp.eq.s32.totalorder %s11, 1
    %p106 = scmp.ne.s32.totalorder %s101, %s103
    %p107 = scmp.eq.s32.totalorder %s11, 0
    %p108 = por %p106, %p107
    %p109 = scmp.ne.s32.totalorder %s101, %s103
    %p110 = scmp.eq.s32.totalorder %s16, 1
    %p111 = por %p109, %p110
    %p112 = scmp.ne.s32.totalorder %s103, %s104
    %p113 = scmp.eq.s32.totalorder %s16, 0
    %p114 = por %p112, %p113
    %p115 = scmp.ne.s32.totalorder %s103, %s104
    %p116 = scmp.eq.s32.totalorder %s17, 1
    %p117 = por %p115, %p116
    %p119 = scmp.ne.s32.totalorder %s104, %s118
    %p120 = scmp.eq.s32.totalorder %s17, 0
    %p121 = por %p119, %p120
    %s123 = sadd.s32 %s122, 1
    %p126 = scmp.eq.s32.totalorder %s11, 1
    %p127 = scmp.ne.s32.totalorder %s122, %s124
    %p128 = scmp.eq.s32.totalorder %s11, 0
    %p129 = por %p127, %p128
    %p130 = scmp.ne.s32.totalorder %s122, %s124
    %p131 = scmp.eq.s32.totalorder %s16, 1
    %p132 = por %p130, %p131
    %p133 = scmp.ne.s32.totalorder %s124, %s125
    %p134 = scmp.eq.s32.totalorder %s16, 0
    %p135 = por %p133, %p134
    %p136 = scmp.ne.s32.totalorder %s124, %s125
    %p137 = scmp.eq.s32.totalorder %s17, 1
    %p138 = por %p136, %p137
    %p140 = scmp.ne.s32.totalorder %s125, %s139
    %p141 = scmp.eq.s32.totalorder %s17, 0
    %p142 = por %p140, %p141
    %s143 = ssub.s32 %s19, %s26
    %s144 = ssub.s32 %s18, %s30
    %s145 = sor.u32 %s143, %s144
    %p146 = scmp.eq.s32.totalorder %s145, 0
    %s148 = sadd.s32 %s147, 1
    %s149 = scalar_select %p146, %s147, %s148
    %p152 = pneg %p146
    %p153 = scmp.eq.s32.totalorder %s11, 1
    %p154 = por %p152, %p153
    %p155 = scmp.ne.s32.totalorder %s147, %s150
    %p156 = scmp.eq.s32.totalorder %s11, 0
    %p157 = por %p155, %p156
    %p158 = scmp.ne.s32.totalorder %s147, %s150
    %p159 = scmp.eq.s32.totalorder %s16, 1
    %p160 = por %p158, %p159
    %p161 = scmp.ne.s32.totalorder %s150, %s151
    %p162 = scmp.eq.s32.totalorder %s16, 0
    %p163 = por %p161, %p162
    %p164 = scmp.ne.s32.totalorder %s150, %s151
    %p165 = scmp.eq.s32.totalorder %s17, 1
    %p166 = por %p164, %p165
    %p168 = scmp.ne.s32.totalorder %s151, %s167
    %p169 = scmp.eq.s32.totalorder %s17, 0
    %p170 = por %p168, %p169
    %p171 = scmp.le.s32.totalorder 1, %s11
    %p172 = scmp.lt.s32.totalorder %s11, 3
    %p173 = pnand %p171, %p172
    %p174 = pneg %p173
    // Predicated region
    $region9: #{tpu_custom_call.1} parent=5 // pred_check
      _
    $region10: #{tpu_custom_call.1} parent=5 // pred_check_branch
      %176 = sbr.rel (%p173) target = $region12
    $region11: #{tpu_custom_call.1} parent=5 // pred_region
      %s177 = ssub.s32 %s11, 1
      // Predicated region
      $region13: #{tpu_custom_call.1} parent=11 // pred_check
        %p178 = pneg %p72
      $region14: #{tpu_custom_call.1} parent=11 // pred_check_branch
        %180 = sbr.rel (%p178) target = $region16
      $region15: #{tpu_custom_call.1} parent=11 // pred_region
        _
      $region16: #{tpu_custom_call.1} parent=11 // pred_fallthru
        _
      // Predicated region
      $region17: #{tpu_custom_call.1} parent=11 // pred_check
        %p181 = pneg %p93
      $region18: #{tpu_custom_call.1} parent=11 // pred_check_branch
        %183 = sbr.rel (%p181) target = $region20
      $region19: #{tpu_custom_call.1} parent=11 // pred_region
        _
      $region20: #{tpu_custom_call.1} parent=11 // pred_fallthru
        _
      // Predicated region
      $region21: #{tpu_custom_call.1} parent=11 // pred_check
        %p184 = pneg %p114
      $region22: #{tpu_custom_call.1} parent=11 // pred_check_branch
        %186 = sbr.rel (%p184) target = $region24
      $region23: #{tpu_custom_call.1} parent=11 // pred_region
        _
      $region24: #{tpu_custom_call.1} parent=11 // pred_fallthru
        _
      // Predicated region
      $region25: #{tpu_custom_call.1} parent=11 // pred_check
        %p187 = pneg %p135
      $region26: #{tpu_custom_call.1} parent=11 // pred_check_branch
        %189 = sbr.rel (%p187) target = $region28
      $region27: #{tpu_custom_call.1} parent=11 // pred_region
        _
      $region28: #{tpu_custom_call.1} parent=11 // pred_fallthru
        _
    $region12: #{tpu_custom_call.1} parent=5 // pred_fallthru
      _
    %p190 = scmp.lt.s32.totalorder %s11, 2
    // Predicated region
    $region29: #{tpu_custom_call.1} parent=5 // pred_check
      %p191 = pneg %p190
    $region30: #{tpu_custom_call.1} parent=5 // pred_check_branch
      %193 = sbr.rel (%p191) target = $region32
    $region31: #{tpu_custom_call.1} parent=5 // pred_region
      // Predicated region
      $region33: #{tpu_custom_call.1} parent=31 // pred_check
        %p194 = pneg %p45
      $region34: #{tpu_custom_call.1} parent=31 // pred_check_branch
        %196 = sbr.rel (%p194) target = $region36
      $region35: #{tpu_custom_call.1} parent=31 // pred_region
        %s197 = smul.u32 8, %s19
        %p198 = scmp.lt.s32.totalorder %s197, 15
        %s199 = scalar_select %p198, %s197, 15
        %p200 = scmp.lt.s32.totalorder %s18, 0
        %s201 = scalar_select %p200, %s18, 0
        %s202 = smul.addr %s199, 12
        %s203 = sadd.s32 %s201, %s202
        %s204 = smul.addr %s203, 8
        %s205 = scalar_lea.vmem %s0, %s204
        %s206 = smul.u32 8, %s19
      $region36: #{tpu_custom_call.1} parent=31 // pred_fallthru
        _
    $region32: #{tpu_custom_call.1} parent=5 // pred_fallthru
      _
    %p207 = scmp.le.s32.totalorder 1, %s11
    %p208 = scmp.lt.s32.totalorder %s11, 3
    %p209 = pnand %p207, %p208
    %p210 = pneg %p209
    // Predicated region
    $region37: #{tpu_custom_call.1} parent=5 // pred_check
      _
    $region38: #{tpu_custom_call.1} parent=5 // pred_check_branch
      %212 = sbr.rel (%p209) target = $region40
    $region39: #{tpu_custom_call.1} parent=5 // pred_region
      %s213 = ssub.s32 %s11, 1
      %s214 = smul.u32 8, %s21
      %p215 = scmp.lt.s32.totalorder %s214, 15
      %s216 = scalar_select %p215, %s214, 15
      %p217 = scmp.lt.s32.totalorder %s20, 0
      %s218 = scalar_select %p217, %s20, 0
      %s219 = smul.addr %s216, 12
      %s220 = sadd.s32 %s218, %s219
      %s221 = smul.addr %s220, 8
      %s222 = scalar_lea.vmem %s0, %s221
      %p223 = pneg %p51
      %p224 = pneg %p48
      %p225 = pneg %p72
      %p226 = pneg %p69
      %p227 = pneg %p93
      %p228 = pneg %p90
      %p229 = pneg %p114
      %p230 = pneg %p111
      %p231 = pneg %p135
      %p232 = pneg %p132
      %p233 = pneg %p163
      %p234 = pneg %p160
      %s235 = smul.u32 8, %s21
      %p236 = scmp.lt.s32.totalorder %s235, 15
      %s237 = scalar_select %p236, %s235, 15
      %p238 = scmp.lt.s32.totalorder %s20, 0
      %s239 = scalar_select %p238, %s20, 0
      %s240 = smul.addr %s237, 4
      %s241 = sadd.s32 %s239, %s240
      %s242 = smul.addr %s241, 8
      %s243 = scalar_lea.vmem %s5, %s242
      %s244 = smul.u32 8, %s21
      %p245 = scmp.lt.s32.totalorder %s244, 15
      %s246 = scalar_select %p245, %s244, 15
      %p247 = scmp.lt.s32.totalorder %s20, 0
      %s248 = scalar_select %p247, %s20, 0
      %s249 = smul.addr %s246, 12
      %s250 = sadd.s32 %s248, %s249
      %s251 = smul.addr %s250, 8
      %s252 = scalar_lea.vmem %s0, %s251
      %s253 = smul.u32 8, %s21
      %s254 = smul.u32 8, %s21
      %p255 = scmp.lt.s32.totalorder %s254, 15
      %s256 = scalar_select %p255, %s254, 15
      %p257 = scmp.lt.s32.totalorder %s20, 0
      %s258 = scalar_select %p257, %s20, 0
      %s259 = smul.addr %s256, 4
      %s260 = sadd.s32 %s258, %s259
      %s261 = smul.addr %s260, 8
      %s262 = scalar_lea.vmem %s5, %s261
      %s263 = smul.u32 8, %s21
      %p264 = scmp.eq.s32.totalorder %s21, 0
      // Predicated region
      $region41: #{tpu_custom_call.1} parent=39 // pred_check
        %p265 = pneg %p264
      $region42: #{tpu_custom_call.1} parent=39 // pred_check_branch
        %267 = sbr.rel (%p265) target = $region44
      $region43: #{tpu_custom_call.1} parent=39 // pred_region
        %vm268 = vcmask 64512
        %269 = vst.msk [vmem:[#allocation2] sm:$0xff] %vm268, 0.0
        %270 = vst.msk [vmem:[#allocation2 + $0x8] sm:$0xff] %vm268, 0.0
        %271 = vst.msk [vmem:[#allocation2 + $0x10] sm:$0xff] %vm268, 0.0
        %272 = vst.msk [vmem:[#allocation2 + $0x18] sm:$0xff] %vm268, 0.0
        %273 = vst.msk [vmem:[#allocation2 + $0x20] sm:$0xff] %vm268, 0.0
        %274 = vst.msk [vmem:[#allocation2 + $0x28] sm:$0xff] %vm268, 0.0
        %275 = vst.msk [vmem:[#allocation2 + $0x30] sm:$0xff] %vm268, 0.0
        %276 = vst.msk [vmem:[#allocation2 + $0x38] sm:$0xff] %vm268, 0.0
      $region44: #{tpu_custom_call.1} parent=39 // pred_fallthru
        _
      %v277 = vld [vmem:[%s1] sm:$0xff]
      %v278 = vld [vmem:[%s1 + $0x8] sm:$0xff]
      %v279 = vld [vmem:[%s1 + $0x10] sm:$0xff]
      %v280 = vld [vmem:[%s1 + $0x18] sm:$0xff]
      %v281 = vld [vmem:[%s1 + $0x20] sm:$0xff]
      %v282 = vld [vmem:[%s1 + $0x28] sm:$0xff]
      %v283 = vld [vmem:[%s1 + $0x30] sm:$0xff]
      %v284 = vld [vmem:[%s1 + $0x38] sm:$0xff]
      %v285 = vld [vmem:[%s1 + $0x40] sm:$0xff]
      %v286 = vld [vmem:[%s1 + $0x48] sm:$0xff]
      %v287 = vld [vmem:[%s1 + $0x50] sm:$0xff]
      %v288 = vld [vmem:[%s1 + $0x58] sm:$0xff]
      %v289 = vld [vmem:[%s2] sm:$0xff]
      %v290 = vld [vmem:[%s2 + $0x8] sm:$0xff]
      %v291 = vld [vmem:[%s2 + $0x10] sm:$0xff]
      %v292 = vld [vmem:[%s2 + $0x18] sm:$0xff]
      %v293 = vld [vmem:[%s3] sm:$0xff]
      %v294 = vld [vmem:[%s3 + $0x8] sm:$0xff]
      %v295 = vld [vmem:[%s3 + $0x10] sm:$0xff]
      %v296 = vld [vmem:[%s3 + $0x18] sm:$0xff]
      %v297 = vld [vmem:[%s3 + $0x20] sm:$0xff]
      %v298 = vld [vmem:[%s3 + $0x28] sm:$0xff]
      %v299 = vld [vmem:[%s3 + $0x30] sm:$0xff]
      %v300 = vld [vmem:[%s3 + $0x38] sm:$0xff]
      %v301 = vld [vmem:[%s3 + $0x40] sm:$0xff]
      %v302 = vld [vmem:[%s3 + $0x48] sm:$0xff]
      %v303 = vld [vmem:[%s3 + $0x50] sm:$0xff]
      %v304 = vld [vmem:[%s3 + $0x58] sm:$0xff]
      %v305 = vld [vmem:[%s3 + $0x60] sm:$0xff]
      %v306 = vld [vmem:[%s3 + $0x68] sm:$0xff]
      %v307 = vld [vmem:[%s3 + $0x70] sm:$0xff]
      %v308 = vld [vmem:[%s3 + $0x78] sm:$0xff]
      %v309 = vld [vmem:[%s4] sm:$0xff]
      %v310 = vld [vmem:[%s4 + $0x8] sm:$0xff]
      %v311 = vld [vmem:[%s4 + $0x10] sm:$0xff]
      %v312 = vld [vmem:[%s4 + $0x18] sm:$0xff]
      %v313 = vld [vmem:[%s4 + $0x20] sm:$0xff]
      %v314 = vld [vmem:[%s4 + $0x28] sm:$0xff]
      %v315 = vld [vmem:[%s4 + $0x30] sm:$0xff]
      %v316 = vld [vmem:[%s4 + $0x38] sm:$0xff]
      %v317 = vld [vmem:[%s4 + $0x40] sm:$0xff]
      %v318 = vld [vmem:[%s4 + $0x48] sm:$0xff]
      %v319 = vld [vmem:[%s4 + $0x50] sm:$0xff]
      %v320 = vld [vmem:[%s4 + $0x58] sm:$0xff]
      %v321 = vld [vmem:[%s4 + $0x60] sm:$0xff]
      %v322 = vld [vmem:[%s4 + $0x68] sm:$0xff]
      %v323 = vld [vmem:[%s4 + $0x70] sm:$0xff]
      %v324 = vld [vmem:[%s4 + $0x78] sm:$0xff]
      %v325 = vld [vmem:[#allocation2] sm:$0xff]
      %v326 = vld [vmem:[#allocation2 + $0x8] sm:$0xff]
      %v327 = vld [vmem:[#allocation2 + $0x10] sm:$0xff]
      %v328 = vld [vmem:[#allocation2 + $0x18] sm:$0xff]
      %s329 = scalar_lea.vmem [#allocation2], 32
      %v330 = vld [vmem:[%s329] sm:$0xff]
      %v331 = vld [vmem:[%s329 + $0x8] sm:$0xff]
      %v332 = vld [vmem:[%s329 + $0x10] sm:$0xff]
      %v333 = vld [vmem:[%s329 + $0x18] sm:$0xff]
      %v334 = vld [vmem:[%s252] sm:$0xff]
      %v335 = vld [vmem:[%s252 + $0x8] sm:$0xff]
      %v336 = vld [vmem:[%s252 + $0x10] sm:$0xff]
      %v337 = vld [vmem:[%s252 + $0x18] sm:$0xff]
      %v338 = vld [vmem:[%s252 + $0x20] sm:$0xff]
      %v339 = vld [vmem:[%s252 + $0x28] sm:$0xff]
      %v340 = vld [vmem:[%s252 + $0x30] sm:$0xff]
      %v341 = vld [vmem:[%s252 + $0x38] sm:$0xff]
      %v342 = vld [vmem:[%s252 + $0x40] sm:$0xff]
      %v343 = vld [vmem:[%s252 + $0x48] sm:$0xff]
      %v344 = vld [vmem:[%s252 + $0x50] sm:$0xff]
      %v345 = vld [vmem:[%s252 + $0x58] sm:$0xff]
      %vm346 = vcmask 261120
      %v348 = vsel %vm346, %v277, 0
      %v351 = vsel %vm346, %v278, 0
      %v354 = vsel %vm346, %v279, 0
      %v357 = vsel %vm346, %v280, 0
      %v360 = vsel %vm346, %v281, 0
      %v363 = vsel %vm346, %v282, 0
      %v366 = vsel %vm346, %v283, 0
      %v369 = vsel %vm346, %v284, 0
      %v372 = vsel %vm346, %v285, 0
      %v375 = vsel %vm346, %v286, 0
      %v378 = vsel %vm346, %v287, 0
      %v381 = vsel %vm346, %v288, 0
      %383 = vmatprep.subr.mxu0 0.0
      %384 = vmatpush1.msra.mxu0 0.0
      %385 = vmatprep.subr.mxu0 0.0
      %386 = vmatpush1.msra.mxu0 0.0
      %387 = vmatprep.subr.mxu0 0.0
      %388 = vmatpush1.msra.mxu0 0.0
      %389 = vmatprep.subr.mxu0 0.0
      %390 = vmatpush1.msra.mxu0 0.0
      %391 = vmatprep.subr.mxu0 0.0
      %392 = vmatpush1.msra.mxu0 0.0
      %393 = vmatprep.subr.mxu0 0.0
      %394 = vmatpush1.msra.mxu0 0.0
      %395 = vmatprep.subr.mxu0 0.0
      %396 = vmatpush1.msra.mxu0 0.0
      %397 = vmatprep.subr.mxu0 0.0
      %398 = vmatpush1.msra.mxu0 0.0
      %399 = vmatprep.subr.mxu0 0.0
      %400 = vmatpush1.msra.mxu0 0.0
      %401 = vmatprep.subr.mxu0 0.0
      %402 = vmatpush1.msra.mxu0 0.0
      %403 = vmatprep.subr.mxu0 0.0
      %404 = vmatpush1.msra.mxu0 0.0
      %405 = vmatprep.subr.mxu0 0.0
      %406 = vmatpush1.msra.mxu0 0.0
      %407 = vmatprep.subr.mxu0 0.0
      %408 = vmatpush1.msra.mxu0 %v328
      %409 = vmatprep.subr.mxu0 0.0
      %410 = vmatpush1.msra.mxu0 %v327
      %411 = vmatprep.subr.mxu0 0.0
      %412 = vmatpush1.msra.mxu0 %v326
      %413 = vmatprep.subr.mxu0 0.0
      %414 = vmatpush1.msra.mxu0 %v325
      %415 = vmatprep.subr.mxu0 0.0
      %416 = vmatpush2.msra.mxu0 0.0
      %417 = vmatprep.subr.mxu0 0.0
      %418 = vmatpush2.msra.mxu0 0.0
      %419 = vmatprep.subr.mxu0 0.0
      %420 = vmatpush2.msra.mxu0 0.0
      %421 = vmatprep.subr.mxu0 0.0
      %422 = vmatpush2.msra.mxu0 0.0
      %423 = vmatprep.subr.mxu0 0.0
      %424 = vmatpush2.msra.mxu0 0.0
      %425 = vmatprep.subr.mxu0 0.0
      %426 = vmatpush2.msra.mxu0 0.0
      %427 = vmatprep.subr.mxu0 0.0
      %428 = vmatpush2.msra.mxu0 0.0
      %429 = vmatprep.subr.mxu0 0.0
      %430 = vmatpush2.msra.mxu0 0.0
      %431 = vmatprep.subr.mxu0 0.0
      %432 = vmatpush2.msra.mxu0 0.0
      %433 = vmatprep.subr.mxu0 0.0
      %434 = vmatpush2.msra.mxu0 0.0
      %435 = vmatprep.subr.mxu0 0.0
      %436 = vmatpush2.msra.mxu0 0.0
      %437 = vmatprep.subr.mxu0 0.0
      %438 = vmatpush2.msra.mxu0 0.0
      %439 = vmatprep.subr.mxu0 0.0
      %440 = vmatpush2.msra.mxu0 0.0
      %441 = vmatprep.subr.mxu0 0.0
      %442 = vmatpush2.msra.mxu0 0.0
      %443 = vmatprep.subr.mxu0 0.0
      %444 = vmatpush2.msra.mxu0 0.0
      %445 = vmatprep.subr.mxu0 0.0
      %446 = vmatpush2.msra.mxu0 0.0
      %447 = vmatprep.mubr.f32.mxu0 0.0
      %448 = vmatmul.mubr.f32.gmra.mxu0 %v348
      %v449 = vpop.f32.mrf.mxu0
      %v450 = vadd.f32 0.0, %v449
      %v451 = vpop.f32.mrf.mxu0
      %452 = vmatprep.mubr.f32.mxu0 0.0
      %453 = vmatmul.mubr.f32.gmra.mxu0 %v351
      %v454 = vpop.f32.mrf.mxu0
      %v455 = vadd.f32 0.0, %v454
      %v456 = vpop.f32.mrf.mxu0
      %457 = vmatprep.mubr.f32.mxu0 0.0
      %458 = vmatmul.mubr.f32.gmra.mxu0 %v354
      %v459 = vpop.f32.mrf.mxu0
      %v460 = vadd.f32 0.0, %v459
      %v461 = vpop.f32.mrf.mxu0
      %462 = vmatprep.mubr.f32.mxu0 0.0
      %463 = vmatmul.mubr.f32.gmra.mxu0 %v357
      %v464 = vpop.f32.mrf.mxu0
      %v465 = vadd.f32 0.0, %v464
      %v466 = vpop.f32.mrf.mxu0
      %467 = vmatprep.mubr.f32.mxu0 0.0
      %468 = vmatmul.mubr.f32.gmra.mxu0 %v360
      %v469 = vpop.f32.mrf.mxu0
      %v470 = vadd.f32 0.0, %v469
      %v471 = vpop.f32.mrf.mxu0
      %472 = vmatprep.mubr.f32.mxu0 0.0
      %473 = vmatmul.mubr.f32.gmra.mxu0 %v363
      %v474 = vpop.f32.mrf.mxu0
      %v475 = vadd.f32 0.0, %v474
      %v476 = vpop.f32.mrf.mxu0
      %477 = vmatprep.mubr.f32.mxu0 0.0
      %478 = vmatmul.mubr.f32.gmra.mxu0 %v366
      %v479 = vpop.f32.mrf.mxu0
      %v480 = vadd.f32 0.0, %v479
      %v481 = vpop.f32.mrf.mxu0
      %482 = vmatprep.mubr.f32.mxu0 0.0
      %483 = vmatmul.mubr.f32.gmra.mxu0 %v369
      %v484 = vpop.f32.mrf.mxu0
      %v485 = vadd.f32 0.0, %v484
      %v486 = vpop.f32.mrf.mxu0
      %487 = vmatprep.mubr.f32.mxu0 0.0
      %488 = vmatmul.mubr.f32.gmra.mxu0 %v372
      %v489 = vpop.f32.mrf.mxu0
      %v490 = vadd.f32 0.0, %v489
      %v491 = vpop.f32.mrf.mxu0
      %492 = vmatprep.mubr.f32.mxu0 0.0
      %493 = vmatmul.mubr.f32.gmra.mxu0 %v375
      %v494 = vpop.f32.mrf.mxu0
      %v495 = vadd.f32 0.0, %v494
      %v496 = vpop.f32.mrf.mxu0
      %497 = vmatprep.mubr.f32.mxu0 0.0
      %498 = vmatmul.mubr.f32.gmra.mxu0 %v378
      %v499 = vpop.f32.mrf.mxu0
      %v500 = vadd.f32 0.0, %v499
      %v501 = vpop.f32.mrf.mxu0
      %502 = vmatprep.mubr.f32.mxu0 0.0
      %503 = vmatmul.mubr.f32.gmra.mxu0 %v381
      %v504 = vpop.f32.mrf.mxu0
      %v505 = vadd.f32 0.0, %v504
      %v506 = vpop.f32.mrf.mxu0
      %507 = vdwg.mxu0
      %v508 = vadd.f32 %v334, %v450
      %v509 = vadd.f32 %v335, %v455
      %v510 = vadd.f32 %v336, %v460
      %v511 = vadd.f32 %v337, %v465
      %v512 = vadd.f32 %v338, %v470
      %v513 = vadd.f32 %v339, %v475
      %v514 = vadd.f32 %v340, %v480
      %v515 = vadd.f32 %v341, %v485
      %v516 = vxor.u32 %v508, 2147483648
      %v517 = vxor.u32 %v509, 2147483648
      %v518 = vxor.u32 %v510, 2147483648
      %v519 = vxor.u32 %v511, 2147483648
      %v520 = vxor.u32 %v512, 2147483648
      %v521 = vxor.u32 %v513, 2147483648
      %v522 = vxor.u32 %v514, 2147483648
      %v523 = vxor.u32 %v515, 2147483648
      %v524 = vmul.f32 %v516, 1.442695
      %v525 = vpow.pop %v524
      %v526 = vmul.f32 %v517, 1.442695
      %v527 = vpow.pop %v526
      %v528 = vmul.f32 %v518, 1.442695
      %v529 = vpow.pop %v528
      %v530 = vmul.f32 %v519, 1.442695
      %v531 = vpow.pop %v530
      %v532 = vmul.f32 %v520, 1.442695
      %v533 = vpow.pop %v532
      %v534 = vmul.f32 %v521, 1.442695
      %v535 = vpow.pop %v534
      %v536 = vmul.f32 %v522, 1.442695
      %v537 = vpow.pop %v536
      %v538 = vmul.f32 %v523, 1.442695
      %v539 = vpow.pop %v538
      %v540 = vadd.f32 %v525, 1.0
      %v541 = vadd.f32 %v527, 1.0
      %v542 = vadd.f32 %v529, 1.0
      %v543 = vadd.f32 %v531, 1.0
      %v544 = vadd.f32 %v533, 1.0
      %v545 = vadd.f32 %v535, 1.0
      %v546 = vadd.f32 %v537, 1.0
      %v547 = vadd.f32 %v539, 1.0
      %v548 = vrcp.pop %v540
      %v549 = vmul.f32 1.0, %v548
      %v550 = vrcp.pop %v541
      %v551 = vmul.f32 1.0, %v550
      %v552 = vrcp.pop %v542
      %v553 = vmul.f32 1.0, %v552
      %v554 = vrcp.pop %v543
      %v555 = vmul.f32 1.0, %v554
      %v556 = vrcp.pop %v544
      %v557 = vmul.f32 1.0, %v556
      %v558 = vrcp.pop %v545
      %v559 = vmul.f32 1.0, %v558
      %v560 = vrcp.pop %v546
      %v561 = vmul.f32 1.0, %v560
      %v562 = vrcp.pop %v547
      %v563 = vmul.f32 1.0, %v562
      %565 = vset.pattern.permute.xlu0 0
      %566 = vperm.xlu0 %565, %v289
      %v567 = vpop.permute.xlu0 %566
      %570 = vset.pattern.permute.xlu0 0
      %571 = vperm.xlu0 %570, %v290
      %v572 = vpop.permute.xlu0 %571
      %575 = vset.pattern.permute.xlu0 0
      %576 = vperm.xlu0 %575, %v291
      %v577 = vpop.permute.xlu0 %576
      %580 = vset.pattern.permute.xlu0 0
      %581 = vperm.xlu0 %580, %v292
      %v582 = vpop.permute.xlu0 %581
      %v584 = vadd.f32 %v490, %v567
      %v585 = vadd.f32 %v495, %v572
      %v586 = vadd.f32 %v500, %v577
      %v587 = vadd.f32 %v505, %v582
      %v588 = vmul.f32 %v549, %v584
      %v589 = vmul.f32 %v551, %v585
      %v590 = vmul.f32 %v553, %v586
      %v591 = vmul.f32 %v555, %v587
      %v592 = vadd.f32 %v342, %v588
      %v593 = vadd.f32 %v343, %v589
      %v594 = vadd.f32 %v344, %v590
      %v595 = vadd.f32 %v345, %v591
      %v596 = vtanh.pop %v592
      %v597 = vtanh.pop %v593
      %v598 = vtanh.pop %v594
      %v599 = vtanh.pop %v595
      %v600 = vsub.f32 %v325, %v596
      %v601 = vsub.f32 %v326, %v597
      %v602 = vsub.f32 %v327, %v598
      %v603 = vsub.f32 %v328, %v599
      %v604 = vmul.f32 %v557, %v600
      %v605 = vmul.f32 %v559, %v601
      %v606 = vmul.f32 %v561, %v602
      %v607 = vmul.f32 %v563, %v603
      %v608 = vadd.f32 %v596, %v604
      %v609 = vadd.f32 %v597, %v605
      %v610 = vadd.f32 %v598, %v606
      %v611 = vadd.f32 %v599, %v607
      %613 = vset.pattern.permute.xlu0 0
      %614 = vperm.xlu0 %613, %v309
      %v615 = vpop.permute.xlu0 %614
      %618 = vset.pattern.permute.xlu0 0
      %619 = vperm.xlu0 %618, %v310
      %v620 = vpop.permute.xlu0 %619
      %623 = vset.pattern.permute.xlu0 0
      %624 = vperm.xlu0 %623, %v311
      %v625 = vpop.permute.xlu0 %624
      %628 = vset.pattern.permute.xlu0 0
      %629 = vperm.xlu0 %628, %v312
      %v630 = vpop.permute.xlu0 %629
      %633 = vset.pattern.permute.xlu0 0
      %634 = vperm.xlu0 %633, %v313
      %v635 = vpop.permute.xlu0 %634
      %638 = vset.pattern.permute.xlu0 0
      %639 = vperm.xlu0 %638, %v314
      %v640 = vpop.permute.xlu0 %639
      %643 = vset.pattern.permute.xlu0 0
      %644 = vperm.xlu0 %643, %v315
      %v645 = vpop.permute.xlu0 %644
      %648 = vset.pattern.permute.xlu0 0
      %649 = vperm.xlu0 %648, %v316
      %v650 = vpop.permute.xlu0 %649
      %653 = vset.pattern.permute.xlu0 0
      %654 = vperm.xlu0 %653, %v317
      %v655 = vpop.permute.xlu0 %654
      %658 = vset.pattern.permute.xlu0 0
      %659 = vperm.xlu0 %658, %v318
      %v660 = vpop.permute.xlu0 %659
      %663 = vset.pattern.permute.xlu0 0
      %664 = vperm.xlu0 %663, %v319
      %v665 = vpop.permute.xlu0 %664
      %668 = vset.pattern.permute.xlu0 0
      %669 = vperm.xlu0 %668, %v320
      %v670 = vpop.permute.xlu0 %669
      %673 = vset.pattern.permute.xlu0 0
      %674 = vperm.xlu0 %673, %v321
      %v675 = vpop.permute.xlu0 %674
      %678 = vset.pattern.permute.xlu0 0
      %679 = vperm.xlu0 %678, %v322
      %v680 = vpop.permute.xlu0 %679
      %683 = vset.pattern.permute.xlu0 0
      %684 = vperm.xlu0 %683, %v323
      %v685 = vpop.permute.xlu0 %684
      %688 = vset.pattern.permute.xlu0 0
      %689 = vperm.xlu0 %688, %v324
      %v690 = vpop.permute.xlu0 %689
      %vm692 = vcmask 523264
      %v694 = vsel %vm692, %v293, 0
      %v697 = vsel %vm692, %v294, 0
      %v700 = vsel %vm692, %v295, 0
      %v703 = vsel %vm692, %v296, 0
      %v706 = vsel %vm692, %v297, 0
      %v709 = vsel %vm692, %v298, 0
      %v712 = vsel %vm692, %v299, 0
      %v715 = vsel %vm692, %v300, 0
      %v718 = vsel %vm692, %v301, 0
      %v721 = vsel %vm692, %v302, 0
      %v724 = vsel %vm692, %v303, 0
      %v727 = vsel %vm692, %v304, 0
      %v730 = vsel %vm692, %v305, 0
      %v733 = vsel %vm692, %v306, 0
      %v736 = vsel %vm692, %v307, 0
      %v739 = vsel %vm692, %v308, 0
      %741 = vmatprep.subr.mxu0 0.0
      %742 = vmatpush1.msra.mxu0 0.0
      %743 = vmatprep.subr.mxu0 0.0
      %744 = vmatpush1.msra.mxu0 0.0
      %745 = vmatprep.subr.mxu0 0.0
      %746 = vmatpush1.msra.mxu0 0.0
      %747 = vmatprep.subr.mxu0 0.0
      %748 = vmatpush1.msra.mxu0 0.0
      %749 = vmatprep.subr.mxu0 0.0
      %750 = vmatpush1.msra.mxu0 0.0
      %751 = vmatprep.subr.mxu0 0.0
      %752 = vmatpush1.msra.mxu0 0.0
      %753 = vmatprep.subr.mxu0 0.0
      %754 = vmatpush1.msra.mxu0 0.0
      %755 = vmatprep.subr.mxu0 0.0
      %756 = vmatpush1.msra.mxu0 0.0
      %757 = vmatprep.subr.mxu0 0.0
      %758 = vmatpush1.msra.mxu0 %v333
      %759 = vmatprep.subr.mxu0 0.0
      %760 = vmatpush1.msra.mxu0 %v332
      %761 = vmatprep.subr.mxu0 0.0
      %762 = vmatpush1.msra.mxu0 %v331
      %763 = vmatprep.subr.mxu0 0.0
      %764 = vmatpush1.msra.mxu0 %v330
      %765 = vmatprep.subr.mxu0 0.0
      %766 = vmatpush1.msra.mxu0 %v611
      %767 = vmatprep.subr.mxu0 0.0
      %768 = vmatpush1.msra.mxu0 %v610
      %769 = vmatprep.subr.mxu0 0.0
      %770 = vmatpush1.msra.mxu0 %v609
      %771 = vmatprep.subr.mxu0 0.0
      %772 = vmatpush1.msra.mxu0 %v608
      %773 = vmatprep.subr.mxu0 0.0
      %774 = vmatpush2.msra.mxu0 0.0
      %775 = vmatprep.subr.mxu0 0.0
      %776 = vmatpush2.msra.mxu0 0.0
      %777 = vmatprep.subr.mxu0 0.0
      %778 = vmatpush2.msra.mxu0 0.0
      %779 = vmatprep.subr.mxu0 0.0
      %780 = vmatpush2.msra.mxu0 0.0
      %781 = vmatprep.subr.mxu0 0.0
      %782 = vmatpush2.msra.mxu0 0.0
      %783 = vmatprep.subr.mxu0 0.0
      %784 = vmatpush2.msra.mxu0 0.0
      %785 = vmatprep.subr.mxu0 0.0
      %786 = vmatpush2.msra.mxu0 0.0
      %787 = vmatprep.subr.mxu0 0.0
      %788 = vmatpush2.msra.mxu0 0.0
      %789 = vmatprep.subr.mxu0 0.0
      %790 = vmatpush2.msra.mxu0 0.0
      %791 = vmatprep.subr.mxu0 0.0
      %792 = vmatpush2.msra.mxu0 0.0
      %793 = vmatprep.subr.mxu0 0.0
      %794 = vmatpush2.msra.mxu0 0.0
      %795 = vmatprep.subr.mxu0 0.0
      %796 = vmatpush2.msra.mxu0 0.0
      %797 = vmatprep.subr.mxu0 0.0
      %798 = vmatpush2.msra.mxu0 0.0
      %799 = vmatprep.subr.mxu0 0.0
      %800 = vmatpush2.msra.mxu0 0.0
      %801 = vmatprep.subr.mxu0 0.0
      %802 = vmatpush2.msra.mxu0 0.0
      %803 = vmatprep.subr.mxu0 0.0
      %804 = vmatpush2.msra.mxu0 0.0
      %805 = vmatprep.mubr.f32.mxu0 0.0
      %806 = vmatmul.mubr.f32.gmra.mxu0 %v694
      %v807 = vpop.f32.mrf.mxu0
      %v808 = vadd.f32 %v615, %v807
      %v809 = vpop.f32.mrf.mxu0
      %810 = vmatprep.mubr.f32.mxu0 0.0
      %811 = vmatmul.mubr.f32.gmra.mxu0 %v697
      %v812 = vpop.f32.mrf.mxu0
      %v813 = vadd.f32 %v620, %v812
      %v814 = vpop.f32.mrf.mxu0
      %815 = vmatprep.mubr.f32.mxu0 0.0
      %816 = vmatmul.mubr.f32.gmra.mxu0 %v700
      %v817 = vpop.f32.mrf.mxu0
      %v818 = vadd.f32 %v625, %v817
      %v819 = vpop.f32.mrf.mxu0
      %820 = vmatprep.mubr.f32.mxu0 0.0
      %821 = vmatmul.mubr.f32.gmra.mxu0 %v703
      %v822 = vpop.f32.mrf.mxu0
      %v823 = vadd.f32 %v630, %v822
      %v824 = vpop.f32.mrf.mxu0
      %825 = vmatprep.mubr.f32.mxu0 0.0
      %826 = vmatmul.mubr.f32.gmra.mxu0 %v706
      %v827 = vpop.f32.mrf.mxu0
      %v828 = vadd.f32 %v635, %v827
      %v829 = vpop.f32.mrf.mxu0
      %830 = vmatprep.mubr.f32.mxu0 0.0
      %831 = vmatmul.mubr.f32.gmra.mxu0 %v709
      %v832 = vpop.f32.mrf.mxu0
      %v833 = vadd.f32 %v640, %v832
      %v834 = vpop.f32.mrf.mxu0
      %835 = vmatprep.mubr.f32.mxu0 0.0
      %836 = vmatmul.mubr.f32.gmra.mxu0 %v712
      %v837 = vpop.f32.mrf.mxu0
      %v838 = vadd.f32 %v645, %v837
      %v839 = vpop.f32.mrf.mxu0
      %840 = vmatprep.mubr.f32.mxu0 0.0
      %841 = vmatmul.mubr.f32.gmra.mxu0 %v715
      %v842 = vpop.f32.mrf.mxu0
      %v843 = vadd.f32 %v650, %v842
      %v844 = vpop.f32.mrf.mxu0
      %845 = vmatprep.mubr.f32.mxu0 0.0
      %846 = vmatmul.mubr.f32.gmra.mxu0 %v718
      %v847 = vpop.f32.mrf.mxu0
      %v848 = vadd.f32 %v655, %v847
      %v849 = vpop.f32.mrf.mxu0
      %850 = vmatprep.mubr.f32.mxu0 0.0
      %851 = vmatmul.mubr.f32.gmra.mxu0 %v721
      %v852 = vpop.f32.mrf.mxu0
      %v853 = vadd.f32 %v660, %v852
      %v854 = vpop.f32.mrf.mxu0
      %855 = vmatprep.mubr.f32.mxu0 0.0
      %856 = vmatmul.mubr.f32.gmra.mxu0 %v724
      %v857 = vpop.f32.mrf.mxu0
      %v858 = vadd.f32 %v665, %v857
      %v859 = vpop.f32.mrf.mxu0
      %860 = vmatprep.mubr.f32.mxu0 0.0
      %861 = vmatmul.mubr.f32.gmra.mxu0 %v727
      %v862 = vpop.f32.mrf.mxu0
      %v863 = vadd.f32 %v670, %v862
      %v864 = vpop.f32.mrf.mxu0
      %865 = vmatprep.mubr.f32.mxu0 0.0
      %866 = vmatmul.mubr.f32.gmra.mxu0 %v730
      %v867 = vpop.f32.mrf.mxu0
      %v868 = vadd.f32 %v675, %v867
      %v869 = vpop.f32.mrf.mxu0
      %870 = vmatprep.mubr.f32.mxu0 0.0
      %871 = vmatmul.mubr.f32.gmra.mxu0 %v733
      %v872 = vpop.f32.mrf.mxu0
      %v873 = vadd.f32 %v680, %v872
      %v874 = vpop.f32.mrf.mxu0
      %875 = vmatprep.mubr.f32.mxu0 0.0
      %876 = vmatmul.mubr.f32.gmra.mxu0 %v736
      %v877 = vpop.f32.mrf.mxu0
      %v878 = vadd.f32 %v685, %v877
      %v879 = vpop.f32.mrf.mxu0
      %880 = vmatprep.mubr.f32.mxu0 0.0
      %881 = vmatmul.mubr.f32.gmra.mxu0 %v739
      %v882 = vpop.f32.mrf.mxu0
      %v883 = vadd.f32 %v690, %v882
      %v884 = vpop.f32.mrf.mxu0
      %885 = vdwg.mxu0
      %v886 = vxor.u32 %v808, 2147483648
      %v887 = vxor.u32 %v813, 2147483648
      %v888 = vxor.u32 %v818, 2147483648
      %v889 = vxor.u32 %v823, 2147483648
      %v890 = vxor.u32 %v828, 2147483648
      %v891 = vxor.u32 %v833, 2147483648
      %v892 = vxor.u32 %v838, 2147483648
      %v893 = vxor.u32 %v843, 2147483648
      %v894 = vmul.f32 %v886, 1.442695
      %v895 = vpow.pop %v894
      %v896 = vmul.f32 %v887, 1.442695
      %v897 = vpow.pop %v896
      %v898 = vmul.f32 %v888, 1.442695
      %v899 = vpow.pop %v898
      %v900 = vmul.f32 %v889, 1.442695
      %v901 = vpow.pop %v900
      %v902 = vmul.f32 %v890, 1.442695
      %v903 = vpow.pop %v902
      %v904 = vmul.f32 %v891, 1.442695
      %v905 = vpow.pop %v904
      %v906 = vmul.f32 %v892, 1.442695
      %v907 = vpow.pop %v906
      %v908 = vmul.f32 %v893, 1.442695
      %v909 = vpow.pop %v908
      %v910 = vadd.f32 %v895, 1.0
      %v911 = vadd.f32 %v897, 1.0
      %v912 = vadd.f32 %v899, 1.0
      %v913 = vadd.f32 %v901, 1.0
      %v914 = vadd.f32 %v903, 1.0
      %v915 = vadd.f32 %v905, 1.0
      %v916 = vadd.f32 %v907, 1.0
      %v917 = vadd.f32 %v909, 1.0
      %v918 = vrcp.pop %v910
      %v919 = vmul.f32 1.0, %v918
      %v920 = vrcp.pop %v911
      %v921 = vmul.f32 1.0, %v920
      %v922 = vrcp.pop %v912
      %v923 = vmul.f32 1.0, %v922
      %v924 = vrcp.pop %v913
      %v925 = vmul.f32 1.0, %v924
      %v926 = vrcp.pop %v914
      %v927 = vmul.f32 1.0, %v926
      %v928 = vrcp.pop %v915
      %v929 = vmul.f32 1.0, %v928
      %v930 = vrcp.pop %v916
      %v931 = vmul.f32 1.0, %v930
      %v932 = vrcp.pop %v917
      %v933 = vmul.f32 1.0, %v932
      %v934 = vmul.f32 %v919, %v868
      %v935 = vmul.f32 %v921, %v873
      %v936 = vmul.f32 %v923, %v878
      %v937 = vmul.f32 %v925, %v883
      %v938 = vadd.f32 %v848, %v934
      %v939 = vadd.f32 %v853, %v935
      %v940 = vadd.f32 %v858, %v936
      %v941 = vadd.f32 %v863, %v937
      %v942 = vtanh.pop %v938
      %v943 = vtanh.pop %v939
      %v944 = vtanh.pop %v940
      %v945 = vtanh.pop %v941
      %v946 = vsub.f32 %v330, %v942
      %v947 = vsub.f32 %v331, %v943
      %v948 = vsub.f32 %v332, %v944
      %v949 = vsub.f32 %v333, %v945
      %v950 = vmul.f32 %v927, %v946
      %v951 = vmul.f32 %v929, %v947
      %v952 = vmul.f32 %v931, %v948
      %v953 = vmul.f32 %v933, %v949
      %v954 = vadd.f32 %v942, %v950
      %v955 = vadd.f32 %v943, %v951
      %v956 = vadd.f32 %v944, %v952
      %v957 = vadd.f32 %v945, %v953
      %vm958 = vcmask 64512
      %959 = vst.msk [vmem:[%s262] sm:$0xff] %vm958, %v954
      %960 = vst.msk [vmem:[%s262 + $0x8] sm:$0xff] %vm958, %v955
      %961 = vst.msk [vmem:[%s262 + $0x10] sm:$0xff] %vm958, %v956
      %962 = vst.msk [vmem:[%s262 + $0x18] sm:$0xff] %vm958, %v957
      %s963 = scalar_lea.vmem %s252, 96
      %v964 = vld [vmem:[%s963] sm:$0xff]
      %v965 = vld [vmem:[%s963 + $0x8] sm:$0xff]
      %v966 = vld [vmem:[%s963 + $0x10] sm:$0xff]
      %v967 = vld [vmem:[%s963 + $0x18] sm:$0xff]
      %v968 = vld [vmem:[%s963 + $0x20] sm:$0xff]
      %v969 = vld [vmem:[%s963 + $0x28] sm:$0xff]
      %v970 = vld [vmem:[%s963 + $0x30] sm:$0xff]
      %v971 = vld [vmem:[%s963 + $0x38] sm:$0xff]
      %v972 = vld [vmem:[%s963 + $0x40] sm:$0xff]
      %v973 = vld [vmem:[%s963 + $0x48] sm:$0xff]
      %v974 = vld [vmem:[%s963 + $0x50] sm:$0xff]
      %v975 = vld [vmem:[%s963 + $0x58] sm:$0xff]
      %976 = vmatprep.subr.mxu0 0.0
      %977 = vmatpush1.msra.mxu0 0.0
      %978 = vmatprep.subr.mxu0 0.0
      %979 = vmatpush1.msra.mxu0 0.0
      %980 = vmatprep.subr.mxu0 0.0
      %981 = vmatpush1.msra.mxu0 0.0
      %982 = vmatprep.subr.mxu0 0.0
      %983 = vmatpush1.msra.mxu0 0.0
      %984 = vmatprep.subr.mxu0 0.0
      %985 = vmatpush1.msra.mxu0 0.0
      %986 = vmatprep.subr.mxu0 0.0
      %987 = vmatpush1.msra.mxu0 0.0
      %988 = vmatprep.subr.mxu0 0.0
      %989 = vmatpush1.msra.mxu0 0.0
      %990 = vmatprep.subr.mxu0 0.0
      %991 = vmatpush1.msra.mxu0 0.0
      %992 = vmatprep.subr.mxu0 0.0
      %993 = vmatpush1.msra.mxu0 0.0
      %994 = vmatprep.subr.mxu0 0.0
      %995 = vmatpush1.msra.mxu0 0.0
      %996 = vmatprep.subr.mxu0 0.0
      %997 = vmatpush1.msra.mxu0 0.0
      %998 = vmatprep.subr.mxu0 0.0
      %999 = vmatpush1.msra.mxu0 0.0
      %1000 = vmatprep.subr.mxu0 0.0
      %1001 = vmatpush1.msra.mxu0 %v611
      %1002 = vmatprep.subr.mxu0 0.0
      %1003 = vmatpush1.msra.mxu0 %v610
      %1004 = vmatprep.subr.mxu0 0.0
      %1005 = vmatpush1.msra.mxu0 %v609
      %1006 = vmatprep.subr.mxu0 0.0
      %1007 = vmatpush1.msra.mxu0 %v608
      %1008 = vmatprep.subr.mxu0 0.0
      %1009 = vmatpush2.msra.mxu0 0.0
      %1010 = vmatprep.subr.mxu0 0.0
      %1011 = vmatpush2.msra.mxu0 0.0
      %1012 = vmatprep.subr.mxu0 0.0
      %1013 = vmatpush2.msra.mxu0 0.0
      %1014 = vmatprep.subr.mxu0 0.0
      %1015 = vmatpush2.msra.mxu0 0.0
      %1016 = vmatprep.subr.mxu0 0.0
      %1017 = vmatpush2.msra.mxu0 0.0
      %1018 = vmatprep.subr.mxu0 0.0
      %1019 = vmatpush2.msra.mxu0 0.0
      %1020 = vmatprep.subr.mxu0 0.0
      %1021 = vmatpush2.msra.mxu0 0.0
      %1022 = vmatprep.subr.mxu0 0.0
      %1023 = vmatpush2.msra.mxu0 0.0
      %1024 = vmatprep.subr.mxu0 0.0
      %1025 = vmatpush2.msra.mxu0 0.0
      %1026 = vmatprep.subr.mxu0 0.0
      %1027 = vmatpush2.msra.mxu0 0.0
      %1028 = vmatprep.subr.mxu0 0.0
      %1029 = vmatpush2.msra.mxu0 0.0
      %1030 = vmatprep.subr.mxu0 0.0
      %1031 = vmatpush2.msra.mxu0 0.0
      %1032 = vmatprep.subr.mxu0 0.0
      %1033 = vmatpush2.msra.mxu0 0.0
      %1034 = vmatprep.subr.mxu0 0.0
      %1035 = vmatpush2.msra.mxu0 0.0
      %1036 = vmatprep.subr.mxu0 0.0
      %1037 = vmatpush2.msra.mxu0 0.0
      %1038 = vmatprep.subr.mxu0 0.0
      %1039 = vmatpush2.msra.mxu0 0.0
      %1040 = vmatprep.mubr.f32.mxu0 0.0
      %1041 = vmatmul.mubr.f32.gmra.mxu0 %v348
      %v1042 = vpop.f32.mrf.mxu0
      %v1043 = vadd.f32 0.0, %v1042
      %v1044 = vpop.f32.mrf.mxu0
      %1045 = vmatprep.mubr.f32.mxu0 0.0
      %1046 = vmatmul.mubr.f32.gmra.mxu0 %v351
      %v1047 = vpop.f32.mrf.mxu0
      %v1048 = vadd.f32 0.0, %v1047
      %v1049 = vpop.f32.mrf.mxu0
      %1050 = vmatprep.mubr.f32.mxu0 0.0
      %1051 = vmatmul.mubr.f32.gmra.mxu0 %v354
      %v1052 = vpop.f32.mrf.mxu0
      %v1053 = vadd.f32 0.0, %v1052
      %v1054 = vpop.f32.mrf.mxu0
      %1055 = vmatprep.mubr.f32.mxu0 0.0
      %1056 = vmatmul.mubr.f32.gmra.mxu0 %v357
      %v1057 = vpop.f32.mrf.mxu0
      %v1058 = vadd.f32 0.0, %v1057
      %v1059 = vpop.f32.mrf.mxu0
      %1060 = vmatprep.mubr.f32.mxu0 0.0
      %1061 = vmatmul.mubr.f32.gmra.mxu0 %v360
      %v1062 = vpop.f32.mrf.mxu0
      %v1063 = vadd.f32 0.0, %v1062
      %v1064 = vpop.f32.mrf.mxu0
      %1065 = vmatprep.mubr.f32.mxu0 0.0
      %1066 = vmatmul.mubr.f32.gmra.mxu0 %v363
      %v1067 = vpop.f32.mrf.mxu0
      %v1068 = vadd.f32 0.0, %v1067
      %v1069 = vpop.f32.mrf.mxu0
      %1070 = vmatprep.mubr.f32.mxu0 0.0
      %1071 = vmatmul.mubr.f32.gmra.mxu0 %v366
      %v1072 = vpop.f32.mrf.mxu0
      %v1073 = vadd.f32 0.0, %v1072
      %v1074 = vpop.f32.mrf.mxu0
      %1075 = vmatprep.mubr.f32.mxu0 0.0
      %1076 = vmatmul.mubr.f32.gmra.mxu0 %v369
      %v1077 = vpop.f32.mrf.mxu0
      %v1078 = vadd.f32 0.0, %v1077
      %v1079 = vpop.f32.mrf.mxu0
      %1080 = vmatprep.mubr.f32.mxu0 0.0
      %1081 = vmatmul.mubr.f32.gmra.mxu0 %v372
      %v1082 = vpop.f32.mrf.mxu0
      %v1083 = vadd.f32 0.0, %v1082
      %v1084 = vpop.f32.mrf.mxu0
      %1085 = vmatprep.mubr.f32.mxu0 0.0
      %1086 = vmatmul.mubr.f32.gmra.mxu0 %v375
      %v1087 = vpop.f32.mrf.mxu0
      %v1088 = vadd.f32 0.0, %v1087
      %v1089 = vpop.f32.mrf.mxu0
      %1090 = vmatprep.mubr.f32.mxu0 0.0
      %1091 = vmatmul.mubr.f32.gmra.mxu0 %v378
      %v1092 = vpop.f32.mrf.mxu0
      %v1093 = vadd.f32 0.0, %v1092
      %v1094 = vpop.f32.mrf.mxu0
      %1095 = vmatprep.mubr.f32.mxu0 0.0
      %1096 = vmatmul.mubr.f32.gmra.mxu0 %v381
      %v1097 = vpop.f32.mrf.mxu0
      %v1098 = vadd.f32 0.0, %v1097
      %v1099 = vpop.f32.mrf.mxu0
      %1100 = vdwg.mxu0
      %v1101 = vadd.f32 %v964, %v1043
      %v1102 = vadd.f32 %v965, %v1048
      %v1103 = vadd.f32 %v966, %v1053
      %v1104 = vadd.f32 %v967, %v1058
      %v1105 = vadd.f32 %v968, %v1063
      %v1106 = vadd.f32 %v969, %v1068
      %v1107 = vadd.f32 %v970, %v1073
      %v1108 = vadd.f32 %v971, %v1078
      %v1109 = vxor.u32 %v1101, 2147483648
      %v1110 = vxor.u32 %v1102, 2147483648
      %v1111 = vxor.u32 %v1103, 2147483648
      %v1112 = vxor.u32 %v1104, 2147483648
      %v1113 = vxor.u32 %v1105, 2147483648
      %v1114 = vxor.u32 %v1106, 2147483648
      %v1115 = vxor.u32 %v1107, 2147483648
      %v1116 = vxor.u32 %v1108, 2147483648
      %v1117 = vmul.f32 %v1109, 1.442695
      %v1118 = vpow.pop %v1117
      %v1119 = vmul.f32 %v1110, 1.442695
      %v1120 = vpow.pop %v1119
      %v1121 = vmul.f32 %v1111, 1.442695
      %v1122 = vpow.pop %v1121
      %v1123 = vmul.f32 %v1112, 1.442695
      %v1124 = vpow.pop %v1123
      %v1125 = vmul.f32 %v1113, 1.442695
      %v1126 = vpow.pop %v1125
      %v1127 = vmul.f32 %v1114, 1.442695
      %v1128 = vpow.pop %v1127
      %v1129 = vmul.f32 %v1115, 1.442695
      %v1130 = vpow.pop %v1129
      %v1131 = vmul.f32 %v1116, 1.442695
      %v1132 = vpow.pop %v1131
      %v1133 = vadd.f32 %v1118, 1.0
      %v1134 = vadd.f32 %v1120, 1.0
      %v1135 = vadd.f32 %v1122, 1.0
      %v1136 = vadd.f32 %v1124, 1.0
      %v1137 = vadd.f32 %v1126, 1.0
      %v1138 = vadd.f32 %v1128, 1.0
      %v1139 = vadd.f32 %v1130, 1.0
      %v1140 = vadd.f32 %v1132, 1.0
      %v1141 = vrcp.pop %v1133
      %v1142 = vmul.f32 1.0, %v1141
      %v1143 = vrcp.pop %v1134
      %v1144 = vmul.f32 1.0, %v1143
      %v1145 = vrcp.pop %v1135
      %v1146 = vmul.f32 1.0, %v1145
      %v1147 = vrcp.pop %v1136
      %v1148 = vmul.f32 1.0, %v1147
      %v1149 = vrcp.pop %v1137
      %v1150 = vmul.f32 1.0, %v1149
      %v1151 = vrcp.pop %v1138
      %v1152 = vmul.f32 1.0, %v1151
      %v1153 = vrcp.pop %v1139
      %v1154 = vmul.f32 1.0, %v1153
      %v1155 = vrcp.pop %v1140
      %v1156 = vmul.f32 1.0, %v1155
      %v1157 = vadd.f32 %v1083, %v567
      %v1158 = vadd.f32 %v1088, %v572
      %v1159 = vadd.f32 %v1093, %v577
      %v1160 = vadd.f32 %v1098, %v582
      %v1161 = vmul.f32 %v1142, %v1157
      %v1162 = vmul.f32 %v1144, %v1158
      %v1163 = vmul.f32 %v1146, %v1159
      %v1164 = vmul.f32 %v1148, %v1160
      %v1165 = vadd.f32 %v972, %v1161
      %v1166 = vadd.f32 %v973, %v1162
      %v1167 = vadd.f32 %v974, %v1163
      %v1168 = vadd.f32 %v975, %v1164
      %v1169 = vtanh.pop %v1165
      %v1170 = vtanh.pop %v1166
      %v1171 = vtanh.pop %v1167
      %v1172 = vtanh.pop %v1168
      %v1173 = vsub.f32 %v608, %v1169
      %v1174 = vsub.f32 %v609, %v1170
      %v1175 = vsub.f32 %v610, %v1171
      %v1176 = vsub.f32 %v611, %v1172
      %v1177 = vmul.f32 %v1150, %v1173
      %v1178 = vmul.f32 %v1152, %v1174
      %v1179 = vmul.f32 %v1154, %v1175
      %v1180 = vmul.f32 %v1156, %v1176
      %v1181 = vadd.f32 %v1169, %v1177
      %v1182 = vadd.f32 %v1170, %v1178
      %v1183 = vadd.f32 %v1171, %v1179
      %v1184 = vadd.f32 %v1172, %v1180
      %1185 = vmatprep.subr.mxu0 0.0
      %1186 = vmatpush1.msra.mxu0 0.0
      %1187 = vmatprep.subr.mxu0 0.0
      %1188 = vmatpush1.msra.mxu0 0.0
      %1189 = vmatprep.subr.mxu0 0.0
      %1190 = vmatpush1.msra.mxu0 0.0
      %1191 = vmatprep.subr.mxu0 0.0
      %1192 = vmatpush1.msra.mxu0 0.0
      %1193 = vmatprep.subr.mxu0 0.0
      %1194 = vmatpush1.msra.mxu0 0.0
      %1195 = vmatprep.subr.mxu0 0.0
      %1196 = vmatpush1.msra.mxu0 0.0
      %1197 = vmatprep.subr.mxu0 0.0
      %1198 = vmatpush1.msra.mxu0 0.0
      %1199 = vmatprep.subr.mxu0 0.0
      %1200 = vmatpush1.msra.mxu0 0.0
      %1201 = vmatprep.subr.mxu0 0.0
      %1202 = vmatpush1.msra.mxu0 %v957
      %1203 = vmatprep.subr.mxu0 0.0
      %1204 = vmatpush1.msra.mxu0 %v956
      %1205 = vmatprep.subr.mxu0 0.0
      %1206 = vmatpush1.msra.mxu0 %v955
      %1207 = vmatprep.subr.mxu0 0.0
      %1208 = vmatpush1.msra.mxu0 %v954
      %1209 = vmatprep.subr.mxu0 0.0
      %1210 = vmatpush1.msra.mxu0 %v1184
      %1211 = vmatprep.subr.mxu0 0.0
      %1212 = vmatpush1.msra.mxu0 %v1183
      %1213 = vmatprep.subr.mxu0 0.0
      %1214 = vmatpush1.msra.mxu0 %v1182
      %1215 = vmatprep.subr.mxu0 0.0
      %1216 = vmatpush1.msra.mxu0 %v1181
      %1217 = vmatprep.subr.mxu0 0.0
      %1218 = vmatpush2.msra.mxu0 0.0
      %1219 = vmatprep.subr.mxu0 0.0
      %1220 = vmatpush2.msra.mxu0 0.0
      %1221 = vmatprep.subr.mxu0 0.0
      %1222 = vmatpush2.msra.mxu0 0.0
      %1223 = vmatprep.subr.mxu0 0.0
      %1224 = vmatpush2.msra.mxu0 0.0
      %1225 = vmatprep.subr.mxu0 0.0
      %1226 = vmatpush2.msra.mxu0 0.0
      %1227 = vmatprep.subr.mxu0 0.0
      %1228 = vmatpush2.msra.mxu0 0.0
      %1229 = vmatprep.subr.mxu0 0.0
      %1230 = vmatpush2.msra.mxu0 0.0
      %1231 = vmatprep.subr.mxu0 0.0
      %1232 = vmatpush2.msra.mxu0 0.0
      %1233 = vmatprep.subr.mxu0 0.0
      %1234 = vmatpush2.msra.mxu0 0.0
      %1235 = vmatprep.subr.mxu0 0.0
      %1236 = vmatpush2.msra.mxu0 0.0
      %1237 = vmatprep.subr.mxu0 0.0
      %1238 = vmatpush2.msra.mxu0 0.0
      %1239 = vmatprep.subr.mxu0 0.0
      %1240 = vmatpush2.msra.mxu0 0.0
      %1241 = vmatprep.subr.mxu0 0.0
      %1242 = vmatpush2.msra.mxu0 0.0
      %1243 = vmatprep.subr.mxu0 0.0
      %1244 = vmatpush2.msra.mxu0 0.0
      %1245 = vmatprep.subr.mxu0 0.0
      %1246 = vmatpush2.msra.mxu0 0.0
      %1247 = vmatprep.subr.mxu0 0.0
      %1248 = vmatpush2.msra.mxu0 0.0
      %1249 = vmatprep.mubr.f32.mxu0 0.0
      %1250 = vmatmul.mubr.f32.gmra.mxu0 %v694
      %v1251 = vpop.f32.mrf.mxu0
      %v1252 = vadd.f32 %v615, %v1251
      %v1253 = vpop.f32.mrf.mxu0
      %1254 = vmatprep.mubr.f32.mxu0 0.0
      %1255 = vmatmul.mubr.f32.gmra.mxu0 %v697
      %v1256 = vpop.f32.mrf.mxu0
      %v1257 = vadd.f32 %v620, %v1256
      %v1258 = vpop.f32.mrf.mxu0
      %1259 = vmatprep.mubr.f32.mxu0 0.0
      %1260 = vmatmul.mubr.f32.gmra.mxu0 %v700
      %v1261 = vpop.f32.mrf.mxu0
      %v1262 = vadd.f32 %v625, %v1261
      %v1263 = vpop.f32.mrf.mxu0
      %1264 = vmatprep.mubr.f32.mxu0 0.0
      %1265 = vmatmul.mubr.f32.gmra.mxu0 %v703
      %v1266 = vpop.f32.mrf.mxu0
      %v1267 = vadd.f32 %v630, %v1266
      %v1268 = vpop.f32.mrf.mxu0
      %1269 = vmatprep.mubr.f32.mxu0 0.0
      %1270 = vmatmul.mubr.f32.gmra.mxu0 %v706
      %v1271 = vpop.f32.mrf.mxu0
      %v1272 = vadd.f32 %v635, %v1271
      %v1273 = vpop.f32.mrf.mxu0
      %1274 = vmatprep.mubr.f32.mxu0 0.0
      %1275 = vmatmul.mubr.f32.gmra.mxu0 %v709
      %v1276 = vpop.f32.mrf.mxu0
      %v1277 = vadd.f32 %v640, %v1276
      %v1278 = vpop.f32.mrf.mxu0
      %1279 = vmatprep.mubr.f32.mxu0 0.0
      %1280 = vmatmul.mubr.f32.gmra.mxu0 %v712
      %v1281 = vpop.f32.mrf.mxu0
      %v1282 = vadd.f32 %v645, %v1281
      %v1283 = vpop.f32.mrf.mxu0
      %1284 = vmatprep.mubr.f32.mxu0 0.0
      %1285 = vmatmul.mubr.f32.gmra.mxu0 %v715
      %v1286 = vpop.f32.mrf.mxu0
      %v1287 = vadd.f32 %v650, %v1286
      %v1288 = vpop.f32.mrf.mxu0
      %1289 = vmatprep.mubr.f32.mxu0 0.0
      %1290 = vmatmul.mubr.f32.gmra.mxu0 %v718
      %v1291 = vpop.f32.mrf.mxu0
      %v1292 = vadd.f32 %v655, %v1291
      %v1293 = vpop.f32.mrf.mxu0
      %1294 = vmatprep.mubr.f32.mxu0 0.0
      %1295 = vmatmul.mubr.f32.gmra.mxu0 %v721
      %v1296 = vpop.f32.mrf.mxu0
      %v1297 = vadd.f32 %v660, %v1296
      %v1298 = vpop.f32.mrf.mxu0
      %1299 = vmatprep.mubr.f32.mxu0 0.0
      %1300 = vmatmul.mubr.f32.gmra.mxu0 %v724
      %v1301 = vpop.f32.mrf.mxu0
      %v1302 = vadd.f32 %v665, %v1301
      %v1303 = vpop.f32.mrf.mxu0
      %1304 = vmatprep.mubr.f32.mxu0 0.0
      %1305 = vmatmul.mubr.f32.gmra.mxu0 %v727
      %v1306 = vpop.f32.mrf.mxu0
      %v1307 = vadd.f32 %v670, %v1306
      %v1308 = vpop.f32.mrf.mxu0
      %1309 = vmatprep.mubr.f32.mxu0 0.0
      %1310 = vmatmul.mubr.f32.gmra.mxu0 %v730
      %v1311 = vpop.f32.mrf.mxu0
      %v1312 = vadd.f32 %v675, %v1311
      %v1313 = vpop.f32.mrf.mxu0
      %1314 = vmatprep.mubr.f32.mxu0 0.0
      %1315 = vmatmul.mubr.f32.gmra.mxu0 %v733
      %v1316 = vpop.f32.mrf.mxu0
      %v1317 = vadd.f32 %v680, %v1316
      %v1318 = vpop.f32.mrf.mxu0
      %1319 = vmatprep.mubr.f32.mxu0 0.0
      %1320 = vmatmul.mubr.f32.gmra.mxu0 %v736
      %v1321 = vpop.f32.mrf.mxu0
      %v1322 = vadd.f32 %v685, %v1321
      %v1323 = vpop.f32.mrf.mxu0
      %1324 = vmatprep.mubr.f32.mxu0 0.0
      %1325 = vmatmul.mubr.f32.gmra.mxu0 %v739
      %v1326 = vpop.f32.mrf.mxu0
      %v1327 = vadd.f32 %v690, %v1326
      %v1328 = vpop.f32.mrf.mxu0
      %1329 = vdwg.mxu0
      %v1330 = vxor.u32 %v1252, 2147483648
      %v1331 = vxor.u32 %v1257, 2147483648
      %v1332 = vxor.u32 %v1262, 2147483648
      %v1333 = vxor.u32 %v1267, 2147483648
      %v1334 = vxor.u32 %v1272, 2147483648
      %v1335 = vxor.u32 %v1277, 2147483648
      %v1336 = vxor.u32 %v1282, 2147483648
      %v1337 = vxor.u32 %v1287, 2147483648
      %v1338 = vmul.f32 %v1330, 1.442695
      %v1339 = vpow.pop %v1338
      %v1340 = vmul.f32 %v1331, 1.442695
      %v1341 = vpow.pop %v1340
      %v1342 = vmul.f32 %v1332, 1.442695
      %v1343 = vpow.pop %v1342
      %v1344 = vmul.f32 %v1333, 1.442695
      %v1345 = vpow.pop %v1344
      %v1346 = vmul.f32 %v1334, 1.442695
      %v1347 = vpow.pop %v1346
      %v1348 = vmul.f32 %v1335, 1.442695
      %v1349 = vpow.pop %v1348
      %v1350 = vmul.f32 %v1336, 1.442695
      %v1351 = vpow.pop %v1350
      %v1352 = vmul.f32 %v1337, 1.442695
      %v1353 = vpow.pop %v1352
      %v1354 = vadd.f32 %v1339, 1.0
      %v1355 = vadd.f32 %v1341, 1.0
      %v1356 = vadd.f32 %v1343, 1.0
      %v1357 = vadd.f32 %v1345, 1.0
      %v1358 = vadd.f32 %v1347, 1.0
      %v1359 = vadd.f32 %v1349, 1.0
      %v1360 = vadd.f32 %v1351, 1.0
      %v1361 = vadd.f32 %v1353, 1.0
      %v1362 = vrcp.pop %v1354
      %v1363 = vmul.f32 1.0, %v1362
      %v1364 = vrcp.pop %v1355
      %v1365 = vmul.f32 1.0, %v1364
      %v1366 = vrcp.pop %v1356
      %v1367 = vmul.f32 1.0, %v1366
      %v1368 = vrcp.pop %v1357
      %v1369 = vmul.f32 1.0, %v1368
      %v1370 = vrcp.pop %v1358
      %v1371 = vmul.f32 1.0, %v1370
      %v1372 = vrcp.pop %v1359
      %v1373 = vmul.f32 1.0, %v1372
      %v1374 = vrcp.pop %v1360
      %v1375 = vmul.f32 1.0, %v1374
      %v1376 = vrcp.pop %v1361
      %v1377 = vmul.f32 1.0, %v1376
      %v1378 = vmul.f32 %v1363, %v1312
      %v1379 = vmul.f32 %v1365, %v1317
      %v1380 = vmul.f32 %v1367, %v1322
      %v1381 = vmul.f32 %v1369, %v1327
      %v1382 = vadd.f32 %v1292, %v1378
      %v1383 = vadd.f32 %v1297, %v1379
      %v1384 = vadd.f32 %v1302, %v1380
      %v1385 = vadd.f32 %v1307, %v1381
      %v1386 = vtanh.pop %v1382
      %v1387 = vtanh.pop %v1383
      %v1388 = vtanh.pop %v1384
      %v1389 = vtanh.pop %v1385
      %v1390 = vsub.f32 %v954, %v1386
      %v1391 = vsub.f32 %v955, %v1387
      %v1392 = vsub.f32 %v956, %v1388
      %v1393 = vsub.f32 %v957, %v1389
      %v1394 = vmul.f32 %v1371, %v1390
      %v1395 = vmul.f32 %v1373, %v1391
      %v1396 = vmul.f32 %v1375, %v1392
      %v1397 = vmul.f32 %v1377, %v1393
      %v1398 = vadd.f32 %v1386, %v1394
      %v1399 = vadd.f32 %v1387, %v1395
      %v1400 = vadd.f32 %v1388, %v1396
      %v1401 = vadd.f32 %v1389, %v1397
      %s1402 = scalar_lea.vmem %s262, 32
      %1403 = vst.msk [vmem:[%s1402] sm:$0xff] %vm958, %v1398
      %1404 = vst.msk [vmem:[%s1402 + $0x8] sm:$0xff] %vm958, %v1399
      %1405 = vst.msk [vmem:[%s1402 + $0x10] sm:$0xff] %vm958, %v1400
      %1406 = vst.msk [vmem:[%s1402 + $0x18] sm:$0xff] %vm958, %v1401
      %s1407 = scalar_lea.vmem %s252, 192
      %v1408 = vld [vmem:[%s1407] sm:$0xff]
      %v1409 = vld [vmem:[%s1407 + $0x8] sm:$0xff]
      %v1410 = vld [vmem:[%s1407 + $0x10] sm:$0xff]
      %v1411 = vld [vmem:[%s1407 + $0x18] sm:$0xff]
      %v1412 = vld [vmem:[%s1407 + $0x20] sm:$0xff]
      %v1413 = vld [vmem:[%s1407 + $0x28] sm:$0xff]
      %v1414 = vld [vmem:[%s1407 + $0x30] sm:$0xff]
      %v1415 = vld [vmem:[%s1407 + $0x38] sm:$0xff]
      %v1416 = vld [vmem:[%s1407 + $0x40] sm:$0xff]
      %v1417 = vld [vmem:[%s1407 + $0x48] sm:$0xff]
      %v1418 = vld [vmem:[%s1407 + $0x50] sm:$0xff]
      %v1419 = vld [vmem:[%s1407 + $0x58] sm:$0xff]
      %1420 = vmatprep.subr.mxu0 0.0
      %1421 = vmatpush1.msra.mxu0 0.0
      %1422 = vmatprep.subr.mxu0 0.0
      %1423 = vmatpush1.msra.mxu0 0.0
      %1424 = vmatprep.subr.mxu0 0.0
      %1425 = vmatpush1.msra.mxu0 0.0
      %1426 = vmatprep.subr.mxu0 0.0
      %1427 = vmatpush1.msra.mxu0 0.0
      %1428 = vmatprep.subr.mxu0 0.0
      %1429 = vmatpush1.msra.mxu0 0.0
      %1430 = vmatprep.subr.mxu0 0.0
      %1431 = vmatpush1.msra.mxu0 0.0
      %1432 = vmatprep.subr.mxu0 0.0
      %1433 = vmatpush1.msra.mxu0 0.0
      %1434 = vmatprep.subr.mxu0 0.0
      %1435 = vmatpush1.msra.mxu0 0.0
      %1436 = vmatprep.subr.mxu0 0.0
      %1437 = vmatpush1.msra.mxu0 0.0
      %1438 = vmatprep.subr.mxu0 0.0
      %1439 = vmatpush1.msra.mxu0 0.0
      %1440 = vmatprep.subr.mxu0 0.0
      %1441 = vmatpush1.msra.mxu0 0.0
      %1442 = vmatprep.subr.mxu0 0.0
      %1443 = vmatpush1.msra.mxu0 0.0
      %1444 = vmatprep.subr.mxu0 0.0
      %1445 = vmatpush1.msra.mxu0 %v1184
      %1446 = vmatprep.subr.mxu0 0.0
      %1447 = vmatpush1.msra.mxu0 %v1183
      %1448 = vmatprep.subr.mxu0 0.0
      %1449 = vmatpush1.msra.mxu0 %v1182
      %1450 = vmatprep.subr.mxu0 0.0
      %1451 = vmatpush1.msra.mxu0 %v1181
      %1452 = vmatprep.subr.mxu0 0.0
      %1453 = vmatpush2.msra.mxu0 0.0
      %1454 = vmatprep.subr.mxu0 0.0
      %1455 = vmatpush2.msra.mxu0 0.0
      %1456 = vmatprep.subr.mxu0 0.0
      %1457 = vmatpush2.msra.mxu0 0.0
      %1458 = vmatprep.subr.mxu0 0.0
      %1459 = vmatpush2.msra.mxu0 0.0
      %1460 = vmatprep.subr.mxu0 0.0
      %1461 = vmatpush2.msra.mxu0 0.0
      %1462 = vmatprep.subr.mxu0 0.0
      %1463 = vmatpush2.msra.mxu0 0.0
      %1464 = vmatprep.subr.mxu0 0.0
      %1465 = vmatpush2.msra.mxu0 0.0
      %1466 = vmatprep.subr.mxu0 0.0
      %1467 = vmatpush2.msra.mxu0 0.0
      %1468 = vmatprep.subr.mxu0 0.0
      %1469 = vmatpush2.msra.mxu0 0.0
      %1470 = vmatprep.subr.mxu0 0.0
      %1471 = vmatpush2.msra.mxu0 0.0
      %1472 = vmatprep.subr.mxu0 0.0
      %1473 = vmatpush2.msra.mxu0 0.0
      %1474 = vmatprep.subr.mxu0 0.0
      %1475 = vmatpush2.msra.mxu0 0.0
      %1476 = vmatprep.subr.mxu0 0.0
      %1477 = vmatpush2.msra.mxu0 0.0
      %1478 = vmatprep.subr.mxu0 0.0
      %1479 = vmatpush2.msra.mxu0 0.0
      %1480 = vmatprep.subr.mxu0 0.0
      %1481 = vmatpush2.msra.mxu0 0.0
      %1482 = vmatprep.subr.mxu0 0.0
      %1483 = vmatpush2.msra.mxu0 0.0
      %1484 = vmatprep.mubr.f32.mxu0 0.0
      %1485 = vmatmul.mubr.f32.gmra.mxu0 %v348
      %v1486 = vpop.f32.mrf.mxu0
      %v1487 = vadd.f32 0.0, %v1486
      %v1488 = vpop.f32.mrf.mxu0
      %1489 = vmatprep.mubr.f32.mxu0 0.0
      %1490 = vmatmul.mubr.f32.gmra.mxu0 %v351
      %v1491 = vpop.f32.mrf.mxu0
      %v1492 = vadd.f32 0.0, %v1491
      %v1493 = vpop.f32.mrf.mxu0
      %1494 = vmatprep.mubr.f32.mxu0 0.0
      %1495 = vmatmul.mubr.f32.gmra.mxu0 %v354
      %v1496 = vpop.f32.mrf.mxu0
      %v1497 = vadd.f32 0.0, %v1496
      %v1498 = vpop.f32.mrf.mxu0
      %1499 = vmatprep.mubr.f32.mxu0 0.0
      %1500 = vmatmul.mubr.f32.gmra.mxu0 %v357
      %v1501 = vpop.f32.mrf.mxu0
      %v1502 = vadd.f32 0.0, %v1501
      %v1503 = vpop.f32.mrf.mxu0
      %1504 = vmatprep.mubr.f32.mxu0 0.0
      %1505 = vmatmul.mubr.f32.gmra.mxu0 %v360
      %v1506 = vpop.f32.mrf.mxu0
      %v1507 = vadd.f32 0.0, %v1506
      %v1508 = vpop.f32.mrf.mxu0
      %1509 = vmatprep.mubr.f32.mxu0 0.0
      %1510 = vmatmul.mubr.f32.gmra.mxu0 %v363
      %v1511 = vpop.f32.mrf.mxu0
      %v1512 = vadd.f32 0.0, %v1511
      %v1513 = vpop.f32.mrf.mxu0
      %1514 = vmatprep.mubr.f32.mxu0 0.0
      %1515 = vmatmul.mubr.f32.gmra.mxu0 %v366
      %v1516 = vpop.f32.mrf.mxu0
      %v1517 = vadd.f32 0.0, %v1516
      %v1518 = vpop.f32.mrf.mxu0
      %1519 = vmatprep.mubr.f32.mxu0 0.0
      %1520 = vmatmul.mubr.f32.gmra.mxu0 %v369
      %v1521 = vpop.f32.mrf.mxu0
      %v1522 = vadd.f32 0.0, %v1521
      %v1523 = vpop.f32.mrf.mxu0
      %1524 = vmatprep.mubr.f32.mxu0 0.0
      %1525 = vmatmul.mubr.f32.gmra.mxu0 %v372
      %v1526 = vpop.f32.mrf.mxu0
      %v1527 = vadd.f32 0.0, %v1526
      %v1528 = vpop.f32.mrf.mxu0
      %1529 = vmatprep.mubr.f32.mxu0 0.0
      %1530 = vmatmul.mubr.f32.gmra.mxu0 %v375
      %v1531 = vpop.f32.mrf.mxu0
      %v1532 = vadd.f32 0.0, %v1531
      %v1533 = vpop.f32.mrf.mxu0
      %1534 = vmatprep.mubr.f32.mxu0 0.0
      %1535 = vmatmul.mubr.f32.gmra.mxu0 %v378
      %v1536 = vpop.f32.mrf.mxu0
      %v1537 = vadd.f32 0.0, %v1536
      %v1538 = vpop.f32.mrf.mxu0
      %1539 = vmatprep.mubr.f32.mxu0 0.0
      %1540 = vmatmul.mubr.f32.gmra.mxu0 %v381
      %v1541 = vpop.f32.mrf.mxu0
      %v1542 = vadd.f32 0.0, %v1541
      %v1543 = vpop.f32.mrf.mxu0
      %1544 = vdwg.mxu0
      %v1545 = vadd.f32 %v1408, %v1487
      %v1546 = vadd.f32 %v1409, %v1492
      %v1547 = vadd.f32 %v1410, %v1497
      %v1548 = vadd.f32 %v1411, %v1502
      %v1549 = vadd.f32 %v1412, %v1507
      %v1550 = vadd.f32 %v1413, %v1512
      %v1551 = vadd.f32 %v1414, %v1517
      %v1552 = vadd.f32 %v1415, %v1522
      %v1553 = vxor.u32 %v1545, 2147483648
      %v1554 = vxor.u32 %v1546, 2147483648
      %v1555 = vxor.u32 %v1547, 2147483648
      %v1556 = vxor.u32 %v1548, 2147483648
      %v1557 = vxor.u32 %v1549, 2147483648
      %v1558 = vxor.u32 %v1550, 2147483648
      %v1559 = vxor.u32 %v1551, 2147483648
      %v1560 = vxor.u32 %v1552, 2147483648
      %v1561 = vmul.f32 %v1553, 1.442695
      %v1562 = vpow.pop %v1561
      %v1563 = vmul.f32 %v1554, 1.442695
      %v1564 = vpow.pop %v1563
      %v1565 = vmul.f32 %v1555, 1.442695
      %v1566 = vpow.pop %v1565
      %v1567 = vmul.f32 %v1556, 1.442695
      %v1568 = vpow.pop %v1567
      %v1569 = vmul.f32 %v1557, 1.442695
      %v1570 = vpow.pop %v1569
      %v1571 = vmul.f32 %v1558, 1.442695
      %v1572 = vpow.pop %v1571
      %v1573 = vmul.f32 %v1559, 1.442695
      %v1574 = vpow.pop %v1573
      %v1575 = vmul.f32 %v1560, 1.442695
      %v1576 = vpow.pop %v1575
      %v1577 = vadd.f32 %v1562, 1.0
      %v1578 = vadd.f32 %v1564, 1.0
      %v1579 = vadd.f32 %v1566, 1.0
      %v1580 = vadd.f32 %v1568, 1.0
      %v1581 = vadd.f32 %v1570, 1.0
      %v1582 = vadd.f32 %v1572, 1.0
      %v1583 = vadd.f32 %v1574, 1.0
      %v1584 = vadd.f32 %v1576, 1.0
      %v1585 = vrcp.pop %v1577
      %v1586 = vmul.f32 1.0, %v1585
      %v1587 = vrcp.pop %v1578
      %v1588 = vmul.f32 1.0, %v1587
      %v1589 = vrcp.pop %v1579
      %v1590 = vmul.f32 1.0, %v1589
      %v1591 = vrcp.pop %v1580
      %v1592 = vmul.f32 1.0, %v1591
      %v1593 = vrcp.pop %v1581
      %v1594 = vmul.f32 1.0, %v1593
      %v1595 = vrcp.pop %v1582
      %v1596 = vmul.f32 1.0, %v1595
      %v1597 = vrcp.pop %v1583
      %v1598 = vmul.f32 1.0, %v1597
      %v1599 = vrcp.pop %v1584
      %v1600 = vmul.f32 1.0, %v1599
      %v1601 = vadd.f32 %v1527, %v567
      %v1602 = vadd.f32 %v1532, %v572
      %v1603 = vadd.f32 %v1537, %v577
      %v1604 = vadd.f32 %v1542, %v582
      %v1605 = vmul.f32 %v1586, %v1601
      %v1606 = vmul.f32 %v1588, %v1602
      %v1607 = vmul.f32 %v1590, %v1603
      %v1608 = vmul.f32 %v1592, %v1604
      %v1609 = vadd.f32 %v1416, %v1605
      %v1610 = vadd.f32 %v1417, %v1606
      %v1611 = vadd.f32 %v1418, %v1607
      %v1612 = vadd.f32 %v1419, %v1608
      %v1613 = vtanh.pop %v1609
      %v1614 = vtanh.pop %v1610
      %v1615 = vtanh.pop %v1611
      %v1616 = vtanh.pop %v1612
      %v1617 = vsub.f32 %v1181, %v1613
      %v1618 = vsub.f32 %v1182, %v1614
      %v1619 = vsub.f32 %v1183, %v1615
      %v1620 = vsub.f32 %v1184, %v1616
      %v1621 = vmul.f32 %v1594, %v1617
      %v1622 = vmul.f32 %v1596, %v1618
      %v1623 = vmul.f32 %v1598, %v1619
      %v1624 = vmul.f32 %v1600, %v1620
      %v1625 = vadd.f32 %v1613, %v1621
      %v1626 = vadd.f32 %v1614, %v1622
      %v1627 = vadd.f32 %v1615, %v1623
      %v1628 = vadd.f32 %v1616, %v1624
      %1629 = vmatprep.subr.mxu0 0.0
      %1630 = vmatpush1.msra.mxu0 0.0
      %1631 = vmatprep.subr.mxu0 0.0
      %1632 = vmatpush1.msra.mxu0 0.0
      %1633 = vmatprep.subr.mxu0 0.0
      %1634 = vmatpush1.msra.mxu0 0.0
      %1635 = vmatprep.subr.mxu0 0.0
      %1636 = vmatpush1.msra.mxu0 0.0
      %1637 = vmatprep.subr.mxu0 0.0
      %1638 = vmatpush1.msra.mxu0 0.0
      %1639 = vmatprep.subr.mxu0 0.0
      %1640 = vmatpush1.msra.mxu0 0.0
      %1641 = vmatprep.subr.mxu0 0.0
      %1642 = vmatpush1.msra.mxu0 0.0
      %1643 = vmatprep.subr.mxu0 0.0
      %1644 = vmatpush1.msra.mxu0 0.0
      %1645 = vmatprep.subr.mxu0 0.0
      %1646 = vmatpush1.msra.mxu0 %v1401
      %1647 = vmatprep.subr.mxu0 0.0
      %1648 = vmatpush1.msra.mxu0 %v1400
      %1649 = vmatprep.subr.mxu0 0.0
      %1650 = vmatpush1.msra.mxu0 %v1399
      %1651 = vmatprep.subr.mxu0 0.0
      %1652 = vmatpush1.msra.mxu0 %v1398
      %1653 = vmatprep.subr.mxu0 0.0
      %1654 = vmatpush1.msra.mxu0 %v1628
      %1655 = vmatprep.subr.mxu0 0.0
      %1656 = vmatpush1.msra.mxu0 %v1627
      %1657 = vmatprep.subr.mxu0 0.0
      %1658 = vmatpush1.msra.mxu0 %v1626
      %1659 = vmatprep.subr.mxu0 0.0
      %1660 = vmatpush1.msra.mxu0 %v1625
      %1661 = vmatprep.subr.mxu0 0.0
      %1662 = vmatpush2.msra.mxu0 0.0
      %1663 = vmatprep.subr.mxu0 0.0
      %1664 = vmatpush2.msra.mxu0 0.0
      %1665 = vmatprep.subr.mxu0 0.0
      %1666 = vmatpush2.msra.mxu0 0.0
      %1667 = vmatprep.subr.mxu0 0.0
      %1668 = vmatpush2.msra.mxu0 0.0
      %1669 = vmatprep.subr.mxu0 0.0
      %1670 = vmatpush2.msra.mxu0 0.0
      %1671 = vmatprep.subr.mxu0 0.0
      %1672 = vmatpush2.msra.mxu0 0.0
      %1673 = vmatprep.subr.mxu0 0.0
      %1674 = vmatpush2.msra.mxu0 0.0
      %1675 = vmatprep.subr.mxu0 0.0
      %1676 = vmatpush2.msra.mxu0 0.0
      %1677 = vmatprep.subr.mxu0 0.0
      %1678 = vmatpush2.msra.mxu0 0.0
      %1679 = vmatprep.subr.mxu0 0.0
      %1680 = vmatpush2.msra.mxu0 0.0
      %1681 = vmatprep.subr.mxu0 0.0
      %1682 = vmatpush2.msra.mxu0 0.0
      %1683 = vmatprep.subr.mxu0 0.0
      %1684 = vmatpush2.msra.mxu0 0.0
      %1685 = vmatprep.subr.mxu0 0.0
      %1686 = vmatpush2.msra.mxu0 0.0
      %1687 = vmatprep.subr.mxu0 0.0
      %1688 = vmatpush2.msra.mxu0 0.0
      %1689 = vmatprep.subr.mxu0 0.0
      %1690 = vmatpush2.msra.mxu0 0.0
      %1691 = vmatprep.subr.mxu0 0.0
      %1692 = vmatpush2.msra.mxu0 0.0
      %1693 = vmatprep.mubr.f32.mxu0 0.0
      %1694 = vmatmul.mubr.f32.gmra.mxu0 %v694
      %v1695 = vpop.f32.mrf.mxu0
      %v1696 = vadd.f32 %v615, %v1695
      %v1697 = vpop.f32.mrf.mxu0
      %1698 = vmatprep.mubr.f32.mxu0 0.0
      %1699 = vmatmul.mubr.f32.gmra.mxu0 %v697
      %v1700 = vpop.f32.mrf.mxu0
      %v1701 = vadd.f32 %v620, %v1700
      %v1702 = vpop.f32.mrf.mxu0
      %1703 = vmatprep.mubr.f32.mxu0 0.0
      %1704 = vmatmul.mubr.f32.gmra.mxu0 %v700
      %v1705 = vpop.f32.mrf.mxu0
      %v1706 = vadd.f32 %v625, %v1705
      %v1707 = vpop.f32.mrf.mxu0
      %1708 = vmatprep.mubr.f32.mxu0 0.0
      %1709 = vmatmul.mubr.f32.gmra.mxu0 %v703
      %v1710 = vpop.f32.mrf.mxu0
      %v1711 = vadd.f32 %v630, %v1710
      %v1712 = vpop.f32.mrf.mxu0
      %1713 = vmatprep.mubr.f32.mxu0 0.0
      %1714 = vmatmul.mubr.f32.gmra.mxu0 %v706
      %v1715 = vpop.f32.mrf.mxu0
      %v1716 = vadd.f32 %v635, %v1715
      %v1717 = vpop.f32.mrf.mxu0
      %1718 = vmatprep.mubr.f32.mxu0 0.0
      %1719 = vmatmul.mubr.f32.gmra.mxu0 %v709
      %v1720 = vpop.f32.mrf.mxu0
      %v1721 = vadd.f32 %v640, %v1720
      %v1722 = vpop.f32.mrf.mxu0
      %1723 = vmatprep.mubr.f32.mxu0 0.0
      %1724 = vmatmul.mubr.f32.gmra.mxu0 %v712
      %v1725 = vpop.f32.mrf.mxu0
      %v1726 = vadd.f32 %v645, %v1725
      %v1727 = vpop.f32.mrf.mxu0
      %1728 = vmatprep.mubr.f32.mxu0 0.0
      %1729 = vmatmul.mubr.f32.gmra.mxu0 %v715
      %v1730 = vpop.f32.mrf.mxu0
      %v1731 = vadd.f32 %v650, %v1730
      %v1732 = vpop.f32.mrf.mxu0
      %1733 = vmatprep.mubr.f32.mxu0 0.0
      %1734 = vmatmul.mubr.f32.gmra.mxu0 %v718
      %v1735 = vpop.f32.mrf.mxu0
      %v1736 = vadd.f32 %v655, %v1735
      %v1737 = vpop.f32.mrf.mxu0
      %1738 = vmatprep.mubr.f32.mxu0 0.0
      %1739 = vmatmul.mubr.f32.gmra.mxu0 %v721
      %v1740 = vpop.f32.mrf.mxu0
      %v1741 = vadd.f32 %v660, %v1740
      %v1742 = vpop.f32.mrf.mxu0
      %1743 = vmatprep.mubr.f32.mxu0 0.0
      %1744 = vmatmul.mubr.f32.gmra.mxu0 %v724
      %v1745 = vpop.f32.mrf.mxu0
      %v1746 = vadd.f32 %v665, %v1745
      %v1747 = vpop.f32.mrf.mxu0
      %1748 = vmatprep.mubr.f32.mxu0 0.0
      %1749 = vmatmul.mubr.f32.gmra.mxu0 %v727
      %v1750 = vpop.f32.mrf.mxu0
      %v1751 = vadd.f32 %v670, %v1750
      %v1752 = vpop.f32.mrf.mxu0
      %1753 = vmatprep.mubr.f32.mxu0 0.0
      %1754 = vmatmul.mubr.f32.gmra.mxu0 %v730
      %v1755 = vpop.f32.mrf.mxu0
      %v1756 = vadd.f32 %v675, %v1755
      %v1757 = vpop.f32.mrf.mxu0
      %1758 = vmatprep.mubr.f32.mxu0 0.0
      %1759 = vmatmul.mubr.f32.gmra.mxu0 %v733
      %v1760 = vpop.f32.mrf.mxu0
      %v1761 = vadd.f32 %v680, %v1760
      %v1762 = vpop.f32.mrf.mxu0
      %1763 = vmatprep.mubr.f32.mxu0 0.0
      %1764 = vmatmul.mubr.f32.gmra.mxu0 %v736
      %v1765 = vpop.f32.mrf.mxu0
      %v1766 = vadd.f32 %v685, %v1765
      %v1767 = vpop.f32.mrf.mxu0
      %1768 = vmatprep.mubr.f32.mxu0 0.0
      %1769 = vmatmul.mubr.f32.gmra.mxu0 %v739
      %v1770 = vpop.f32.mrf.mxu0
      %v1771 = vadd.f32 %v690, %v1770
      %v1772 = vpop.f32.mrf.mxu0
      %1773 = vdwg.mxu0
      %v1774 = vxor.u32 %v1696, 2147483648
      %v1775 = vxor.u32 %v1701, 2147483648
      %v1776 = vxor.u32 %v1706, 2147483648
      %v1777 = vxor.u32 %v1711, 2147483648
      %v1778 = vxor.u32 %v1716, 2147483648
      %v1779 = vxor.u32 %v1721, 2147483648
      %v1780 = vxor.u32 %v1726, 2147483648
      %v1781 = vxor.u32 %v1731, 2147483648
      %v1782 = vmul.f32 %v1774, 1.442695
      %v1783 = vpow.pop %v1782
      %v1784 = vmul.f32 %v1775, 1.442695
      %v1785 = vpow.pop %v1784
      %v1786 = vmul.f32 %v1776, 1.442695
      %v1787 = vpow.pop %v1786
      %v1788 = vmul.f32 %v1777, 1.442695
      %v1789 = vpow.pop %v1788
      %v1790 = vmul.f32 %v1778, 1.442695
      %v1791 = vpow.pop %v1790
      %v1792 = vmul.f32 %v1779, 1.442695
      %v1793 = vpow.pop %v1792
      %v1794 = vmul.f32 %v1780, 1.442695
      %v1795 = vpow.pop %v1794
      %v1796 = vmul.f32 %v1781, 1.442695
      %v1797 = vpow.pop %v1796
      %v1798 = vadd.f32 %v1783, 1.0
      %v1799 = vadd.f32 %v1785, 1.0
      %v1800 = vadd.f32 %v1787, 1.0
      %v1801 = vadd.f32 %v1789, 1.0
      %v1802 = vadd.f32 %v1791, 1.0
      %v1803 = vadd.f32 %v1793, 1.0
      %v1804 = vadd.f32 %v1795, 1.0
      %v1805 = vadd.f32 %v1797, 1.0
      %v1806 = vrcp.pop %v1798
      %v1807 = vmul.f32 1.0, %v1806
      %v1808 = vrcp.pop %v1799
      %v1809 = vmul.f32 1.0, %v1808
      %v1810 = vrcp.pop %v1800
      %v1811 = vmul.f32 1.0, %v1810
      %v1812 = vrcp.pop %v1801
      %v1813 = vmul.f32 1.0, %v1812
      %v1814 = vrcp.pop %v1802
      %v1815 = vmul.f32 1.0, %v1814
      %v1816 = vrcp.pop %v1803
      %v1817 = vmul.f32 1.0, %v1816
      %v1818 = vrcp.pop %v1804
      %v1819 = vmul.f32 1.0, %v1818
      %v1820 = vrcp.pop %v1805
      %v1821 = vmul.f32 1.0, %v1820
      %v1822 = vmul.f32 %v1807, %v1756
      %v1823 = vmul.f32 %v1809, %v1761
      %v1824 = vmul.f32 %v1811, %v1766
      %v1825 = vmul.f32 %v1813, %v1771
      %v1826 = vadd.f32 %v1736, %v1822
      %v1827 = vadd.f32 %v1741, %v1823
      %v1828 = vadd.f32 %v1746, %v1824
      %v1829 = vadd.f32 %v1751, %v1825
      %v1830 = vtanh.pop %v1826
      %v1831 = vtanh.pop %v1827
      %v1832 = vtanh.pop %v1828
      %v1833 = vtanh.pop %v1829
      %v1834 = vsub.f32 %v1398, %v1830
      %v1835 = vsub.f32 %v1399, %v1831
      %v1836 = vsub.f32 %v1400, %v1832
      %v1837 = vsub.f32 %v1401, %v1833
      %v1838 = vmul.f32 %v1815, %v1834
      %v1839 = vmul.f32 %v1817, %v1835
      %v1840 = vmul.f32 %v1819, %v1836
      %v1841 = vmul.f32 %v1821, %v1837
      %v1842 = vadd.f32 %v1830, %v1838
      %v1843 = vadd.f32 %v1831, %v1839
      %v1844 = vadd.f32 %v1832, %v1840
      %v1845 = vadd.f32 %v1833, %v1841
      %s1846 = scalar_lea.vmem %s262, 64
      %1847 = vst.msk [vmem:[%s1846] sm:$0xff] %vm958, %v1842
      %1848 = vst.msk [vmem:[%s1846 + $0x8] sm:$0xff] %vm958, %v1843
      %1849 = vst.msk [vmem:[%s1846 + $0x10] sm:$0xff] %vm958, %v1844
      %1850 = vst.msk [vmem:[%s1846 + $0x18] sm:$0xff] %vm958, %v1845
      %s1851 = scalar_lea.vmem %s252, 288
      %v1852 = vld [vmem:[%s1851] sm:$0xff]
      %v1853 = vld [vmem:[%s1851 + $0x8] sm:$0xff]
      %v1854 = vld [vmem:[%s1851 + $0x10] sm:$0xff]
      %v1855 = vld [vmem:[%s1851 + $0x18] sm:$0xff]
      %v1856 = vld [vmem:[%s1851 + $0x20] sm:$0xff]
      %v1857 = vld [vmem:[%s1851 + $0x28] sm:$0xff]
      %v1858 = vld [vmem:[%s1851 + $0x30] sm:$0xff]
      %v1859 = vld [vmem:[%s1851 + $0x38] sm:$0xff]
      %v1860 = vld [vmem:[%s1851 + $0x40] sm:$0xff]
      %v1861 = vld [vmem:[%s1851 + $0x48] sm:$0xff]
      %v1862 = vld [vmem:[%s1851 + $0x50] sm:$0xff]
      %v1863 = vld [vmem:[%s1851 + $0x58] sm:$0xff]
      %1864 = vmatprep.subr.mxu0 0.0
      %1865 = vmatpush1.msra.mxu0 0.0
      %1866 = vmatprep.subr.mxu0 0.0
      %1867 = vmatpush1.msra.mxu0 0.0
      %1868 = vmatprep.subr.mxu0 0.0
      %1869 = vmatpush1.msra.mxu0 0.0
      %1870 = vmatprep.subr.mxu0 0.0
      %1871 = vmatpush1.msra.mxu0 0.0
      %1872 = vmatprep.subr.mxu0 0.0
      %1873 = vmatpush1.msra.mxu0 0.0
      %1874 = vmatprep.subr.mxu0 0.0
      %1875 = vmatpush1.msra.mxu0 0.0
      %1876 = vmatprep.subr.mxu0 0.0
      %1877 = vmatpush1.msra.mxu0 0.0
      %1878 = vmatprep.subr.mxu0 0.0
      %1879 = vmatpush1.msra.mxu0 0.0
      %1880 = vmatprep.subr.mxu0 0.0
      %1881 = vmatpush1.msra.mxu0 0.0
      %1882 = vmatprep.subr.mxu0 0.0
      %1883 = vmatpush1.msra.mxu0 0.0
      %1884 = vmatprep.subr.mxu0 0.0
      %1885 = vmatpush1.msra.mxu0 0.0
      %1886 = vmatprep.subr.mxu0 0.0
      %1887 = vmatpush1.msra.mxu0 0.0
      %1888 = vmatprep.subr.mxu0 0.0
      %1889 = vmatpush1.msra.mxu0 %v1628
      %1890 = vmatprep.subr.mxu0 0.0
      %1891 = vmatpush1.msra.mxu0 %v1627
      %1892 = vmatprep.subr.mxu0 0.0
      %1893 = vmatpush1.msra.mxu0 %v1626
      %1894 = vmatprep.subr.mxu0 0.0
      %1895 = vmatpush1.msra.mxu0 %v1625
      %1896 = vmatprep.subr.mxu0 0.0
      %1897 = vmatpush2.msra.mxu0 0.0
      %1898 = vmatprep.subr.mxu0 0.0
      %1899 = vmatpush2.msra.mxu0 0.0
      %1900 = vmatprep.subr.mxu0 0.0
      %1901 = vmatpush2.msra.mxu0 0.0
      %1902 = vmatprep.subr.mxu0 0.0
      %1903 = vmatpush2.msra.mxu0 0.0
      %1904 = vmatprep.subr.mxu0 0.0
      %1905 = vmatpush2.msra.mxu0 0.0
      %1906 = vmatprep.subr.mxu0 0.0
      %1907 = vmatpush2.msra.mxu0 0.0
      %1908 = vmatprep.subr.mxu0 0.0
      %1909 = vmatpush2.msra.mxu0 0.0
      %1910 = vmatprep.subr.mxu0 0.0
      %1911 = vmatpush2.msra.mxu0 0.0
      %1912 = vmatprep.subr.mxu0 0.0
      %1913 = vmatpush2.msra.mxu0 0.0
      %1914 = vmatprep.subr.mxu0 0.0
      %1915 = vmatpush2.msra.mxu0 0.0
      %1916 = vmatprep.subr.mxu0 0.0
      %1917 = vmatpush2.msra.mxu0 0.0
      %1918 = vmatprep.subr.mxu0 0.0
      %1919 = vmatpush2.msra.mxu0 0.0
      %1920 = vmatprep.subr.mxu0 0.0
      %1921 = vmatpush2.msra.mxu0 0.0
      %1922 = vmatprep.subr.mxu0 0.0
      %1923 = vmatpush2.msra.mxu0 0.0
      %1924 = vmatprep.subr.mxu0 0.0
      %1925 = vmatpush2.msra.mxu0 0.0
      %1926 = vmatprep.subr.mxu0 0.0
      %1927 = vmatpush2.msra.mxu0 0.0
      %1928 = vmatprep.mubr.f32.mxu0 0.0
      %1929 = vmatmul.mubr.f32.gmra.mxu0 %v348
      %v1930 = vpop.f32.mrf.mxu0
      %v1931 = vadd.f32 0.0, %v1930
      %v1932 = vpop.f32.mrf.mxu0
      %1933 = vmatprep.mubr.f32.mxu0 0.0
      %1934 = vmatmul.mubr.f32.gmra.mxu0 %v351
      %v1935 = vpop.f32.mrf.mxu0
      %v1936 = vadd.f32 0.0, %v1935
      %v1937 = vpop.f32.mrf.mxu0
      %1938 = vmatprep.mubr.f32.mxu0 0.0
      %1939 = vmatmul.mubr.f32.gmra.mxu0 %v354
      %v1940 = vpop.f32.mrf.mxu0
      %v1941 = vadd.f32 0.0, %v1940
      %v1942 = vpop.f32.mrf.mxu0
      %1943 = vmatprep.mubr.f32.mxu0 0.0
      %1944 = vmatmul.mubr.f32.gmra.mxu0 %v357
      %v1945 = vpop.f32.mrf.mxu0
      %v1946 = vadd.f32 0.0, %v1945
      %v1947 = vpop.f32.mrf.mxu0
      %1948 = vmatprep.mubr.f32.mxu0 0.0
      %1949 = vmatmul.mubr.f32.gmra.mxu0 %v360
      %v1950 = vpop.f32.mrf.mxu0
      %v1951 = vadd.f32 0.0, %v1950
      %v1952 = vpop.f32.mrf.mxu0
      %1953 = vmatprep.mubr.f32.mxu0 0.0
      %1954 = vmatmul.mubr.f32.gmra.mxu0 %v363
      %v1955 = vpop.f32.mrf.mxu0
      %v1956 = vadd.f32 0.0, %v1955
      %v1957 = vpop.f32.mrf.mxu0
      %1958 = vmatprep.mubr.f32.mxu0 0.0
      %1959 = vmatmul.mubr.f32.gmra.mxu0 %v366
      %v1960 = vpop.f32.mrf.mxu0
      %v1961 = vadd.f32 0.0, %v1960
      %v1962 = vpop.f32.mrf.mxu0
      %1963 = vmatprep.mubr.f32.mxu0 0.0
      %1964 = vmatmul.mubr.f32.gmra.mxu0 %v369
      %v1965 = vpop.f32.mrf.mxu0
      %v1966 = vadd.f32 0.0, %v1965
      %v1967 = vpop.f32.mrf.mxu0
      %1968 = vmatprep.mubr.f32.mxu0 0.0
      %1969 = vmatmul.mubr.f32.gmra.mxu0 %v372
      %v1970 = vpop.f32.mrf.mxu0
      %v1971 = vadd.f32 0.0, %v1970
      %v1972 = vpop.f32.mrf.mxu0
      %1973 = vmatprep.mubr.f32.mxu0 0.0
      %1974 = vmatmul.mubr.f32.gmra.mxu0 %v375
      %v1975 = vpop.f32.mrf.mxu0
      %v1976 = vadd.f32 0.0, %v1975
      %v1977 = vpop.f32.mrf.mxu0
      %1978 = vmatprep.mubr.f32.mxu0 0.0
      %1979 = vmatmul.mubr.f32.gmra.mxu0 %v378
      %v1980 = vpop.f32.mrf.mxu0
      %v1981 = vadd.f32 0.0, %v1980
      %v1982 = vpop.f32.mrf.mxu0
      %1983 = vmatprep.mubr.f32.mxu0 0.0
      %1984 = vmatmul.mubr.f32.gmra.mxu0 %v381
      %v1985 = vpop.f32.mrf.mxu0
      %v1986 = vadd.f32 0.0, %v1985
      %v1987 = vpop.f32.mrf.mxu0
      %1988 = vdwg.mxu0
      %v1989 = vadd.f32 %v1852, %v1931
      %v1990 = vadd.f32 %v1853, %v1936
      %v1991 = vadd.f32 %v1854, %v1941
      %v1992 = vadd.f32 %v1855, %v1946
      %v1993 = vadd.f32 %v1856, %v1951
      %v1994 = vadd.f32 %v1857, %v1956
      %v1995 = vadd.f32 %v1858, %v1961
      %v1996 = vadd.f32 %v1859, %v1966
      %v1997 = vxor.u32 %v1989, 2147483648
      %v1998 = vxor.u32 %v1990, 2147483648
      %v1999 = vxor.u32 %v1991, 2147483648
      %v2000 = vxor.u32 %v1992, 2147483648
      %v2001 = vxor.u32 %v1993, 2147483648
      %v2002 = vxor.u32 %v1994, 2147483648
      %v2003 = vxor.u32 %v1995, 2147483648
      %v2004 = vxor.u32 %v1996, 2147483648
      %v2005 = vmul.f32 %v1997, 1.442695
      %v2006 = vpow.pop %v2005
      %v2007 = vmul.f32 %v1998, 1.442695
      %v2008 = vpow.pop %v2007
      %v2009 = vmul.f32 %v1999, 1.442695
      %v2010 = vpow.pop %v2009
      %v2011 = vmul.f32 %v2000, 1.442695
      %v2012 = vpow.pop %v2011
      %v2013 = vmul.f32 %v2001, 1.442695
      %v2014 = vpow.pop %v2013
      %v2015 = vmul.f32 %v2002, 1.442695
      %v2016 = vpow.pop %v2015
      %v2017 = vmul.f32 %v2003, 1.442695
      %v2018 = vpow.pop %v2017
      %v2019 = vmul.f32 %v2004, 1.442695
      %v2020 = vpow.pop %v2019
      %v2021 = vadd.f32 %v2006, 1.0
      %v2022 = vadd.f32 %v2008, 1.0
      %v2023 = vadd.f32 %v2010, 1.0
      %v2024 = vadd.f32 %v2012, 1.0
      %v2025 = vadd.f32 %v2014, 1.0
      %v2026 = vadd.f32 %v2016, 1.0
      %v2027 = vadd.f32 %v2018, 1.0
      %v2028 = vadd.f32 %v2020, 1.0
      %v2029 = vrcp.pop %v2021
      %v2030 = vmul.f32 1.0, %v2029
      %v2031 = vrcp.pop %v2022
      %v2032 = vmul.f32 1.0, %v2031
      %v2033 = vrcp.pop %v2023
      %v2034 = vmul.f32 1.0, %v2033
      %v2035 = vrcp.pop %v2024
      %v2036 = vmul.f32 1.0, %v2035
      %v2037 = vrcp.pop %v2025
      %v2038 = vmul.f32 1.0, %v2037
      %v2039 = vrcp.pop %v2026
      %v2040 = vmul.f32 1.0, %v2039
      %v2041 = vrcp.pop %v2027
      %v2042 = vmul.f32 1.0, %v2041
      %v2043 = vrcp.pop %v2028
      %v2044 = vmul.f32 1.0, %v2043
      %v2045 = vadd.f32 %v1971, %v567
      %v2046 = vadd.f32 %v1976, %v572
      %v2047 = vadd.f32 %v1981, %v577
      %v2048 = vadd.f32 %v1986, %v582
      %v2049 = vmul.f32 %v2030, %v2045
      %v2050 = vmul.f32 %v2032, %v2046
      %v2051 = vmul.f32 %v2034, %v2047
      %v2052 = vmul.f32 %v2036, %v2048
      %v2053 = vadd.f32 %v1860, %v2049
      %v2054 = vadd.f32 %v1861, %v2050
      %v2055 = vadd.f32 %v1862, %v2051
      %v2056 = vadd.f32 %v1863, %v2052
      %v2057 = vtanh.pop %v2053
      %v2058 = vtanh.pop %v2054
      %v2059 = vtanh.pop %v2055
      %v2060 = vtanh.pop %v2056
      %v2061 = vsub.f32 %v1625, %v2057
      %v2062 = vsub.f32 %v1626, %v2058
      %v2063 = vsub.f32 %v1627, %v2059
      %v2064 = vsub.f32 %v1628, %v2060
      %v2065 = vmul.f32 %v2038, %v2061
      %v2066 = vmul.f32 %v2040, %v2062
      %v2067 = vmul.f32 %v2042, %v2063
      %v2068 = vmul.f32 %v2044, %v2064
      %v2069 = vadd.f32 %v2057, %v2065
      %v2070 = vadd.f32 %v2058, %v2066
      %v2071 = vadd.f32 %v2059, %v2067
      %v2072 = vadd.f32 %v2060, %v2068
      %2073 = vmatprep.subr.mxu0 0.0
      %2074 = vmatpush1.msra.mxu0 0.0
      %2075 = vmatprep.subr.mxu0 0.0
      %2076 = vmatpush1.msra.mxu0 0.0
      %2077 = vmatprep.subr.mxu0 0.0
      %2078 = vmatpush1.msra.mxu0 0.0
      %2079 = vmatprep.subr.mxu0 0.0
      %2080 = vmatpush1.msra.mxu0 0.0
      %2081 = vmatprep.subr.mxu0 0.0
      %2082 = vmatpush1.msra.mxu0 0.0
      %2083 = vmatprep.subr.mxu0 0.0
      %2084 = vmatpush1.msra.mxu0 0.0
      %2085 = vmatprep.subr.mxu0 0.0
      %2086 = vmatpush1.msra.mxu0 0.0
      %2087 = vmatprep.subr.mxu0 0.0
      %2088 = vmatpush1.msra.mxu0 0.0
      %2089 = vmatprep.subr.mxu0 0.0
      %2090 = vmatpush1.msra.mxu0 %v1845
      %2091 = vmatprep.subr.mxu0 0.0
      %2092 = vmatpush1.msra.mxu0 %v1844
      %2093 = vmatprep.subr.mxu0 0.0
      %2094 = vmatpush1.msra.mxu0 %v1843
      %2095 = vmatprep.subr.mxu0 0.0
      %2096 = vmatpush1.msra.mxu0 %v1842
      %2097 = vmatprep.subr.mxu0 0.0
      %2098 = vmatpush1.msra.mxu0 %v2072
      %2099 = vmatprep.subr.mxu0 0.0
      %2100 = vmatpush1.msra.mxu0 %v2071
      %2101 = vmatprep.subr.mxu0 0.0
      %2102 = vmatpush1.msra.mxu0 %v2070
      %2103 = vmatprep.subr.mxu0 0.0
      %2104 = vmatpush1.msra.mxu0 %v2069
      %2105 = vmatprep.subr.mxu0 0.0
      %2106 = vmatpush2.msra.mxu0 0.0
      %2107 = vmatprep.subr.mxu0 0.0
      %2108 = vmatpush2.msra.mxu0 0.0
      %2109 = vmatprep.subr.mxu0 0.0
      %2110 = vmatpush2.msra.mxu0 0.0
      %2111 = vmatprep.subr.mxu0 0.0
      %2112 = vmatpush2.msra.mxu0 0.0
      %2113 = vmatprep.subr.mxu0 0.0
      %2114 = vmatpush2.msra.mxu0 0.0
      %2115 = vmatprep.subr.mxu0 0.0
      %2116 = vmatpush2.msra.mxu0 0.0
      %2117 = vmatprep.subr.mxu0 0.0
      %2118 = vmatpush2.msra.mxu0 0.0
      %2119 = vmatprep.subr.mxu0 0.0
      %2120 = vmatpush2.msra.mxu0 0.0
      %2121 = vmatprep.subr.mxu0 0.0
      %2122 = vmatpush2.msra.mxu0 0.0
      %2123 = vmatprep.subr.mxu0 0.0
      %2124 = vmatpush2.msra.mxu0 0.0
      %2125 = vmatprep.subr.mxu0 0.0
      %2126 = vmatpush2.msra.mxu0 0.0
      %2127 = vmatprep.subr.mxu0 0.0
      %2128 = vmatpush2.msra.mxu0 0.0
      %2129 = vmatprep.subr.mxu0 0.0
      %2130 = vmatpush2.msra.mxu0 0.0
      %2131 = vmatprep.subr.mxu0 0.0
      %2132 = vmatpush2.msra.mxu0 0.0
      %2133 = vmatprep.subr.mxu0 0.0
      %2134 = vmatpush2.msra.mxu0 0.0
      %2135 = vmatprep.subr.mxu0 0.0
      %2136 = vmatpush2.msra.mxu0 0.0
      %2137 = vmatprep.mubr.f32.mxu0 0.0
      %2138 = vmatmul.mubr.f32.gmra.mxu0 %v694
      %v2139 = vpop.f32.mrf.mxu0
      %v2140 = vadd.f32 %v615, %v2139
      %v2141 = vpop.f32.mrf.mxu0
      %2142 = vmatprep.mubr.f32.mxu0 0.0
      %2143 = vmatmul.mubr.f32.gmra.mxu0 %v697
      %v2144 = vpop.f32.mrf.mxu0
      %v2145 = vadd.f32 %v620, %v2144
      %v2146 = vpop.f32.mrf.mxu0
      %2147 = vmatprep.mubr.f32.mxu0 0.0
      %2148 = vmatmul.mubr.f32.gmra.mxu0 %v700
      %v2149 = vpop.f32.mrf.mxu0
      %v2150 = vadd.f32 %v625, %v2149
      %v2151 = vpop.f32.mrf.mxu0
      %2152 = vmatprep.mubr.f32.mxu0 0.0
      %2153 = vmatmul.mubr.f32.gmra.mxu0 %v703
      %v2154 = vpop.f32.mrf.mxu0
      %v2155 = vadd.f32 %v630, %v2154
      %v2156 = vpop.f32.mrf.mxu0
      %2157 = vmatprep.mubr.f32.mxu0 0.0
      %2158 = vmatmul.mubr.f32.gmra.mxu0 %v706
      %v2159 = vpop.f32.mrf.mxu0
      %v2160 = vadd.f32 %v635, %v2159
      %v2161 = vpop.f32.mrf.mxu0
      %2162 = vmatprep.mubr.f32.mxu0 0.0
      %2163 = vmatmul.mubr.f32.gmra.mxu0 %v709
      %v2164 = vpop.f32.mrf.mxu0
      %v2165 = vadd.f32 %v640, %v2164
      %v2166 = vpop.f32.mrf.mxu0
      %2167 = vmatprep.mubr.f32.mxu0 0.0
      %2168 = vmatmul.mubr.f32.gmra.mxu0 %v712
      %v2169 = vpop.f32.mrf.mxu0
      %v2170 = vadd.f32 %v645, %v2169
      %v2171 = vpop.f32.mrf.mxu0
      %2172 = vmatprep.mubr.f32.mxu0 0.0
      %2173 = vmatmul.mubr.f32.gmra.mxu0 %v715
      %v2174 = vpop.f32.mrf.mxu0
      %v2175 = vadd.f32 %v650, %v2174
      %v2176 = vpop.f32.mrf.mxu0
      %2177 = vmatprep.mubr.f32.mxu0 0.0
      %2178 = vmatmul.mubr.f32.gmra.mxu0 %v718
      %v2179 = vpop.f32.mrf.mxu0
      %v2180 = vadd.f32 %v655, %v2179
      %v2181 = vpop.f32.mrf.mxu0
      %2182 = vmatprep.mubr.f32.mxu0 0.0
      %2183 = vmatmul.mubr.f32.gmra.mxu0 %v721
      %v2184 = vpop.f32.mrf.mxu0
      %v2185 = vadd.f32 %v660, %v2184
      %v2186 = vpop.f32.mrf.mxu0
      %2187 = vmatprep.mubr.f32.mxu0 0.0
      %2188 = vmatmul.mubr.f32.gmra.mxu0 %v724
      %v2189 = vpop.f32.mrf.mxu0
      %v2190 = vadd.f32 %v665, %v2189
      %v2191 = vpop.f32.mrf.mxu0
      %2192 = vmatprep.mubr.f32.mxu0 0.0
      %2193 = vmatmul.mubr.f32.gmra.mxu0 %v727
      %v2194 = vpop.f32.mrf.mxu0
      %v2195 = vadd.f32 %v670, %v2194
      %v2196 = vpop.f32.mrf.mxu0
      %2197 = vmatprep.mubr.f32.mxu0 0.0
      %2198 = vmatmul.mubr.f32.gmra.mxu0 %v730
      %v2199 = vpop.f32.mrf.mxu0
      %v2200 = vadd.f32 %v675, %v2199
      %v2201 = vpop.f32.mrf.mxu0
      %2202 = vmatprep.mubr.f32.mxu0 0.0
      %2203 = vmatmul.mubr.f32.gmra.mxu0 %v733
      %v2204 = vpop.f32.mrf.mxu0
      %v2205 = vadd.f32 %v680, %v2204
      %v2206 = vpop.f32.mrf.mxu0
      %2207 = vmatprep.mubr.f32.mxu0 0.0
      %2208 = vmatmul.mubr.f32.gmra.mxu0 %v736
      %v2209 = vpop.f32.mrf.mxu0
      %v2210 = vadd.f32 %v685, %v2209
      %v2211 = vpop.f32.mrf.mxu0
      %2212 = vmatprep.mubr.f32.mxu0 0.0
      %2213 = vmatmul.mubr.f32.gmra.mxu0 %v739
      %v2214 = vpop.f32.mrf.mxu0
      %v2215 = vadd.f32 %v690, %v2214
      %v2216 = vpop.f32.mrf.mxu0
      %2217 = vdwg.mxu0
      %v2218 = vxor.u32 %v2140, 2147483648
      %v2219 = vxor.u32 %v2145, 2147483648
      %v2220 = vxor.u32 %v2150, 2147483648
      %v2221 = vxor.u32 %v2155, 2147483648
      %v2222 = vxor.u32 %v2160, 2147483648
      %v2223 = vxor.u32 %v2165, 2147483648
      %v2224 = vxor.u32 %v2170, 2147483648
      %v2225 = vxor.u32 %v2175, 2147483648
      %v2226 = vmul.f32 %v2218, 1.442695
      %v2227 = vpow.pop %v2226
      %v2228 = vmul.f32 %v2219, 1.442695
      %v2229 = vpow.pop %v2228
      %v2230 = vmul.f32 %v2220, 1.442695
      %v2231 = vpow.pop %v2230
      %v2232 = vmul.f32 %v2221, 1.442695
      %v2233 = vpow.pop %v2232
      %v2234 = vmul.f32 %v2222, 1.442695
      %v2235 = vpow.pop %v2234
      %v2236 = vmul.f32 %v2223, 1.442695
      %v2237 = vpow.pop %v2236
      %v2238 = vmul.f32 %v2224, 1.442695
      %v2239 = vpow.pop %v2238
      %v2240 = vmul.f32 %v2225, 1.442695
      %v2241 = vpow.pop %v2240
      %v2242 = vadd.f32 %v2227, 1.0
      %v2243 = vadd.f32 %v2229, 1.0
      %v2244 = vadd.f32 %v2231, 1.0
      %v2245 = vadd.f32 %v2233, 1.0
      %v2246 = vadd.f32 %v2235, 1.0
      %v2247 = vadd.f32 %v2237, 1.0
      %v2248 = vadd.f32 %v2239, 1.0
      %v2249 = vadd.f32 %v2241, 1.0
      %v2250 = vrcp.pop %v2242
      %v2251 = vmul.f32 1.0, %v2250
      %v2252 = vrcp.pop %v2243
      %v2253 = vmul.f32 1.0, %v2252
      %v2254 = vrcp.pop %v2244
      %v2255 = vmul.f32 1.0, %v2254
      %v2256 = vrcp.pop %v2245
      %v2257 = vmul.f32 1.0, %v2256
      %v2258 = vrcp.pop %v2246
      %v2259 = vmul.f32 1.0, %v2258
      %v2260 = vrcp.pop %v2247
      %v2261 = vmul.f32 1.0, %v2260
      %v2262 = vrcp.pop %v2248
      %v2263 = vmul.f32 1.0, %v2262
      %v2264 = vrcp.pop %v2249
      %v2265 = vmul.f32 1.0, %v2264
      %v2266 = vmul.f32 %v2251, %v2200
      %v2267 = vmul.f32 %v2253, %v2205
      %v2268 = vmul.f32 %v2255, %v2210
      %v2269 = vmul.f32 %v2257, %v2215
      %v2270 = vadd.f32 %v2180, %v2266
      %v2271 = vadd.f32 %v2185, %v2267
      %v2272 = vadd.f32 %v2190, %v2268
      %v2273 = vadd.f32 %v2195, %v2269
      %v2274 = vtanh.pop %v2270
      %v2275 = vtanh.pop %v2271
      %v2276 = vtanh.pop %v2272
      %v2277 = vtanh.pop %v2273
      %v2278 = vsub.f32 %v1842, %v2274
      %v2279 = vsub.f32 %v1843, %v2275
      %v2280 = vsub.f32 %v1844, %v2276
      %v2281 = vsub.f32 %v1845, %v2277
      %v2282 = vmul.f32 %v2259, %v2278
      %v2283 = vmul.f32 %v2261, %v2279
      %v2284 = vmul.f32 %v2263, %v2280
      %v2285 = vmul.f32 %v2265, %v2281
      %v2286 = vadd.f32 %v2274, %v2282
      %v2287 = vadd.f32 %v2275, %v2283
      %v2288 = vadd.f32 %v2276, %v2284
      %v2289 = vadd.f32 %v2277, %v2285
      %s2290 = scalar_lea.vmem %s262, 96
      %2291 = vst.msk [vmem:[%s2290] sm:$0xff] %vm958, %v2286
      %2292 = vst.msk [vmem:[%s2290 + $0x8] sm:$0xff] %vm958, %v2287
      %2293 = vst.msk [vmem:[%s2290 + $0x10] sm:$0xff] %vm958, %v2288
      %2294 = vst.msk [vmem:[%s2290 + $0x18] sm:$0xff] %vm958, %v2289
      %s2295 = scalar_lea.vmem %s252, 384
      %v2296 = vld [vmem:[%s2295] sm:$0xff]
      %v2297 = vld [vmem:[%s2295 + $0x8] sm:$0xff]
      %v2298 = vld [vmem:[%s2295 + $0x10] sm:$0xff]
      %v2299 = vld [vmem:[%s2295 + $0x18] sm:$0xff]
      %v2300 = vld [vmem:[%s2295 + $0x20] sm:$0xff]
      %v2301 = vld [vmem:[%s2295 + $0x28] sm:$0xff]
      %v2302 = vld [vmem:[%s2295 + $0x30] sm:$0xff]
      %v2303 = vld [vmem:[%s2295 + $0x38] sm:$0xff]
      %v2304 = vld [vmem:[%s2295 + $0x40] sm:$0xff]
      %v2305 = vld [vmem:[%s2295 + $0x48] sm:$0xff]
      %v2306 = vld [vmem:[%s2295 + $0x50] sm:$0xff]
      %v2307 = vld [vmem:[%s2295 + $0x58] sm:$0xff]
      %2308 = vmatprep.subr.mxu0 0.0
      %2309 = vmatpush1.msra.mxu0 0.0
      %2310 = vmatprep.subr.mxu0 0.0
      %2311 = vmatpush1.msra.mxu0 0.0
      %2312 = vmatprep.subr.mxu0 0.0
      %2313 = vmatpush1.msra.mxu0 0.0
      %2314 = vmatprep.subr.mxu0 0.0
      %2315 = vmatpush1.msra.mxu0 0.0
      %2316 = vmatprep.subr.mxu0 0.0
      %2317 = vmatpush1.msra.mxu0 0.0
      %2318 = vmatprep.subr.mxu0 0.0
      %2319 = vmatpush1.msra.mxu0 0.0
      %2320 = vmatprep.subr.mxu0 0.0
      %2321 = vmatpush1.msra.mxu0 0.0
      %2322 = vmatprep.subr.mxu0 0.0
      %2323 = vmatpush1.msra.mxu0 0.0
      %2324 = vmatprep.subr.mxu0 0.0
      %2325 = vmatpush1.msra.mxu0 0.0
      %2326 = vmatprep.subr.mxu0 0.0
      %2327 = vmatpush1.msra.mxu0 0.0
      %2328 = vmatprep.subr.mxu0 0.0
      %2329 = vmatpush1.msra.mxu0 0.0
      %2330 = vmatprep.subr.mxu0 0.0
      %2331 = vmatpush1.msra.mxu0 0.0
      %2332 = vmatprep.subr.mxu0 0.0
      %2333 = vmatpush1.msra.mxu0 %v2072
      %2334 = vmatprep.subr.mxu0 0.0
      %2335 = vmatpush1.msra.mxu0 %v2071
      %2336 = vmatprep.subr.mxu0 0.0
      %2337 = vmatpush1.msra.mxu0 %v2070
      %2338 = vmatprep.subr.mxu0 0.0
      %2339 = vmatpush1.msra.mxu0 %v2069
      %2340 = vmatprep.subr.mxu0 0.0
      %2341 = vmatpush2.msra.mxu0 0.0
      %2342 = vmatprep.subr.mxu0 0.0
      %2343 = vmatpush2.msra.mxu0 0.0
      %2344 = vmatprep.subr.mxu0 0.0
      %2345 = vmatpush2.msra.mxu0 0.0
      %2346 = vmatprep.subr.mxu0 0.0
      %2347 = vmatpush2.msra.mxu0 0.0
      %2348 = vmatprep.subr.mxu0 0.0
      %2349 = vmatpush2.msra.mxu0 0.0
      %2350 = vmatprep.subr.mxu0 0.0
      %2351 = vmatpush2.msra.mxu0 0.0
      %2352 = vmatprep.subr.mxu0 0.0
      %2353 = vmatpush2.msra.mxu0 0.0
      %2354 = vmatprep.subr.mxu0 0.0
      %2355 = vmatpush2.msra.mxu0 0.0
      %2356 = vmatprep.subr.mxu0 0.0
      %2357 = vmatpush2.msra.mxu0 0.0
      %2358 = vmatprep.subr.mxu0 0.0
      %2359 = vmatpush2.msra.mxu0 0.0
      %2360 = vmatprep.subr.mxu0 0.0
      %2361 = vmatpush2.msra.mxu0 0.0
      %2362 = vmatprep.subr.mxu0 0.0
      %2363 = vmatpush2.msra.mxu0 0.0
      %2364 = vmatprep.subr.mxu0 0.0
      %2365 = vmatpush2.msra.mxu0 0.0
      %2366 = vmatprep.subr.mxu0 0.0
      %2367 = vmatpush2.msra.mxu0 0.0
      %2368 = vmatprep.subr.mxu0 0.0
      %2369 = vmatpush2.msra.mxu0 0.0
      %2370 = vmatprep.subr.mxu0 0.0
      %2371 = vmatpush2.msra.mxu0 0.0
      %2372 = vmatprep.mubr.f32.mxu0 0.0
      %2373 = vmatmul.mubr.f32.gmra.mxu0 %v348
      %v2374 = vpop.f32.mrf.mxu0
      %v2375 = vadd.f32 0.0, %v2374
      %v2376 = vpop.f32.mrf.mxu0
      %2377 = vmatprep.mubr.f32.mxu0 0.0
      %2378 = vmatmul.mubr.f32.gmra.mxu0 %v351
      %v2379 = vpop.f32.mrf.mxu0
      %v2380 = vadd.f32 0.0, %v2379
      %v2381 = vpop.f32.mrf.mxu0
      %2382 = vmatprep.mubr.f32.mxu0 0.0
      %2383 = vmatmul.mubr.f32.gmra.mxu0 %v354
      %v2384 = vpop.f32.mrf.mxu0
      %v2385 = vadd.f32 0.0, %v2384
      %v2386 = vpop.f32.mrf.mxu0
      %2387 = vmatprep.mubr.f32.mxu0 0.0
      %2388 = vmatmul.mubr.f32.gmra.mxu0 %v357
      %v2389 = vpop.f32.mrf.mxu0
      %v2390 = vadd.f32 0.0, %v2389
      %v2391 = vpop.f32.mrf.mxu0
      %2392 = vmatprep.mubr.f32.mxu0 0.0
      %2393 = vmatmul.mubr.f32.gmra.mxu0 %v360
      %v2394 = vpop.f32.mrf.mxu0
      %v2395 = vadd.f32 0.0, %v2394
      %v2396 = vpop.f32.mrf.mxu0
      %2397 = vmatprep.mubr.f32.mxu0 0.0
      %2398 = vmatmul.mubr.f32.gmra.mxu0 %v363
      %v2399 = vpop.f32.mrf.mxu0
      %v2400 = vadd.f32 0.0, %v2399
      %v2401 = vpop.f32.mrf.mxu0
      %2402 = vmatprep.mubr.f32.mxu0 0.0
      %2403 = vmatmul.mubr.f32.gmra.mxu0 %v366
      %v2404 = vpop.f32.mrf.mxu0
      %v2405 = vadd.f32 0.0, %v2404
      %v2406 = vpop.f32.mrf.mxu0
      %2407 = vmatprep.mubr.f32.mxu0 0.0
      %2408 = vmatmul.mubr.f32.gmra.mxu0 %v369
      %v2409 = vpop.f32.mrf.mxu0
      %v2410 = vadd.f32 0.0, %v2409
      %v2411 = vpop.f32.mrf.mxu0
      %2412 = vmatprep.mubr.f32.mxu0 0.0
      %2413 = vmatmul.mubr.f32.gmra.mxu0 %v372
      %v2414 = vpop.f32.mrf.mxu0
      %v2415 = vadd.f32 0.0, %v2414
      %v2416 = vpop.f32.mrf.mxu0
      %2417 = vmatprep.mubr.f32.mxu0 0.0
      %2418 = vmatmul.mubr.f32.gmra.mxu0 %v375
      %v2419 = vpop.f32.mrf.mxu0
      %v2420 = vadd.f32 0.0, %v2419
      %v2421 = vpop.f32.mrf.mxu0
      %2422 = vmatprep.mubr.f32.mxu0 0.0
      %2423 = vmatmul.mubr.f32.gmra.mxu0 %v378
      %v2424 = vpop.f32.mrf.mxu0
      %v2425 = vadd.f32 0.0, %v2424
      %v2426 = vpop.f32.mrf.mxu0
      %2427 = vmatprep.mubr.f32.mxu0 0.0
      %2428 = vmatmul.mubr.f32.gmra.mxu0 %v381
      %v2429 = vpop.f32.mrf.mxu0
      %v2430 = vadd.f32 0.0, %v2429
      %v2431 = vpop.f32.mrf.mxu0
      %2432 = vdwg.mxu0
      %v2433 = vadd.f32 %v2296, %v2375
      %v2434 = vadd.f32 %v2297, %v2380
      %v2435 = vadd.f32 %v2298, %v2385
      %v2436 = vadd.f32 %v2299, %v2390
      %v2437 = vadd.f32 %v2300, %v2395
      %v2438 = vadd.f32 %v2301, %v2400
      %v2439 = vadd.f32 %v2302, %v2405
      %v2440 = vadd.f32 %v2303, %v2410
      %v2441 = vxor.u32 %v2433, 2147483648
      %v2442 = vxor.u32 %v2434, 2147483648
      %v2443 = vxor.u32 %v2435, 2147483648
      %v2444 = vxor.u32 %v2436, 2147483648
      %v2445 = vxor.u32 %v2437, 2147483648
      %v2446 = vxor.u32 %v2438, 2147483648
      %v2447 = vxor.u32 %v2439, 2147483648
      %v2448 = vxor.u32 %v2440, 2147483648
      %v2449 = vmul.f32 %v2441, 1.442695
      %v2450 = vpow.pop %v2449
      %v2451 = vmul.f32 %v2442, 1.442695
      %v2452 = vpow.pop %v2451
      %v2453 = vmul.f32 %v2443, 1.442695
      %v2454 = vpow.pop %v2453
      %v2455 = vmul.f32 %v2444, 1.442695
      %v2456 = vpow.pop %v2455
      %v2457 = vmul.f32 %v2445, 1.442695
      %v2458 = vpow.pop %v2457
      %v2459 = vmul.f32 %v2446, 1.442695
      %v2460 = vpow.pop %v2459
      %v2461 = vmul.f32 %v2447, 1.442695
      %v2462 = vpow.pop %v2461
      %v2463 = vmul.f32 %v2448, 1.442695
      %v2464 = vpow.pop %v2463
      %v2465 = vadd.f32 %v2450, 1.0
      %v2466 = vadd.f32 %v2452, 1.0
      %v2467 = vadd.f32 %v2454, 1.0
      %v2468 = vadd.f32 %v2456, 1.0
      %v2469 = vadd.f32 %v2458, 1.0
      %v2470 = vadd.f32 %v2460, 1.0
      %v2471 = vadd.f32 %v2462, 1.0
      %v2472 = vadd.f32 %v2464, 1.0
      %v2473 = vrcp.pop %v2465
      %v2474 = vmul.f32 1.0, %v2473
      %v2475 = vrcp.pop %v2466
      %v2476 = vmul.f32 1.0, %v2475
      %v2477 = vrcp.pop %v2467
      %v2478 = vmul.f32 1.0, %v2477
      %v2479 = vrcp.pop %v2468
      %v2480 = vmul.f32 1.0, %v2479
      %v2481 = vrcp.pop %v2469
      %v2482 = vmul.f32 1.0, %v2481
      %v2483 = vrcp.pop %v2470
      %v2484 = vmul.f32 1.0, %v2483
      %v2485 = vrcp.pop %v2471
      %v2486 = vmul.f32 1.0, %v2485
      %v2487 = vrcp.pop %v2472
      %v2488 = vmul.f32 1.0, %v2487
      %v2489 = vadd.f32 %v2415, %v567
      %v2490 = vadd.f32 %v2420, %v572
      %v2491 = vadd.f32 %v2425, %v577
      %v2492 = vadd.f32 %v2430, %v582
      %v2493 = vmul.f32 %v2474, %v2489
      %v2494 = vmul.f32 %v2476, %v2490
      %v2495 = vmul.f32 %v2478, %v2491
      %v2496 = vmul.f32 %v2480, %v2492
      %v2497 = vadd.f32 %v2304, %v2493
      %v2498 = vadd.f32 %v2305, %v2494
      %v2499 = vadd.f32 %v2306, %v2495
      %v2500 = vadd.f32 %v2307, %v2496
      %v2501 = vtanh.pop %v2497
      %v2502 = vtanh.pop %v2498
      %v2503 = vtanh.pop %v2499
      %v2504 = vtanh.pop %v2500
      %v2505 = vsub.f32 %v2069, %v2501
      %v2506 = vsub.f32 %v2070, %v2502
      %v2507 = vsub.f32 %v2071, %v2503
      %v2508 = vsub.f32 %v2072, %v2504
      %v2509 = vmul.f32 %v2482, %v2505
      %v2510 = vmul.f32 %v2484, %v2506
      %v2511 = vmul.f32 %v2486, %v2507
      %v2512 = vmul.f32 %v2488, %v2508
      %v2513 = vadd.f32 %v2501, %v2509
      %v2514 = vadd.f32 %v2502, %v2510
      %v2515 = vadd.f32 %v2503, %v2511
      %v2516 = vadd.f32 %v2504, %v2512
      %2517 = vmatprep.subr.mxu0 0.0
      %2518 = vmatpush1.msra.mxu0 0.0
      %2519 = vmatprep.subr.mxu0 0.0
      %2520 = vmatpush1.msra.mxu0 0.0
      %2521 = vmatprep.subr.mxu0 0.0
      %2522 = vmatpush1.msra.mxu0 0.0
      %2523 = vmatprep.subr.mxu0 0.0
      %2524 = vmatpush1.msra.mxu0 0.0
      %2525 = vmatprep.subr.mxu0 0.0
      %2526 = vmatpush1.msra.mxu0 0.0
      %2527 = vmatprep.subr.mxu0 0.0
      %2528 = vmatpush1.msra.mxu0 0.0
      %2529 = vmatprep.subr.mxu0 0.0
      %2530 = vmatpush1.msra.mxu0 0.0
      %2531 = vmatprep.subr.mxu0 0.0
      %2532 = vmatpush1.msra.mxu0 0.0
      %2533 = vmatprep.subr.mxu0 0.0
      %2534 = vmatpush1.msra.mxu0 %v2289
      %2535 = vmatprep.subr.mxu0 0.0
      %2536 = vmatpush1.msra.mxu0 %v2288
      %2537 = vmatprep.subr.mxu0 0.0
      %2538 = vmatpush1.msra.mxu0 %v2287
      %2539 = vmatprep.subr.mxu0 0.0
      %2540 = vmatpush1.msra.mxu0 %v2286
      %2541 = vmatprep.subr.mxu0 0.0
      %2542 = vmatpush1.msra.mxu0 %v2516
      %2543 = vmatprep.subr.mxu0 0.0
      %2544 = vmatpush1.msra.mxu0 %v2515
      %2545 = vmatprep.subr.mxu0 0.0
      %2546 = vmatpush1.msra.mxu0 %v2514
      %2547 = vmatprep.subr.mxu0 0.0
      %2548 = vmatpush1.msra.mxu0 %v2513
      %2549 = vmatprep.subr.mxu0 0.0
      %2550 = vmatpush2.msra.mxu0 0.0
      %2551 = vmatprep.subr.mxu0 0.0
      %2552 = vmatpush2.msra.mxu0 0.0
      %2553 = vmatprep.subr.mxu0 0.0
      %2554 = vmatpush2.msra.mxu0 0.0
      %2555 = vmatprep.subr.mxu0 0.0
      %2556 = vmatpush2.msra.mxu0 0.0
      %2557 = vmatprep.subr.mxu0 0.0
      %2558 = vmatpush2.msra.mxu0 0.0
      %2559 = vmatprep.subr.mxu0 0.0
      %2560 = vmatpush2.msra.mxu0 0.0
      %2561 = vmatprep.subr.mxu0 0.0
      %2562 = vmatpush2.msra.mxu0 0.0
      %2563 = vmatprep.subr.mxu0 0.0
      %2564 = vmatpush2.msra.mxu0 0.0
      %2565 = vmatprep.subr.mxu0 0.0
      %2566 = vmatpush2.msra.mxu0 0.0
      %2567 = vmatprep.subr.mxu0 0.0
      %2568 = vmatpush2.msra.mxu0 0.0
      %2569 = vmatprep.subr.mxu0 0.0
      %2570 = vmatpush2.msra.mxu0 0.0
      %2571 = vmatprep.subr.mxu0 0.0
      %2572 = vmatpush2.msra.mxu0 0.0
      %2573 = vmatprep.subr.mxu0 0.0
      %2574 = vmatpush2.msra.mxu0 0.0
      %2575 = vmatprep.subr.mxu0 0.0
      %2576 = vmatpush2.msra.mxu0 0.0
      %2577 = vmatprep.subr.mxu0 0.0
      %2578 = vmatpush2.msra.mxu0 0.0
      %2579 = vmatprep.subr.mxu0 0.0
      %2580 = vmatpush2.msra.mxu0 0.0
      %2581 = vmatprep.mubr.f32.mxu0 0.0
      %2582 = vmatmul.mubr.f32.gmra.mxu0 %v694
      %v2583 = vpop.f32.mrf.mxu0
      %v2584 = vadd.f32 %v615, %v2583
      %v2585 = vpop.f32.mrf.mxu0
      %2586 = vmatprep.mubr.f32.mxu0 0.0
      %2587 = vmatmul.mubr.f32.gmra.mxu0 %v697
      %v2588 = vpop.f32.mrf.mxu0
      %v2589 = vadd.f32 %v620, %v2588
      %v2590 = vpop.f32.mrf.mxu0
      %2591 = vmatprep.mubr.f32.mxu0 0.0
      %2592 = vmatmul.mubr.f32.gmra.mxu0 %v700
      %v2593 = vpop.f32.mrf.mxu0
      %v2594 = vadd.f32 %v625, %v2593
      %v2595 = vpop.f32.mrf.mxu0
      %2596 = vmatprep.mubr.f32.mxu0 0.0
      %2597 = vmatmul.mubr.f32.gmra.mxu0 %v703
      %v2598 = vpop.f32.mrf.mxu0
      %v2599 = vadd.f32 %v630, %v2598
      %v2600 = vpop.f32.mrf.mxu0
      %2601 = vmatprep.mubr.f32.mxu0 0.0
      %2602 = vmatmul.mubr.f32.gmra.mxu0 %v706
      %v2603 = vpop.f32.mrf.mxu0
      %v2604 = vadd.f32 %v635, %v2603
      %v2605 = vpop.f32.mrf.mxu0
      %2606 = vmatprep.mubr.f32.mxu0 0.0
      %2607 = vmatmul.mubr.f32.gmra.mxu0 %v709
      %v2608 = vpop.f32.mrf.mxu0
      %v2609 = vadd.f32 %v640, %v2608
      %v2610 = vpop.f32.mrf.mxu0
      %2611 = vmatprep.mubr.f32.mxu0 0.0
      %2612 = vmatmul.mubr.f32.gmra.mxu0 %v712
      %v2613 = vpop.f32.mrf.mxu0
      %v2614 = vadd.f32 %v645, %v2613
      %v2615 = vpop.f32.mrf.mxu0
      %2616 = vmatprep.mubr.f32.mxu0 0.0
      %2617 = vmatmul.mubr.f32.gmra.mxu0 %v715
      %v2618 = vpop.f32.mrf.mxu0
      %v2619 = vadd.f32 %v650, %v2618
      %v2620 = vpop.f32.mrf.mxu0
      %2621 = vmatprep.mubr.f32.mxu0 0.0
      %2622 = vmatmul.mubr.f32.gmra.mxu0 %v718
      %v2623 = vpop.f32.mrf.mxu0
      %v2624 = vadd.f32 %v655, %v2623
      %v2625 = vpop.f32.mrf.mxu0
      %2626 = vmatprep.mubr.f32.mxu0 0.0
      %2627 = vmatmul.mubr.f32.gmra.mxu0 %v721
      %v2628 = vpop.f32.mrf.mxu0
      %v2629 = vadd.f32 %v660, %v2628
      %v2630 = vpop.f32.mrf.mxu0
      %2631 = vmatprep.mubr.f32.mxu0 0.0
      %2632 = vmatmul.mubr.f32.gmra.mxu0 %v724
      %v2633 = vpop.f32.mrf.mxu0
      %v2634 = vadd.f32 %v665, %v2633
      %v2635 = vpop.f32.mrf.mxu0
      %2636 = vmatprep.mubr.f32.mxu0 0.0
      %2637 = vmatmul.mubr.f32.gmra.mxu0 %v727
      %v2638 = vpop.f32.mrf.mxu0
      %v2639 = vadd.f32 %v670, %v2638
      %v2640 = vpop.f32.mrf.mxu0
      %2641 = vmatprep.mubr.f32.mxu0 0.0
      %2642 = vmatmul.mubr.f32.gmra.mxu0 %v730
      %v2643 = vpop.f32.mrf.mxu0
      %v2644 = vadd.f32 %v675, %v2643
      %v2645 = vpop.f32.mrf.mxu0
      %2646 = vmatprep.mubr.f32.mxu0 0.0
      %2647 = vmatmul.mubr.f32.gmra.mxu0 %v733
      %v2648 = vpop.f32.mrf.mxu0
      %v2649 = vadd.f32 %v680, %v2648
      %v2650 = vpop.f32.mrf.mxu0
      %2651 = vmatprep.mubr.f32.mxu0 0.0
      %2652 = vmatmul.mubr.f32.gmra.mxu0 %v736
      %v2653 = vpop.f32.mrf.mxu0
      %v2654 = vadd.f32 %v685, %v2653
      %v2655 = vpop.f32.mrf.mxu0
      %2656 = vmatprep.mubr.f32.mxu0 0.0
      %2657 = vmatmul.mubr.f32.gmra.mxu0 %v739
      %v2658 = vpop.f32.mrf.mxu0
      %v2659 = vadd.f32 %v690, %v2658
      %v2660 = vpop.f32.mrf.mxu0
      %2661 = vdwg.mxu0
      %v2662 = vxor.u32 %v2584, 2147483648
      %v2663 = vxor.u32 %v2589, 2147483648
      %v2664 = vxor.u32 %v2594, 2147483648
      %v2665 = vxor.u32 %v2599, 2147483648
      %v2666 = vxor.u32 %v2604, 2147483648
      %v2667 = vxor.u32 %v2609, 2147483648
      %v2668 = vxor.u32 %v2614, 2147483648
      %v2669 = vxor.u32 %v2619, 2147483648
      %v2670 = vmul.f32 %v2662, 1.442695
      %v2671 = vpow.pop %v2670
      %v2672 = vmul.f32 %v2663, 1.442695
      %v2673 = vpow.pop %v2672
      %v2674 = vmul.f32 %v2664, 1.442695
      %v2675 = vpow.pop %v2674
      %v2676 = vmul.f32 %v2665, 1.442695
      %v2677 = vpow.pop %v2676
      %v2678 = vmul.f32 %v2666, 1.442695
      %v2679 = vpow.pop %v2678
      %v2680 = vmul.f32 %v2667, 1.442695
      %v2681 = vpow.pop %v2680
      %v2682 = vmul.f32 %v2668, 1.442695
      %v2683 = vpow.pop %v2682
      %v2684 = vmul.f32 %v2669, 1.442695
      %v2685 = vpow.pop %v2684
      %v2686 = vadd.f32 %v2671, 1.0
      %v2687 = vadd.f32 %v2673, 1.0
      %v2688 = vadd.f32 %v2675, 1.0
      %v2689 = vadd.f32 %v2677, 1.0
      %v2690 = vadd.f32 %v2679, 1.0
      %v2691 = vadd.f32 %v2681, 1.0
      %v2692 = vadd.f32 %v2683, 1.0
      %v2693 = vadd.f32 %v2685, 1.0
      %v2694 = vrcp.pop %v2686
      %v2695 = vmul.f32 1.0, %v2694
      %v2696 = vrcp.pop %v2687
      %v2697 = vmul.f32 1.0, %v2696
      %v2698 = vrcp.pop %v2688
      %v2699 = vmul.f32 1.0, %v2698
      %v2700 = vrcp.pop %v2689
      %v2701 = vmul.f32 1.0, %v2700
      %v2702 = vrcp.pop %v2690
      %v2703 = vmul.f32 1.0, %v2702
      %v2704 = vrcp.pop %v2691
      %v2705 = vmul.f32 1.0, %v2704
      %v2706 = vrcp.pop %v2692
      %v2707 = vmul.f32 1.0, %v2706
      %v2708 = vrcp.pop %v2693
      %v2709 = vmul.f32 1.0, %v2708
      %v2710 = vmul.f32 %v2695, %v2644
      %v2711 = vmul.f32 %v2697, %v2649
      %v2712 = vmul.f32 %v2699, %v2654
      %v2713 = vmul.f32 %v2701, %v2659
      %v2714 = vadd.f32 %v2624, %v2710
      %v2715 = vadd.f32 %v2629, %v2711
      %v2716 = vadd.f32 %v2634, %v2712
      %v2717 = vadd.f32 %v2639, %v2713
      %v2718 = vtanh.pop %v2714
      %v2719 = vtanh.pop %v2715
      %v2720 = vtanh.pop %v2716
      %v2721 = vtanh.pop %v2717
      %v2722 = vsub.f32 %v2286, %v2718
      %v2723 = vsub.f32 %v2287, %v2719
      %v2724 = vsub.f32 %v2288, %v2720
      %v2725 = vsub.f32 %v2289, %v2721
      %v2726 = vmul.f32 %v2703, %v2722
      %v2727 = vmul.f32 %v2705, %v2723
      %v2728 = vmul.f32 %v2707, %v2724
      %v2729 = vmul.f32 %v2709, %v2725
      %v2730 = vadd.f32 %v2718, %v2726
      %v2731 = vadd.f32 %v2719, %v2727
      %v2732 = vadd.f32 %v2720, %v2728
      %v2733 = vadd.f32 %v2721, %v2729
      %s2734 = scalar_lea.vmem %s262, 128
      %2735 = vst.msk [vmem:[%s2734] sm:$0xff] %vm958, %v2730
      %2736 = vst.msk [vmem:[%s2734 + $0x8] sm:$0xff] %vm958, %v2731
      %2737 = vst.msk [vmem:[%s2734 + $0x10] sm:$0xff] %vm958, %v2732
      %2738 = vst.msk [vmem:[%s2734 + $0x18] sm:$0xff] %vm958, %v2733
      %s2739 = scalar_lea.vmem %s252, 480
      %v2740 = vld [vmem:[%s2739] sm:$0xff]
      %v2741 = vld [vmem:[%s2739 + $0x8] sm:$0xff]
      %v2742 = vld [vmem:[%s2739 + $0x10] sm:$0xff]
      %v2743 = vld [vmem:[%s2739 + $0x18] sm:$0xff]
      %v2744 = vld [vmem:[%s2739 + $0x20] sm:$0xff]
      %v2745 = vld [vmem:[%s2739 + $0x28] sm:$0xff]
      %v2746 = vld [vmem:[%s2739 + $0x30] sm:$0xff]
      %v2747 = vld [vmem:[%s2739 + $0x38] sm:$0xff]
      %v2748 = vld [vmem:[%s2739 + $0x40] sm:$0xff]
      %v2749 = vld [vmem:[%s2739 + $0x48] sm:$0xff]
      %v2750 = vld [vmem:[%s2739 + $0x50] sm:$0xff]
      %v2751 = vld [vmem:[%s2739 + $0x58] sm:$0xff]
      %2752 = vmatprep.subr.mxu0 0.0
      %2753 = vmatpush1.msra.mxu0 0.0
      %2754 = vmatprep.subr.mxu0 0.0
      %2755 = vmatpush1.msra.mxu0 0.0
      %2756 = vmatprep.subr.mxu0 0.0
      %2757 = vmatpush1.msra.mxu0 0.0
      %2758 = vmatprep.subr.mxu0 0.0
      %2759 = vmatpush1.msra.mxu0 0.0
      %2760 = vmatprep.subr.mxu0 0.0
      %2761 = vmatpush1.msra.mxu0 0.0
      %2762 = vmatprep.subr.mxu0 0.0
      %2763 = vmatpush1.msra.mxu0 0.0
      %2764 = vmatprep.subr.mxu0 0.0
      %2765 = vmatpush1.msra.mxu0 0.0
      %2766 = vmatprep.subr.mxu0 0.0
      %2767 = vmatpush1.msra.mxu0 0.0
      %2768 = vmatprep.subr.mxu0 0.0
      %2769 = vmatpush1.msra.mxu0 0.0
      %2770 = vmatprep.subr.mxu0 0.0
      %2771 = vmatpush1.msra.mxu0 0.0
      %2772 = vmatprep.subr.mxu0 0.0
      %2773 = vmatpush1.msra.mxu0 0.0
      %2774 = vmatprep.subr.mxu0 0.0
      %2775 = vmatpush1.msra.mxu0 0.0
      %2776 = vmatprep.subr.mxu0 0.0
      %2777 = vmatpush1.msra.mxu0 %v2516
      %2778 = vmatprep.subr.mxu0 0.0
      %2779 = vmatpush1.msra.mxu0 %v2515
      %2780 = vmatprep.subr.mxu0 0.0
      %2781 = vmatpush1.msra.mxu0 %v2514
      %2782 = vmatprep.subr.mxu0 0.0
      %2783 = vmatpush1.msra.mxu0 %v2513
      %2784 = vmatprep.subr.mxu0 0.0
      %2785 = vmatpush2.msra.mxu0 0.0
      %2786 = vmatprep.subr.mxu0 0.0
      %2787 = vmatpush2.msra.mxu0 0.0
      %2788 = vmatprep.subr.mxu0 0.0
      %2789 = vmatpush2.msra.mxu0 0.0
      %2790 = vmatprep.subr.mxu0 0.0
      %2791 = vmatpush2.msra.mxu0 0.0
      %2792 = vmatprep.subr.mxu0 0.0
      %2793 = vmatpush2.msra.mxu0 0.0
      %2794 = vmatprep.subr.mxu0 0.0
      %2795 = vmatpush2.msra.mxu0 0.0
      %2796 = vmatprep.subr.mxu0 0.0
      %2797 = vmatpush2.msra.mxu0 0.0
      %2798 = vmatprep.subr.mxu0 0.0
      %2799 = vmatpush2.msra.mxu0 0.0
      %2800 = vmatprep.subr.mxu0 0.0
      %2801 = vmatpush2.msra.mxu0 0.0
      %2802 = vmatprep.subr.mxu0 0.0
      %2803 = vmatpush2.msra.mxu0 0.0
      %2804 = vmatprep.subr.mxu0 0.0
      %2805 = vmatpush2.msra.mxu0 0.0
      %2806 = vmatprep.subr.mxu0 0.0
      %2807 = vmatpush2.msra.mxu0 0.0
      %2808 = vmatprep.subr.mxu0 0.0
      %2809 = vmatpush2.msra.mxu0 0.0
      %2810 = vmatprep.subr.mxu0 0.0
      %2811 = vmatpush2.msra.mxu0 0.0
      %2812 = vmatprep.subr.mxu0 0.0
      %2813 = vmatpush2.msra.mxu0 0.0
      %2814 = vmatprep.subr.mxu0 0.0
      %2815 = vmatpush2.msra.mxu0 0.0
      %2816 = vmatprep.mubr.f32.mxu0 0.0
      %2817 = vmatmul.mubr.f32.gmra.mxu0 %v348
      %v2818 = vpop.f32.mrf.mxu0
      %v2819 = vadd.f32 0.0, %v2818
      %v2820 = vpop.f32.mrf.mxu0
      %2821 = vmatprep.mubr.f32.mxu0 0.0
      %2822 = vmatmul.mubr.f32.gmra.mxu0 %v351
      %v2823 = vpop.f32.mrf.mxu0
      %v2824 = vadd.f32 0.0, %v2823
      %v2825 = vpop.f32.mrf.mxu0
      %2826 = vmatprep.mubr.f32.mxu0 0.0
      %2827 = vmatmul.mubr.f32.gmra.mxu0 %v354
      %v2828 = vpop.f32.mrf.mxu0
      %v2829 = vadd.f32 0.0, %v2828
      %v2830 = vpop.f32.mrf.mxu0
      %2831 = vmatprep.mubr.f32.mxu0 0.0
      %2832 = vmatmul.mubr.f32.gmra.mxu0 %v357
      %v2833 = vpop.f32.mrf.mxu0
      %v2834 = vadd.f32 0.0, %v2833
      %v2835 = vpop.f32.mrf.mxu0
      %2836 = vmatprep.mubr.f32.mxu0 0.0
      %2837 = vmatmul.mubr.f32.gmra.mxu0 %v360
      %v2838 = vpop.f32.mrf.mxu0
      %v2839 = vadd.f32 0.0, %v2838
      %v2840 = vpop.f32.mrf.mxu0
      %2841 = vmatprep.mubr.f32.mxu0 0.0
      %2842 = vmatmul.mubr.f32.gmra.mxu0 %v363
      %v2843 = vpop.f32.mrf.mxu0
      %v2844 = vadd.f32 0.0, %v2843
      %v2845 = vpop.f32.mrf.mxu0
      %2846 = vmatprep.mubr.f32.mxu0 0.0
      %2847 = vmatmul.mubr.f32.gmra.mxu0 %v366
      %v2848 = vpop.f32.mrf.mxu0
      %v2849 = vadd.f32 0.0, %v2848
      %v2850 = vpop.f32.mrf.mxu0
      %2851 = vmatprep.mubr.f32.mxu0 0.0
      %2852 = vmatmul.mubr.f32.gmra.mxu0 %v369
      %v2853 = vpop.f32.mrf.mxu0
      %v2854 = vadd.f32 0.0, %v2853
      %v2855 = vpop.f32.mrf.mxu0
      %2856 = vmatprep.mubr.f32.mxu0 0.0
      %2857 = vmatmul.mubr.f32.gmra.mxu0 %v372
      %v2858 = vpop.f32.mrf.mxu0
      %v2859 = vadd.f32 0.0, %v2858
      %v2860 = vpop.f32.mrf.mxu0
      %2861 = vmatprep.mubr.f32.mxu0 0.0
      %2862 = vmatmul.mubr.f32.gmra.mxu0 %v375
      %v2863 = vpop.f32.mrf.mxu0
      %v2864 = vadd.f32 0.0, %v2863
      %v2865 = vpop.f32.mrf.mxu0
      %2866 = vmatprep.mubr.f32.mxu0 0.0
      %2867 = vmatmul.mubr.f32.gmra.mxu0 %v378
      %v2868 = vpop.f32.mrf.mxu0
      %v2869 = vadd.f32 0.0, %v2868
      %v2870 = vpop.f32.mrf.mxu0
      %2871 = vmatprep.mubr.f32.mxu0 0.0
      %2872 = vmatmul.mubr.f32.gmra.mxu0 %v381
      %v2873 = vpop.f32.mrf.mxu0
      %v2874 = vadd.f32 0.0, %v2873
      %v2875 = vpop.f32.mrf.mxu0
      %2876 = vdwg.mxu0
      %v2877 = vadd.f32 %v2740, %v2819
      %v2878 = vadd.f32 %v2741, %v2824
      %v2879 = vadd.f32 %v2742, %v2829
      %v2880 = vadd.f32 %v2743, %v2834
      %v2881 = vadd.f32 %v2744, %v2839
      %v2882 = vadd.f32 %v2745, %v2844
      %v2883 = vadd.f32 %v2746, %v2849
      %v2884 = vadd.f32 %v2747, %v2854
      %v2885 = vxor.u32 %v2877, 2147483648
      %v2886 = vxor.u32 %v2878, 2147483648
      %v2887 = vxor.u32 %v2879, 2147483648
      %v2888 = vxor.u32 %v2880, 2147483648
      %v2889 = vxor.u32 %v2881, 2147483648
      %v2890 = vxor.u32 %v2882, 2147483648
      %v2891 = vxor.u32 %v2883, 2147483648
      %v2892 = vxor.u32 %v2884, 2147483648
      %v2893 = vmul.f32 %v2885, 1.442695
      %v2894 = vpow.pop %v2893
      %v2895 = vmul.f32 %v2886, 1.442695
      %v2896 = vpow.pop %v2895
      %v2897 = vmul.f32 %v2887, 1.442695
      %v2898 = vpow.pop %v2897
      %v2899 = vmul.f32 %v2888, 1.442695
      %v2900 = vpow.pop %v2899
      %v2901 = vmul.f32 %v2889, 1.442695
      %v2902 = vpow.pop %v2901
      %v2903 = vmul.f32 %v2890, 1.442695
      %v2904 = vpow.pop %v2903
      %v2905 = vmul.f32 %v2891, 1.442695
      %v2906 = vpow.pop %v2905
      %v2907 = vmul.f32 %v2892, 1.442695
      %v2908 = vpow.pop %v2907
      %v2909 = vadd.f32 %v2894, 1.0
      %v2910 = vadd.f32 %v2896, 1.0
      %v2911 = vadd.f32 %v2898, 1.0
      %v2912 = vadd.f32 %v2900, 1.0
      %v2913 = vadd.f32 %v2902, 1.0
      %v2914 = vadd.f32 %v2904, 1.0
      %v2915 = vadd.f32 %v2906, 1.0
      %v2916 = vadd.f32 %v2908, 1.0
      %v2917 = vrcp.pop %v2909
      %v2918 = vmul.f32 1.0, %v2917
      %v2919 = vrcp.pop %v2910
      %v2920 = vmul.f32 1.0, %v2919
      %v2921 = vrcp.pop %v2911
      %v2922 = vmul.f32 1.0, %v2921
      %v2923 = vrcp.pop %v2912
      %v2924 = vmul.f32 1.0, %v2923
      %v2925 = vrcp.pop %v2913
      %v2926 = vmul.f32 1.0, %v2925
      %v2927 = vrcp.pop %v2914
      %v2928 = vmul.f32 1.0, %v2927
      %v2929 = vrcp.pop %v2915
      %v2930 = vmul.f32 1.0, %v2929
      %v2931 = vrcp.pop %v2916
      %v2932 = vmul.f32 1.0, %v2931
      %v2933 = vadd.f32 %v2859, %v567
      %v2934 = vadd.f32 %v2864, %v572
      %v2935 = vadd.f32 %v2869, %v577
      %v2936 = vadd.f32 %v2874, %v582
      %v2937 = vmul.f32 %v2918, %v2933
      %v2938 = vmul.f32 %v2920, %v2934
      %v2939 = vmul.f32 %v2922, %v2935
      %v2940 = vmul.f32 %v2924, %v2936
      %v2941 = vadd.f32 %v2748, %v2937
      %v2942 = vadd.f32 %v2749, %v2938
      %v2943 = vadd.f32 %v2750, %v2939
      %v2944 = vadd.f32 %v2751, %v2940
      %v2945 = vtanh.pop %v2941
      %v2946 = vtanh.pop %v2942
      %v2947 = vtanh.pop %v2943
      %v2948 = vtanh.pop %v2944
      %v2949 = vsub.f32 %v2513, %v2945
      %v2950 = vsub.f32 %v2514, %v2946
      %v2951 = vsub.f32 %v2515, %v2947
      %v2952 = vsub.f32 %v2516, %v2948
      %v2953 = vmul.f32 %v2926, %v2949
      %v2954 = vmul.f32 %v2928, %v2950
      %v2955 = vmul.f32 %v2930, %v2951
      %v2956 = vmul.f32 %v2932, %v2952
      %v2957 = vadd.f32 %v2945, %v2953
      %v2958 = vadd.f32 %v2946, %v2954
      %v2959 = vadd.f32 %v2947, %v2955
      %v2960 = vadd.f32 %v2948, %v2956
      %2961 = vmatprep.subr.mxu0 0.0
      %2962 = vmatpush1.msra.mxu0 0.0
      %2963 = vmatprep.subr.mxu0 0.0
      %2964 = vmatpush1.msra.mxu0 0.0
      %2965 = vmatprep.subr.mxu0 0.0
      %2966 = vmatpush1.msra.mxu0 0.0
      %2967 = vmatprep.subr.mxu0 0.0
      %2968 = vmatpush1.msra.mxu0 0.0
      %2969 = vmatprep.subr.mxu0 0.0
      %2970 = vmatpush1.msra.mxu0 0.0
      %2971 = vmatprep.subr.mxu0 0.0
      %2972 = vmatpush1.msra.mxu0 0.0
      %2973 = vmatprep.subr.mxu0 0.0
      %2974 = vmatpush1.msra.mxu0 0.0
      %2975 = vmatprep.subr.mxu0 0.0
      %2976 = vmatpush1.msra.mxu0 0.0
      %2977 = vmatprep.subr.mxu0 0.0
      %2978 = vmatpush1.msra.mxu0 %v2733
      %2979 = vmatprep.subr.mxu0 0.0
      %2980 = vmatpush1.msra.mxu0 %v2732
      %2981 = vmatprep.subr.mxu0 0.0
      %2982 = vmatpush1.msra.mxu0 %v2731
      %2983 = vmatprep.subr.mxu0 0.0
      %2984 = vmatpush1.msra.mxu0 %v2730
      %2985 = vmatprep.subr.mxu0 0.0
      %2986 = vmatpush1.msra.mxu0 %v2960
      %2987 = vmatprep.subr.mxu0 0.0
      %2988 = vmatpush1.msra.mxu0 %v2959
      %2989 = vmatprep.subr.mxu0 0.0
      %2990 = vmatpush1.msra.mxu0 %v2958
      %2991 = vmatprep.subr.mxu0 0.0
      %2992 = vmatpush1.msra.mxu0 %v2957
      %2993 = vmatprep.subr.mxu0 0.0
      %2994 = vmatpush2.msra.mxu0 0.0
      %2995 = vmatprep.subr.mxu0 0.0
      %2996 = vmatpush2.msra.mxu0 0.0
      %2997 = vmatprep.subr.mxu0 0.0
      %2998 = vmatpush2.msra.mxu0 0.0
      %2999 = vmatprep.subr.mxu0 0.0
      %3000 = vmatpush2.msra.mxu0 0.0
      %3001 = vmatprep.subr.mxu0 0.0
      %3002 = vmatpush2.msra.mxu0 0.0
      %3003 = vmatprep.subr.mxu0 0.0
      %3004 = vmatpush2.msra.mxu0 0.0
      %3005 = vmatprep.subr.mxu0 0.0
      %3006 = vmatpush2.msra.mxu0 0.0
      %3007 = vmatprep.subr.mxu0 0.0
      %3008 = vmatpush2.msra.mxu0 0.0
      %3009 = vmatprep.subr.mxu0 0.0
      %3010 = vmatpush2.msra.mxu0 0.0
      %3011 = vmatprep.subr.mxu0 0.0
      %3012 = vmatpush2.msra.mxu0 0.0
      %3013 = vmatprep.subr.mxu0 0.0
      %3014 = vmatpush2.msra.mxu0 0.0
      %3015 = vmatprep.subr.mxu0 0.0
      %3016 = vmatpush2.msra.mxu0 0.0
      %3017 = vmatprep.subr.mxu0 0.0
      %3018 = vmatpush2.msra.mxu0 0.0
      %3019 = vmatprep.subr.mxu0 0.0
      %3020 = vmatpush2.msra.mxu0 0.0
      %3021 = vmatprep.subr.mxu0 0.0
      %3022 = vmatpush2.msra.mxu0 0.0
      %3023 = vmatprep.subr.mxu0 0.0
      %3024 = vmatpush2.msra.mxu0 0.0
      %3025 = vmatprep.mubr.f32.mxu0 0.0
      %3026 = vmatmul.mubr.f32.gmra.mxu0 %v694
      %v3027 = vpop.f32.mrf.mxu0
      %v3028 = vadd.f32 %v615, %v3027
      %v3029 = vpop.f32.mrf.mxu0
      %3030 = vmatprep.mubr.f32.mxu0 0.0
      %3031 = vmatmul.mubr.f32.gmra.mxu0 %v697
      %v3032 = vpop.f32.mrf.mxu0
      %v3033 = vadd.f32 %v620, %v3032
      %v3034 = vpop.f32.mrf.mxu0
      %3035 = vmatprep.mubr.f32.mxu0 0.0
      %3036 = vmatmul.mubr.f32.gmra.mxu0 %v700
      %v3037 = vpop.f32.mrf.mxu0
      %v3038 = vadd.f32 %v625, %v3037
      %v3039 = vpop.f32.mrf.mxu0
      %3040 = vmatprep.mubr.f32.mxu0 0.0
      %3041 = vmatmul.mubr.f32.gmra.mxu0 %v703
      %v3042 = vpop.f32.mrf.mxu0
      %v3043 = vadd.f32 %v630, %v3042
      %v3044 = vpop.f32.mrf.mxu0
      %3045 = vmatprep.mubr.f32.mxu0 0.0
      %3046 = vmatmul.mubr.f32.gmra.mxu0 %v706
      %v3047 = vpop.f32.mrf.mxu0
      %v3048 = vadd.f32 %v635, %v3047
      %v3049 = vpop.f32.mrf.mxu0
      %3050 = vmatprep.mubr.f32.mxu0 0.0
      %3051 = vmatmul.mubr.f32.gmra.mxu0 %v709
      %v3052 = vpop.f32.mrf.mxu0
      %v3053 = vadd.f32 %v640, %v3052
      %v3054 = vpop.f32.mrf.mxu0
      %3055 = vmatprep.mubr.f32.mxu0 0.0
      %3056 = vmatmul.mubr.f32.gmra.mxu0 %v712
      %v3057 = vpop.f32.mrf.mxu0
      %v3058 = vadd.f32 %v645, %v3057
      %v3059 = vpop.f32.mrf.mxu0
      %3060 = vmatprep.mubr.f32.mxu0 0.0
      %3061 = vmatmul.mubr.f32.gmra.mxu0 %v715
      %v3062 = vpop.f32.mrf.mxu0
      %v3063 = vadd.f32 %v650, %v3062
      %v3064 = vpop.f32.mrf.mxu0
      %3065 = vmatprep.mubr.f32.mxu0 0.0
      %3066 = vmatmul.mubr.f32.gmra.mxu0 %v718
      %v3067 = vpop.f32.mrf.mxu0
      %v3068 = vadd.f32 %v655, %v3067
      %v3069 = vpop.f32.mrf.mxu0
      %3070 = vmatprep.mubr.f32.mxu0 0.0
      %3071 = vmatmul.mubr.f32.gmra.mxu0 %v721
      %v3072 = vpop.f32.mrf.mxu0
      %v3073 = vadd.f32 %v660, %v3072
      %v3074 = vpop.f32.mrf.mxu0
      %3075 = vmatprep.mubr.f32.mxu0 0.0
      %3076 = vmatmul.mubr.f32.gmra.mxu0 %v724
      %v3077 = vpop.f32.mrf.mxu0
      %v3078 = vadd.f32 %v665, %v3077
      %v3079 = vpop.f32.mrf.mxu0
      %3080 = vmatprep.mubr.f32.mxu0 0.0
      %3081 = vmatmul.mubr.f32.gmra.mxu0 %v727
      %v3082 = vpop.f32.mrf.mxu0
      %v3083 = vadd.f32 %v670, %v3082
      %v3084 = vpop.f32.mrf.mxu0
      %3085 = vmatprep.mubr.f32.mxu0 0.0
      %3086 = vmatmul.mubr.f32.gmra.mxu0 %v730
      %v3087 = vpop.f32.mrf.mxu0
      %v3088 = vadd.f32 %v675, %v3087
      %v3089 = vpop.f32.mrf.mxu0
      %3090 = vmatprep.mubr.f32.mxu0 0.0
      %3091 = vmatmul.mubr.f32.gmra.mxu0 %v733
      %v3092 = vpop.f32.mrf.mxu0
      %v3093 = vadd.f32 %v680, %v3092
      %v3094 = vpop.f32.mrf.mxu0
      %3095 = vmatprep.mubr.f32.mxu0 0.0
      %3096 = vmatmul.mubr.f32.gmra.mxu0 %v736
      %v3097 = vpop.f32.mrf.mxu0
      %v3098 = vadd.f32 %v685, %v3097
      %v3099 = vpop.f32.mrf.mxu0
      %3100 = vmatprep.mubr.f32.mxu0 0.0
      %3101 = vmatmul.mubr.f32.gmra.mxu0 %v739
      %v3102 = vpop.f32.mrf.mxu0
      %v3103 = vadd.f32 %v690, %v3102
      %v3104 = vpop.f32.mrf.mxu0
      %3105 = vdwg.mxu0
      %v3106 = vxor.u32 %v3028, 2147483648
      %v3107 = vxor.u32 %v3033, 2147483648
      %v3108 = vxor.u32 %v3038, 2147483648
      %v3109 = vxor.u32 %v3043, 2147483648
      %v3110 = vxor.u32 %v3048, 2147483648
      %v3111 = vxor.u32 %v3053, 2147483648
      %v3112 = vxor.u32 %v3058, 2147483648
      %v3113 = vxor.u32 %v3063, 2147483648
      %v3114 = vmul.f32 %v3106, 1.442695
      %v3115 = vpow.pop %v3114
      %v3116 = vmul.f32 %v3107, 1.442695
      %v3117 = vpow.pop %v3116
      %v3118 = vmul.f32 %v3108, 1.442695
      %v3119 = vpow.pop %v3118
      %v3120 = vmul.f32 %v3109, 1.442695
      %v3121 = vpow.pop %v3120
      %v3122 = vmul.f32 %v3110, 1.442695
      %v3123 = vpow.pop %v3122
      %v3124 = vmul.f32 %v3111, 1.442695
      %v3125 = vpow.pop %v3124
      %v3126 = vmul.f32 %v3112, 1.442695
      %v3127 = vpow.pop %v3126
      %v3128 = vmul.f32 %v3113, 1.442695
      %v3129 = vpow.pop %v3128
      %v3130 = vadd.f32 %v3115, 1.0
      %v3131 = vadd.f32 %v3117, 1.0
      %v3132 = vadd.f32 %v3119, 1.0
      %v3133 = vadd.f32 %v3121, 1.0
      %v3134 = vadd.f32 %v3123, 1.0
      %v3135 = vadd.f32 %v3125, 1.0
      %v3136 = vadd.f32 %v3127, 1.0
      %v3137 = vadd.f32 %v3129, 1.0
      %v3138 = vrcp.pop %v3130
      %v3139 = vmul.f32 1.0, %v3138
      %v3140 = vrcp.pop %v3131
      %v3141 = vmul.f32 1.0, %v3140
      %v3142 = vrcp.pop %v3132
      %v3143 = vmul.f32 1.0, %v3142
      %v3144 = vrcp.pop %v3133
      %v3145 = vmul.f32 1.0, %v3144
      %v3146 = vrcp.pop %v3134
      %v3147 = vmul.f32 1.0, %v3146
      %v3148 = vrcp.pop %v3135
      %v3149 = vmul.f32 1.0, %v3148
      %v3150 = vrcp.pop %v3136
      %v3151 = vmul.f32 1.0, %v3150
      %v3152 = vrcp.pop %v3137
      %v3153 = vmul.f32 1.0, %v3152
      %v3154 = vmul.f32 %v3139, %v3088
      %v3155 = vmul.f32 %v3141, %v3093
      %v3156 = vmul.f32 %v3143, %v3098
      %v3157 = vmul.f32 %v3145, %v3103
      %v3158 = vadd.f32 %v3068, %v3154
      %v3159 = vadd.f32 %v3073, %v3155
      %v3160 = vadd.f32 %v3078, %v3156
      %v3161 = vadd.f32 %v3083, %v3157
      %v3162 = vtanh.pop %v3158
      %v3163 = vtanh.pop %v3159
      %v3164 = vtanh.pop %v3160
      %v3165 = vtanh.pop %v3161
      %v3166 = vsub.f32 %v2730, %v3162
      %v3167 = vsub.f32 %v2731, %v3163
      %v3168 = vsub.f32 %v2732, %v3164
      %v3169 = vsub.f32 %v2733, %v3165
      %v3170 = vmul.f32 %v3147, %v3166
      %v3171 = vmul.f32 %v3149, %v3167
      %v3172 = vmul.f32 %v3151, %v3168
      %v3173 = vmul.f32 %v3153, %v3169
      %v3174 = vadd.f32 %v3162, %v3170
      %v3175 = vadd.f32 %v3163, %v3171
      %v3176 = vadd.f32 %v3164, %v3172
      %v3177 = vadd.f32 %v3165, %v3173
      %s3178 = scalar_lea.vmem %s262, 160
      %3179 = vst.msk [vmem:[%s3178] sm:$0xff] %vm958, %v3174
      %3180 = vst.msk [vmem:[%s3178 + $0x8] sm:$0xff] %vm958, %v3175
      %3181 = vst.msk [vmem:[%s3178 + $0x10] sm:$0xff] %vm958, %v3176
      %3182 = vst.msk [vmem:[%s3178 + $0x18] sm:$0xff] %vm958, %v3177
      %s3183 = scalar_lea.vmem %s252, 576
      %v3184 = vld [vmem:[%s3183] sm:$0xff]
      %v3185 = vld [vmem:[%s3183 + $0x8] sm:$0xff]
      %v3186 = vld [vmem:[%s3183 + $0x10] sm:$0xff]
      %v3187 = vld [vmem:[%s3183 + $0x18] sm:$0xff]
      %v3188 = vld [vmem:[%s3183 + $0x20] sm:$0xff]
      %v3189 = vld [vmem:[%s3183 + $0x28] sm:$0xff]
      %v3190 = vld [vmem:[%s3183 + $0x30] sm:$0xff]
      %v3191 = vld [vmem:[%s3183 + $0x38] sm:$0xff]
      %v3192 = vld [vmem:[%s3183 + $0x40] sm:$0xff]
      %v3193 = vld [vmem:[%s3183 + $0x48] sm:$0xff]
      %v3194 = vld [vmem:[%s3183 + $0x50] sm:$0xff]
      %v3195 = vld [vmem:[%s3183 + $0x58] sm:$0xff]
      %3196 = vmatprep.subr.mxu0 0.0
      %3197 = vmatpush1.msra.mxu0 0.0
      %3198 = vmatprep.subr.mxu0 0.0
      %3199 = vmatpush1.msra.mxu0 0.0
      %3200 = vmatprep.subr.mxu0 0.0
      %3201 = vmatpush1.msra.mxu0 0.0
      %3202 = vmatprep.subr.mxu0 0.0
      %3203 = vmatpush1.msra.mxu0 0.0
      %3204 = vmatprep.subr.mxu0 0.0
      %3205 = vmatpush1.msra.mxu0 0.0
      %3206 = vmatprep.subr.mxu0 0.0
      %3207 = vmatpush1.msra.mxu0 0.0
      %3208 = vmatprep.subr.mxu0 0.0
      %3209 = vmatpush1.msra.mxu0 0.0
      %3210 = vmatprep.subr.mxu0 0.0
      %3211 = vmatpush1.msra.mxu0 0.0
      %3212 = vmatprep.subr.mxu0 0.0
      %3213 = vmatpush1.msra.mxu0 0.0
      %3214 = vmatprep.subr.mxu0 0.0
      %3215 = vmatpush1.msra.mxu0 0.0
      %3216 = vmatprep.subr.mxu0 0.0
      %3217 = vmatpush1.msra.mxu0 0.0
      %3218 = vmatprep.subr.mxu0 0.0
      %3219 = vmatpush1.msra.mxu0 0.0
      %3220 = vmatprep.subr.mxu0 0.0
      %3221 = vmatpush1.msra.mxu0 %v2960
      %3222 = vmatprep.subr.mxu0 0.0
      %3223 = vmatpush1.msra.mxu0 %v2959
      %3224 = vmatprep.subr.mxu0 0.0
      %3225 = vmatpush1.msra.mxu0 %v2958
      %3226 = vmatprep.subr.mxu0 0.0
      %3227 = vmatpush1.msra.mxu0 %v2957
      %3228 = vmatprep.subr.mxu0 0.0
      %3229 = vmatpush2.msra.mxu0 0.0
      %3230 = vmatprep.subr.mxu0 0.0
      %3231 = vmatpush2.msra.mxu0 0.0
      %3232 = vmatprep.subr.mxu0 0.0
      %3233 = vmatpush2.msra.mxu0 0.0
      %3234 = vmatprep.subr.mxu0 0.0
      %3235 = vmatpush2.msra.mxu0 0.0
      %3236 = vmatprep.subr.mxu0 0.0
      %3237 = vmatpush2.msra.mxu0 0.0
      %3238 = vmatprep.subr.mxu0 0.0
      %3239 = vmatpush2.msra.mxu0 0.0
      %3240 = vmatprep.subr.mxu0 0.0
      %3241 = vmatpush2.msra.mxu0 0.0
      %3242 = vmatprep.subr.mxu0 0.0
      %3243 = vmatpush2.msra.mxu0 0.0
      %3244 = vmatprep.subr.mxu0 0.0
      %3245 = vmatpush2.msra.mxu0 0.0
      %3246 = vmatprep.subr.mxu0 0.0
      %3247 = vmatpush2.msra.mxu0 0.0
      %3248 = vmatprep.subr.mxu0 0.0
      %3249 = vmatpush2.msra.mxu0 0.0
      %3250 = vmatprep.subr.mxu0 0.0
      %3251 = vmatpush2.msra.mxu0 0.0
      %3252 = vmatprep.subr.mxu0 0.0
      %3253 = vmatpush2.msra.mxu0 0.0
      %3254 = vmatprep.subr.mxu0 0.0
      %3255 = vmatpush2.msra.mxu0 0.0
      %3256 = vmatprep.subr.mxu0 0.0
      %3257 = vmatpush2.msra.mxu0 0.0
      %3258 = vmatprep.subr.mxu0 0.0
      %3259 = vmatpush2.msra.mxu0 0.0
      %3260 = vmatprep.mubr.f32.mxu0 0.0
      %3261 = vmatmul.mubr.f32.gmra.mxu0 %v348
      %v3262 = vpop.f32.mrf.mxu0
      %v3263 = vadd.f32 0.0, %v3262
      %v3264 = vpop.f32.mrf.mxu0
      %3265 = vmatprep.mubr.f32.mxu0 0.0
      %3266 = vmatmul.mubr.f32.gmra.mxu0 %v351
      %v3267 = vpop.f32.mrf.mxu0
      %v3268 = vadd.f32 0.0, %v3267
      %v3269 = vpop.f32.mrf.mxu0
      %3270 = vmatprep.mubr.f32.mxu0 0.0
      %3271 = vmatmul.mubr.f32.gmra.mxu0 %v354
      %v3272 = vpop.f32.mrf.mxu0
      %v3273 = vadd.f32 0.0, %v3272
      %v3274 = vpop.f32.mrf.mxu0
      %3275 = vmatprep.mubr.f32.mxu0 0.0
      %3276 = vmatmul.mubr.f32.gmra.mxu0 %v357
      %v3277 = vpop.f32.mrf.mxu0
      %v3278 = vadd.f32 0.0, %v3277
      %v3279 = vpop.f32.mrf.mxu0
      %3280 = vmatprep.mubr.f32.mxu0 0.0
      %3281 = vmatmul.mubr.f32.gmra.mxu0 %v360
      %v3282 = vpop.f32.mrf.mxu0
      %v3283 = vadd.f32 0.0, %v3282
      %v3284 = vpop.f32.mrf.mxu0
      %3285 = vmatprep.mubr.f32.mxu0 0.0
      %3286 = vmatmul.mubr.f32.gmra.mxu0 %v363
      %v3287 = vpop.f32.mrf.mxu0
      %v3288 = vadd.f32 0.0, %v3287
      %v3289 = vpop.f32.mrf.mxu0
      %3290 = vmatprep.mubr.f32.mxu0 0.0
      %3291 = vmatmul.mubr.f32.gmra.mxu0 %v366
      %v3292 = vpop.f32.mrf.mxu0
      %v3293 = vadd.f32 0.0, %v3292
      %v3294 = vpop.f32.mrf.mxu0
      %3295 = vmatprep.mubr.f32.mxu0 0.0
      %3296 = vmatmul.mubr.f32.gmra.mxu0 %v369
      %v3297 = vpop.f32.mrf.mxu0
      %v3298 = vadd.f32 0.0, %v3297
      %v3299 = vpop.f32.mrf.mxu0
      %3300 = vmatprep.mubr.f32.mxu0 0.0
      %3301 = vmatmul.mubr.f32.gmra.mxu0 %v372
      %v3302 = vpop.f32.mrf.mxu0
      %v3303 = vadd.f32 0.0, %v3302
      %v3304 = vpop.f32.mrf.mxu0
      %3305 = vmatprep.mubr.f32.mxu0 0.0
      %3306 = vmatmul.mubr.f32.gmra.mxu0 %v375
      %v3307 = vpop.f32.mrf.mxu0
      %v3308 = vadd.f32 0.0, %v3307
      %v3309 = vpop.f32.mrf.mxu0
      %3310 = vmatprep.mubr.f32.mxu0 0.0
      %3311 = vmatmul.mubr.f32.gmra.mxu0 %v378
      %v3312 = vpop.f32.mrf.mxu0
      %v3313 = vadd.f32 0.0, %v3312
      %v3314 = vpop.f32.mrf.mxu0
      %3315 = vmatprep.mubr.f32.mxu0 0.0
      %3316 = vmatmul.mubr.f32.gmra.mxu0 %v381
      %v3317 = vpop.f32.mrf.mxu0
      %v3318 = vadd.f32 0.0, %v3317
      %v3319 = vpop.f32.mrf.mxu0
      %3320 = vdwg.mxu0
      %v3321 = vadd.f32 %v3184, %v3263
      %v3322 = vadd.f32 %v3185, %v3268
      %v3323 = vadd.f32 %v3186, %v3273
      %v3324 = vadd.f32 %v3187, %v3278
      %v3325 = vadd.f32 %v3188, %v3283
      %v3326 = vadd.f32 %v3189, %v3288
      %v3327 = vadd.f32 %v3190, %v3293
      %v3328 = vadd.f32 %v3191, %v3298
      %v3329 = vxor.u32 %v3321, 2147483648
      %v3330 = vxor.u32 %v3322, 2147483648
      %v3331 = vxor.u32 %v3323, 2147483648
      %v3332 = vxor.u32 %v3324, 2147483648
      %v3333 = vxor.u32 %v3325, 2147483648
      %v3334 = vxor.u32 %v3326, 2147483648
      %v3335 = vxor.u32 %v3327, 2147483648
      %v3336 = vxor.u32 %v3328, 2147483648
      %v3337 = vmul.f32 %v3329, 1.442695
      %v3338 = vpow.pop %v3337
      %v3339 = vmul.f32 %v3330, 1.442695
      %v3340 = vpow.pop %v3339
      %v3341 = vmul.f32 %v3331, 1.442695
      %v3342 = vpow.pop %v3341
      %v3343 = vmul.f32 %v3332, 1.442695
      %v3344 = vpow.pop %v3343
      %v3345 = vmul.f32 %v3333, 1.442695
      %v3346 = vpow.pop %v3345
      %v3347 = vmul.f32 %v3334, 1.442695
      %v3348 = vpow.pop %v3347
      %v3349 = vmul.f32 %v3335, 1.442695
      %v3350 = vpow.pop %v3349
      %v3351 = vmul.f32 %v3336, 1.442695
      %v3352 = vpow.pop %v3351
      %v3353 = vadd.f32 %v3338, 1.0
      %v3354 = vadd.f32 %v3340, 1.0
      %v3355 = vadd.f32 %v3342, 1.0
      %v3356 = vadd.f32 %v3344, 1.0
      %v3357 = vadd.f32 %v3346, 1.0
      %v3358 = vadd.f32 %v3348, 1.0
      %v3359 = vadd.f32 %v3350, 1.0
      %v3360 = vadd.f32 %v3352, 1.0
      %v3361 = vrcp.pop %v3353
      %v3362 = vmul.f32 1.0, %v3361
      %v3363 = vrcp.pop %v3354
      %v3364 = vmul.f32 1.0, %v3363
      %v3365 = vrcp.pop %v3355
      %v3366 = vmul.f32 1.0, %v3365
      %v3367 = vrcp.pop %v3356
      %v3368 = vmul.f32 1.0, %v3367
      %v3369 = vrcp.pop %v3357
      %v3370 = vmul.f32 1.0, %v3369
      %v3371 = vrcp.pop %v3358
      %v3372 = vmul.f32 1.0, %v3371
      %v3373 = vrcp.pop %v3359
      %v3374 = vmul.f32 1.0, %v3373
      %v3375 = vrcp.pop %v3360
      %v3376 = vmul.f32 1.0, %v3375
      %v3377 = vadd.f32 %v3303, %v567
      %v3378 = vadd.f32 %v3308, %v572
      %v3379 = vadd.f32 %v3313, %v577
      %v3380 = vadd.f32 %v3318, %v582
      %v3381 = vmul.f32 %v3362, %v3377
      %v3382 = vmul.f32 %v3364, %v3378
      %v3383 = vmul.f32 %v3366, %v3379
      %v3384 = vmul.f32 %v3368, %v3380
      %v3385 = vadd.f32 %v3192, %v3381
      %v3386 = vadd.f32 %v3193, %v3382
      %v3387 = vadd.f32 %v3194, %v3383
      %v3388 = vadd.f32 %v3195, %v3384
      %v3389 = vtanh.pop %v3385
      %v3390 = vtanh.pop %v3386
      %v3391 = vtanh.pop %v3387
      %v3392 = vtanh.pop %v3388
      %v3393 = vsub.f32 %v2957, %v3389
      %v3394 = vsub.f32 %v2958, %v3390
      %v3395 = vsub.f32 %v2959, %v3391
      %v3396 = vsub.f32 %v2960, %v3392
      %v3397 = vmul.f32 %v3370, %v3393
      %v3398 = vmul.f32 %v3372, %v3394
      %v3399 = vmul.f32 %v3374, %v3395
      %v3400 = vmul.f32 %v3376, %v3396
      %v3401 = vadd.f32 %v3389, %v3397
      %v3402 = vadd.f32 %v3390, %v3398
      %v3403 = vadd.f32 %v3391, %v3399
      %v3404 = vadd.f32 %v3392, %v3400
      %3405 = vmatprep.subr.mxu0 0.0
      %3406 = vmatpush1.msra.mxu0 0.0
      %3407 = vmatprep.subr.mxu0 0.0
      %3408 = vmatpush1.msra.mxu0 0.0
      %3409 = vmatprep.subr.mxu0 0.0
      %3410 = vmatpush1.msra.mxu0 0.0
      %3411 = vmatprep.subr.mxu0 0.0
      %3412 = vmatpush1.msra.mxu0 0.0
      %3413 = vmatprep.subr.mxu0 0.0
      %3414 = vmatpush1.msra.mxu0 0.0
      %3415 = vmatprep.subr.mxu0 0.0
      %3416 = vmatpush1.msra.mxu0 0.0
      %3417 = vmatprep.subr.mxu0 0.0
      %3418 = vmatpush1.msra.mxu0 0.0
      %3419 = vmatprep.subr.mxu0 0.0
      %3420 = vmatpush1.msra.mxu0 0.0
      %3421 = vmatprep.subr.mxu0 0.0
      %3422 = vmatpush1.msra.mxu0 %v3177
      %3423 = vmatprep.subr.mxu0 0.0
      %3424 = vmatpush1.msra.mxu0 %v3176
      %3425 = vmatprep.subr.mxu0 0.0
      %3426 = vmatpush1.msra.mxu0 %v3175
      %3427 = vmatprep.subr.mxu0 0.0
      %3428 = vmatpush1.msra.mxu0 %v3174
      %3429 = vmatprep.subr.mxu0 0.0
      %3430 = vmatpush1.msra.mxu0 %v3404
      %3431 = vmatprep.subr.mxu0 0.0
      %3432 = vmatpush1.msra.mxu0 %v3403
      %3433 = vmatprep.subr.mxu0 0.0
      %3434 = vmatpush1.msra.mxu0 %v3402
      %3435 = vmatprep.subr.mxu0 0.0
      %3436 = vmatpush1.msra.mxu0 %v3401
      %3437 = vmatprep.subr.mxu0 0.0
      %3438 = vmatpush2.msra.mxu0 0.0
      %3439 = vmatprep.subr.mxu0 0.0
      %3440 = vmatpush2.msra.mxu0 0.0
      %3441 = vmatprep.subr.mxu0 0.0
      %3442 = vmatpush2.msra.mxu0 0.0
      %3443 = vmatprep.subr.mxu0 0.0
      %3444 = vmatpush2.msra.mxu0 0.0
      %3445 = vmatprep.subr.mxu0 0.0
      %3446 = vmatpush2.msra.mxu0 0.0
      %3447 = vmatprep.subr.mxu0 0.0
      %3448 = vmatpush2.msra.mxu0 0.0
      %3449 = vmatprep.subr.mxu0 0.0
      %3450 = vmatpush2.msra.mxu0 0.0
      %3451 = vmatprep.subr.mxu0 0.0
      %3452 = vmatpush2.msra.mxu0 0.0
      %3453 = vmatprep.subr.mxu0 0.0
      %3454 = vmatpush2.msra.mxu0 0.0
      %3455 = vmatprep.subr.mxu0 0.0
      %3456 = vmatpush2.msra.mxu0 0.0
      %3457 = vmatprep.subr.mxu0 0.0
      %3458 = vmatpush2.msra.mxu0 0.0
      %3459 = vmatprep.subr.mxu0 0.0
      %3460 = vmatpush2.msra.mxu0 0.0
      %3461 = vmatprep.subr.mxu0 0.0
      %3462 = vmatpush2.msra.mxu0 0.0
      %3463 = vmatprep.subr.mxu0 0.0
      %3464 = vmatpush2.msra.mxu0 0.0
      %3465 = vmatprep.subr.mxu0 0.0
      %3466 = vmatpush2.msra.mxu0 0.0
      %3467 = vmatprep.subr.mxu0 0.0
      %3468 = vmatpush2.msra.mxu0 0.0
      %3469 = vmatprep.mubr.f32.mxu0 0.0
      %3470 = vmatmul.mubr.f32.gmra.mxu0 %v694
      %v3471 = vpop.f32.mrf.mxu0
      %v3472 = vadd.f32 %v615, %v3471
      %v3473 = vpop.f32.mrf.mxu0
      %3474 = vmatprep.mubr.f32.mxu0 0.0
      %3475 = vmatmul.mubr.f32.gmra.mxu0 %v697
      %v3476 = vpop.f32.mrf.mxu0
      %v3477 = vadd.f32 %v620, %v3476
      %v3478 = vpop.f32.mrf.mxu0
      %3479 = vmatprep.mubr.f32.mxu0 0.0
      %3480 = vmatmul.mubr.f32.gmra.mxu0 %v700
      %v3481 = vpop.f32.mrf.mxu0
      %v3482 = vadd.f32 %v625, %v3481
      %v3483 = vpop.f32.mrf.mxu0
      %3484 = vmatprep.mubr.f32.mxu0 0.0
      %3485 = vmatmul.mubr.f32.gmra.mxu0 %v703
      %v3486 = vpop.f32.mrf.mxu0
      %v3487 = vadd.f32 %v630, %v3486
      %v3488 = vpop.f32.mrf.mxu0
      %3489 = vmatprep.mubr.f32.mxu0 0.0
      %3490 = vmatmul.mubr.f32.gmra.mxu0 %v706
      %v3491 = vpop.f32.mrf.mxu0
      %v3492 = vadd.f32 %v635, %v3491
      %v3493 = vpop.f32.mrf.mxu0
      %3494 = vmatprep.mubr.f32.mxu0 0.0
      %3495 = vmatmul.mubr.f32.gmra.mxu0 %v709
      %v3496 = vpop.f32.mrf.mxu0
      %v3497 = vadd.f32 %v640, %v3496
      %v3498 = vpop.f32.mrf.mxu0
      %3499 = vmatprep.mubr.f32.mxu0 0.0
      %3500 = vmatmul.mubr.f32.gmra.mxu0 %v712
      %v3501 = vpop.f32.mrf.mxu0
      %v3502 = vadd.f32 %v645, %v3501
      %v3503 = vpop.f32.mrf.mxu0
      %3504 = vmatprep.mubr.f32.mxu0 0.0
      %3505 = vmatmul.mubr.f32.gmra.mxu0 %v715
      %v3506 = vpop.f32.mrf.mxu0
      %v3507 = vadd.f32 %v650, %v3506
      %v3508 = vpop.f32.mrf.mxu0
      %3509 = vmatprep.mubr.f32.mxu0 0.0
      %3510 = vmatmul.mubr.f32.gmra.mxu0 %v718
      %v3511 = vpop.f32.mrf.mxu0
      %v3512 = vadd.f32 %v655, %v3511
      %v3513 = vpop.f32.mrf.mxu0
      %3514 = vmatprep.mubr.f32.mxu0 0.0
      %3515 = vmatmul.mubr.f32.gmra.mxu0 %v721
      %v3516 = vpop.f32.mrf.mxu0
      %v3517 = vadd.f32 %v660, %v3516
      %v3518 = vpop.f32.mrf.mxu0
      %3519 = vmatprep.mubr.f32.mxu0 0.0
      %3520 = vmatmul.mubr.f32.gmra.mxu0 %v724
      %v3521 = vpop.f32.mrf.mxu0
      %v3522 = vadd.f32 %v665, %v3521
      %v3523 = vpop.f32.mrf.mxu0
      %3524 = vmatprep.mubr.f32.mxu0 0.0
      %3525 = vmatmul.mubr.f32.gmra.mxu0 %v727
      %v3526 = vpop.f32.mrf.mxu0
      %v3527 = vadd.f32 %v670, %v3526
      %v3528 = vpop.f32.mrf.mxu0
      %3529 = vmatprep.mubr.f32.mxu0 0.0
      %3530 = vmatmul.mubr.f32.gmra.mxu0 %v730
      %v3531 = vpop.f32.mrf.mxu0
      %v3532 = vadd.f32 %v675, %v3531
      %v3533 = vpop.f32.mrf.mxu0
      %3534 = vmatprep.mubr.f32.mxu0 0.0
      %3535 = vmatmul.mubr.f32.gmra.mxu0 %v733
      %v3536 = vpop.f32.mrf.mxu0
      %v3537 = vadd.f32 %v680, %v3536
      %v3538 = vpop.f32.mrf.mxu0
      %3539 = vmatprep.mubr.f32.mxu0 0.0
      %3540 = vmatmul.mubr.f32.gmra.mxu0 %v736
      %v3541 = vpop.f32.mrf.mxu0
      %v3542 = vadd.f32 %v685, %v3541
      %v3543 = vpop.f32.mrf.mxu0
      %3544 = vmatprep.mubr.f32.mxu0 0.0
      %3545 = vmatmul.mubr.f32.gmra.mxu0 %v739
      %v3546 = vpop.f32.mrf.mxu0
      %v3547 = vadd.f32 %v690, %v3546
      %v3548 = vpop.f32.mrf.mxu0
      %3549 = vdwg.mxu0
      %v3550 = vxor.u32 %v3472, 2147483648
      %v3551 = vxor.u32 %v3477, 2147483648
      %v3552 = vxor.u32 %v3482, 2147483648
      %v3553 = vxor.u32 %v3487, 2147483648
      %v3554 = vxor.u32 %v3492, 2147483648
      %v3555 = vxor.u32 %v3497, 2147483648
      %v3556 = vxor.u32 %v3502, 2147483648
      %v3557 = vxor.u32 %v3507, 2147483648
      %v3558 = vmul.f32 %v3550, 1.442695
      %v3559 = vpow.pop %v3558
      %v3560 = vmul.f32 %v3551, 1.442695
      %v3561 = vpow.pop %v3560
      %v3562 = vmul.f32 %v3552, 1.442695
      %v3563 = vpow.pop %v3562
      %v3564 = vmul.f32 %v3553, 1.442695
      %v3565 = vpow.pop %v3564
      %v3566 = vmul.f32 %v3554, 1.442695
      %v3567 = vpow.pop %v3566
      %v3568 = vmul.f32 %v3555, 1.442695
      %v3569 = vpow.pop %v3568
      %v3570 = vmul.f32 %v3556, 1.442695
      %v3571 = vpow.pop %v3570
      %v3572 = vmul.f32 %v3557, 1.442695
      %v3573 = vpow.pop %v3572
      %v3574 = vadd.f32 %v3559, 1.0
      %v3575 = vadd.f32 %v3561, 1.0
      %v3576 = vadd.f32 %v3563, 1.0
      %v3577 = vadd.f32 %v3565, 1.0
      %v3578 = vadd.f32 %v3567, 1.0
      %v3579 = vadd.f32 %v3569, 1.0
      %v3580 = vadd.f32 %v3571, 1.0
      %v3581 = vadd.f32 %v3573, 1.0
      %v3582 = vrcp.pop %v3574
      %v3583 = vmul.f32 1.0, %v3582
      %v3584 = vrcp.pop %v3575
      %v3585 = vmul.f32 1.0, %v3584
      %v3586 = vrcp.pop %v3576
      %v3587 = vmul.f32 1.0, %v3586
      %v3588 = vrcp.pop %v3577
      %v3589 = vmul.f32 1.0, %v3588
      %v3590 = vrcp.pop %v3578
      %v3591 = vmul.f32 1.0, %v3590
      %v3592 = vrcp.pop %v3579
      %v3593 = vmul.f32 1.0, %v3592
      %v3594 = vrcp.pop %v3580
      %v3595 = vmul.f32 1.0, %v3594
      %v3596 = vrcp.pop %v3581
      %v3597 = vmul.f32 1.0, %v3596
      %v3598 = vmul.f32 %v3583, %v3532
      %v3599 = vmul.f32 %v3585, %v3537
      %v3600 = vmul.f32 %v3587, %v3542
      %v3601 = vmul.f32 %v3589, %v3547
      %v3602 = vadd.f32 %v3512, %v3598
      %v3603 = vadd.f32 %v3517, %v3599
      %v3604 = vadd.f32 %v3522, %v3600
      %v3605 = vadd.f32 %v3527, %v3601
      %v3606 = vtanh.pop %v3602
      %v3607 = vtanh.pop %v3603
      %v3608 = vtanh.pop %v3604
      %v3609 = vtanh.pop %v3605
      %v3610 = vsub.f32 %v3174, %v3606
      %v3611 = vsub.f32 %v3175, %v3607
      %v3612 = vsub.f32 %v3176, %v3608
      %v3613 = vsub.f32 %v3177, %v3609
      %v3614 = vmul.f32 %v3591, %v3610
      %v3615 = vmul.f32 %v3593, %v3611
      %v3616 = vmul.f32 %v3595, %v3612
      %v3617 = vmul.f32 %v3597, %v3613
      %v3618 = vadd.f32 %v3606, %v3614
      %v3619 = vadd.f32 %v3607, %v3615
      %v3620 = vadd.f32 %v3608, %v3616
      %v3621 = vadd.f32 %v3609, %v3617
      %s3622 = scalar_lea.vmem %s262, 192
      %3623 = vst.msk [vmem:[%s3622] sm:$0xff] %vm958, %v3618
      %3624 = vst.msk [vmem:[%s3622 + $0x8] sm:$0xff] %vm958, %v3619
      %3625 = vst.msk [vmem:[%s3622 + $0x10] sm:$0xff] %vm958, %v3620
      %3626 = vst.msk [vmem:[%s3622 + $0x18] sm:$0xff] %vm958, %v3621
      %s3627 = scalar_lea.vmem %s252, 672
      %v3628 = vld [vmem:[%s3627] sm:$0xff]
      %v3629 = vld [vmem:[%s3627 + $0x8] sm:$0xff]
      %v3630 = vld [vmem:[%s3627 + $0x10] sm:$0xff]
      %v3631 = vld [vmem:[%s3627 + $0x18] sm:$0xff]
      %v3632 = vld [vmem:[%s3627 + $0x20] sm:$0xff]
      %v3633 = vld [vmem:[%s3627 + $0x28] sm:$0xff]
      %v3634 = vld [vmem:[%s3627 + $0x30] sm:$0xff]
      %v3635 = vld [vmem:[%s3627 + $0x38] sm:$0xff]
      %v3636 = vld [vmem:[%s3627 + $0x40] sm:$0xff]
      %v3637 = vld [vmem:[%s3627 + $0x48] sm:$0xff]
      %v3638 = vld [vmem:[%s3627 + $0x50] sm:$0xff]
      %v3639 = vld [vmem:[%s3627 + $0x58] sm:$0xff]
      %3640 = vmatprep.subr.mxu0 0.0
      %3641 = vmatpush1.msra.mxu0 0.0
      %3642 = vmatprep.subr.mxu0 0.0
      %3643 = vmatpush1.msra.mxu0 0.0
      %3644 = vmatprep.subr.mxu0 0.0
      %3645 = vmatpush1.msra.mxu0 0.0
      %3646 = vmatprep.subr.mxu0 0.0
      %3647 = vmatpush1.msra.mxu0 0.0
      %3648 = vmatprep.subr.mxu0 0.0
      %3649 = vmatpush1.msra.mxu0 0.0
      %3650 = vmatprep.subr.mxu0 0.0
      %3651 = vmatpush1.msra.mxu0 0.0
      %3652 = vmatprep.subr.mxu0 0.0
      %3653 = vmatpush1.msra.mxu0 0.0
      %3654 = vmatprep.subr.mxu0 0.0
      %3655 = vmatpush1.msra.mxu0 0.0
      %3656 = vmatprep.subr.mxu0 0.0
      %3657 = vmatpush1.msra.mxu0 0.0
      %3658 = vmatprep.subr.mxu0 0.0
      %3659 = vmatpush1.msra.mxu0 0.0
      %3660 = vmatprep.subr.mxu0 0.0
      %3661 = vmatpush1.msra.mxu0 0.0
      %3662 = vmatprep.subr.mxu0 0.0
      %3663 = vmatpush1.msra.mxu0 0.0
      %3664 = vmatprep.subr.mxu0 0.0
      %3665 = vmatpush1.msra.mxu0 %v3404
      %3666 = vmatprep.subr.mxu0 0.0
      %3667 = vmatpush1.msra.mxu0 %v3403
      %3668 = vmatprep.subr.mxu0 0.0
      %3669 = vmatpush1.msra.mxu0 %v3402
      %3670 = vmatprep.subr.mxu0 0.0
      %3671 = vmatpush1.msra.mxu0 %v3401
      %3672 = vmatprep.subr.mxu0 0.0
      %3673 = vmatpush2.msra.mxu0 0.0
      %3674 = vmatprep.subr.mxu0 0.0
      %3675 = vmatpush2.msra.mxu0 0.0
      %3676 = vmatprep.subr.mxu0 0.0
      %3677 = vmatpush2.msra.mxu0 0.0
      %3678 = vmatprep.subr.mxu0 0.0
      %3679 = vmatpush2.msra.mxu0 0.0
      %3680 = vmatprep.subr.mxu0 0.0
      %3681 = vmatpush2.msra.mxu0 0.0
      %3682 = vmatprep.subr.mxu0 0.0
      %3683 = vmatpush2.msra.mxu0 0.0
      %3684 = vmatprep.subr.mxu0 0.0
      %3685 = vmatpush2.msra.mxu0 0.0
      %3686 = vmatprep.subr.mxu0 0.0
      %3687 = vmatpush2.msra.mxu0 0.0
      %3688 = vmatprep.subr.mxu0 0.0
      %3689 = vmatpush2.msra.mxu0 0.0
      %3690 = vmatprep.subr.mxu0 0.0
      %3691 = vmatpush2.msra.mxu0 0.0
      %3692 = vmatprep.subr.mxu0 0.0
      %3693 = vmatpush2.msra.mxu0 0.0
      %3694 = vmatprep.subr.mxu0 0.0
      %3695 = vmatpush2.msra.mxu0 0.0
      %3696 = vmatprep.subr.mxu0 0.0
      %3697 = vmatpush2.msra.mxu0 0.0
      %3698 = vmatprep.subr.mxu0 0.0
      %3699 = vmatpush2.msra.mxu0 0.0
      %3700 = vmatprep.subr.mxu0 0.0
      %3701 = vmatpush2.msra.mxu0 0.0
      %3702 = vmatprep.subr.mxu0 0.0
      %3703 = vmatpush2.msra.mxu0 0.0
      %3704 = vmatprep.mubr.f32.mxu0 0.0
      %3705 = vmatmul.mubr.f32.gmra.mxu0 %v348
      %v3706 = vpop.f32.mrf.mxu0
      %v3707 = vadd.f32 0.0, %v3706
      %v3708 = vpop.f32.mrf.mxu0
      %3709 = vmatprep.mubr.f32.mxu0 0.0
      %3710 = vmatmul.mubr.f32.gmra.mxu0 %v351
      %v3711 = vpop.f32.mrf.mxu0
      %v3712 = vadd.f32 0.0, %v3711
      %v3713 = vpop.f32.mrf.mxu0
      %3714 = vmatprep.mubr.f32.mxu0 0.0
      %3715 = vmatmul.mubr.f32.gmra.mxu0 %v354
      %v3716 = vpop.f32.mrf.mxu0
      %v3717 = vadd.f32 0.0, %v3716
      %v3718 = vpop.f32.mrf.mxu0
      %3719 = vmatprep.mubr.f32.mxu0 0.0
      %3720 = vmatmul.mubr.f32.gmra.mxu0 %v357
      %v3721 = vpop.f32.mrf.mxu0
      %v3722 = vadd.f32 0.0, %v3721
      %v3723 = vpop.f32.mrf.mxu0
      %3724 = vmatprep.mubr.f32.mxu0 0.0
      %3725 = vmatmul.mubr.f32.gmra.mxu0 %v360
      %v3726 = vpop.f32.mrf.mxu0
      %v3727 = vadd.f32 0.0, %v3726
      %v3728 = vpop.f32.mrf.mxu0
      %3729 = vmatprep.mubr.f32.mxu0 0.0
      %3730 = vmatmul.mubr.f32.gmra.mxu0 %v363
      %v3731 = vpop.f32.mrf.mxu0
      %v3732 = vadd.f32 0.0, %v3731
      %v3733 = vpop.f32.mrf.mxu0
      %3734 = vmatprep.mubr.f32.mxu0 0.0
      %3735 = vmatmul.mubr.f32.gmra.mxu0 %v366
      %v3736 = vpop.f32.mrf.mxu0
      %v3737 = vadd.f32 0.0, %v3736
      %v3738 = vpop.f32.mrf.mxu0
      %3739 = vmatprep.mubr.f32.mxu0 0.0
      %3740 = vmatmul.mubr.f32.gmra.mxu0 %v369
      %v3741 = vpop.f32.mrf.mxu0
      %v3742 = vadd.f32 0.0, %v3741
      %v3743 = vpop.f32.mrf.mxu0
      %3744 = vmatprep.mubr.f32.mxu0 0.0
      %3745 = vmatmul.mubr.f32.gmra.mxu0 %v372
      %v3746 = vpop.f32.mrf.mxu0
      %v3747 = vadd.f32 0.0, %v3746
      %v3748 = vpop.f32.mrf.mxu0
      %3749 = vmatprep.mubr.f32.mxu0 0.0
      %3750 = vmatmul.mubr.f32.gmra.mxu0 %v375
      %v3751 = vpop.f32.mrf.mxu0
      %v3752 = vadd.f32 0.0, %v3751
      %v3753 = vpop.f32.mrf.mxu0
      %3754 = vmatprep.mubr.f32.mxu0 0.0
      %3755 = vmatmul.mubr.f32.gmra.mxu0 %v378
      %v3756 = vpop.f32.mrf.mxu0
      %v3757 = vadd.f32 0.0, %v3756
      %v3758 = vpop.f32.mrf.mxu0
      %3759 = vmatprep.mubr.f32.mxu0 0.0
      %3760 = vmatmul.mubr.f32.gmra.mxu0 %v381
      %v3761 = vpop.f32.mrf.mxu0
      %v3762 = vadd.f32 0.0, %v3761
      %v3763 = vpop.f32.mrf.mxu0
      %3764 = vdwg.mxu0
      %v3765 = vadd.f32 %v3628, %v3707
      %v3766 = vadd.f32 %v3629, %v3712
      %v3767 = vadd.f32 %v3630, %v3717
      %v3768 = vadd.f32 %v3631, %v3722
      %v3769 = vadd.f32 %v3632, %v3727
      %v3770 = vadd.f32 %v3633, %v3732
      %v3771 = vadd.f32 %v3634, %v3737
      %v3772 = vadd.f32 %v3635, %v3742
      %v3773 = vxor.u32 %v3765, 2147483648
      %v3774 = vxor.u32 %v3766, 2147483648
      %v3775 = vxor.u32 %v3767, 2147483648
      %v3776 = vxor.u32 %v3768, 2147483648
      %v3777 = vxor.u32 %v3769, 2147483648
      %v3778 = vxor.u32 %v3770, 2147483648
      %v3779 = vxor.u32 %v3771, 2147483648
      %v3780 = vxor.u32 %v3772, 2147483648
      %v3781 = vmul.f32 %v3773, 1.442695
      %v3782 = vpow.pop %v3781
      %v3783 = vmul.f32 %v3774, 1.442695
      %v3784 = vpow.pop %v3783
      %v3785 = vmul.f32 %v3775, 1.442695
      %v3786 = vpow.pop %v3785
      %v3787 = vmul.f32 %v3776, 1.442695
      %v3788 = vpow.pop %v3787
      %v3789 = vmul.f32 %v3777, 1.442695
      %v3790 = vpow.pop %v3789
      %v3791 = vmul.f32 %v3778, 1.442695
      %v3792 = vpow.pop %v3791
      %v3793 = vmul.f32 %v3779, 1.442695
      %v3794 = vpow.pop %v3793
      %v3795 = vmul.f32 %v3780, 1.442695
      %v3796 = vpow.pop %v3795
      %v3797 = vadd.f32 %v3782, 1.0
      %v3798 = vadd.f32 %v3784, 1.0
      %v3799 = vadd.f32 %v3786, 1.0
      %v3800 = vadd.f32 %v3788, 1.0
      %v3801 = vadd.f32 %v3790, 1.0
      %v3802 = vadd.f32 %v3792, 1.0
      %v3803 = vadd.f32 %v3794, 1.0
      %v3804 = vadd.f32 %v3796, 1.0
      %v3805 = vrcp.pop %v3797
      %v3806 = vmul.f32 1.0, %v3805
      %v3807 = vrcp.pop %v3798
      %v3808 = vmul.f32 1.0, %v3807
      %v3809 = vrcp.pop %v3799
      %v3810 = vmul.f32 1.0, %v3809
      %v3811 = vrcp.pop %v3800
      %v3812 = vmul.f32 1.0, %v3811
      %v3813 = vrcp.pop %v3801
      %v3814 = vmul.f32 1.0, %v3813
      %v3815 = vrcp.pop %v3802
      %v3816 = vmul.f32 1.0, %v3815
      %v3817 = vrcp.pop %v3803
      %v3818 = vmul.f32 1.0, %v3817
      %v3819 = vrcp.pop %v3804
      %v3820 = vmul.f32 1.0, %v3819
      %v3821 = vadd.f32 %v3747, %v567
      %v3822 = vadd.f32 %v3752, %v572
      %v3823 = vadd.f32 %v3757, %v577
      %v3824 = vadd.f32 %v3762, %v582
      %v3825 = vmul.f32 %v3806, %v3821
      %v3826 = vmul.f32 %v3808, %v3822
      %v3827 = vmul.f32 %v3810, %v3823
      %v3828 = vmul.f32 %v3812, %v3824
      %v3829 = vadd.f32 %v3636, %v3825
      %v3830 = vadd.f32 %v3637, %v3826
      %v3831 = vadd.f32 %v3638, %v3827
      %v3832 = vadd.f32 %v3639, %v3828
      %v3833 = vtanh.pop %v3829
      %v3834 = vtanh.pop %v3830
      %v3835 = vtanh.pop %v3831
      %v3836 = vtanh.pop %v3832
      %v3837 = vsub.f32 %v3401, %v3833
      %v3838 = vsub.f32 %v3402, %v3834
      %v3839 = vsub.f32 %v3403, %v3835
      %v3840 = vsub.f32 %v3404, %v3836
      %v3841 = vmul.f32 %v3814, %v3837
      %v3842 = vmul.f32 %v3816, %v3838
      %v3843 = vmul.f32 %v3818, %v3839
      %v3844 = vmul.f32 %v3820, %v3840
      %v3845 = vadd.f32 %v3833, %v3841
      %v3846 = vadd.f32 %v3834, %v3842
      %v3847 = vadd.f32 %v3835, %v3843
      %v3848 = vadd.f32 %v3836, %v3844
      %3849 = vmatprep.subr.mxu0 0.0
      %3850 = vmatpush1.msra.mxu0 0.0
      %3851 = vmatprep.subr.mxu0 0.0
      %3852 = vmatpush1.msra.mxu0 0.0
      %3853 = vmatprep.subr.mxu0 0.0
      %3854 = vmatpush1.msra.mxu0 0.0
      %3855 = vmatprep.subr.mxu0 0.0
      %3856 = vmatpush1.msra.mxu0 0.0
      %3857 = vmatprep.subr.mxu0 0.0
      %3858 = vmatpush1.msra.mxu0 0.0
      %3859 = vmatprep.subr.mxu0 0.0
      %3860 = vmatpush1.msra.mxu0 0.0
      %3861 = vmatprep.subr.mxu0 0.0
      %3862 = vmatpush1.msra.mxu0 0.0
      %3863 = vmatprep.subr.mxu0 0.0
      %3864 = vmatpush1.msra.mxu0 0.0
      %3865 = vmatprep.subr.mxu0 0.0
      %3866 = vmatpush1.msra.mxu0 %v3621
      %3867 = vmatprep.subr.mxu0 0.0
      %3868 = vmatpush1.msra.mxu0 %v3620
      %3869 = vmatprep.subr.mxu0 0.0
      %3870 = vmatpush1.msra.mxu0 %v3619
      %3871 = vmatprep.subr.mxu0 0.0
      %3872 = vmatpush1.msra.mxu0 %v3618
      %3873 = vmatprep.subr.mxu0 0.0
      %3874 = vmatpush1.msra.mxu0 %v3848
      %3875 = vmatprep.subr.mxu0 0.0
      %3876 = vmatpush1.msra.mxu0 %v3847
      %3877 = vmatprep.subr.mxu0 0.0
      %3878 = vmatpush1.msra.mxu0 %v3846
      %3879 = vmatprep.subr.mxu0 0.0
      %3880 = vmatpush1.msra.mxu0 %v3845
      %3881 = vmatprep.subr.mxu0 0.0
      %3882 = vmatpush2.msra.mxu0 0.0
      %3883 = vmatprep.subr.mxu0 0.0
      %3884 = vmatpush2.msra.mxu0 0.0
      %3885 = vmatprep.subr.mxu0 0.0
      %3886 = vmatpush2.msra.mxu0 0.0
      %3887 = vmatprep.subr.mxu0 0.0
      %3888 = vmatpush2.msra.mxu0 0.0
      %3889 = vmatprep.subr.mxu0 0.0
      %3890 = vmatpush2.msra.mxu0 0.0
      %3891 = vmatprep.subr.mxu0 0.0
      %3892 = vmatpush2.msra.mxu0 0.0
      %3893 = vmatprep.subr.mxu0 0.0
      %3894 = vmatpush2.msra.mxu0 0.0
      %3895 = vmatprep.subr.mxu0 0.0
      %3896 = vmatpush2.msra.mxu0 0.0
      %3897 = vmatprep.subr.mxu0 0.0
      %3898 = vmatpush2.msra.mxu0 0.0
      %3899 = vmatprep.subr.mxu0 0.0
      %3900 = vmatpush2.msra.mxu0 0.0
      %3901 = vmatprep.subr.mxu0 0.0
      %3902 = vmatpush2.msra.mxu0 0.0
      %3903 = vmatprep.subr.mxu0 0.0
      %3904 = vmatpush2.msra.mxu0 0.0
      %3905 = vmatprep.subr.mxu0 0.0
      %3906 = vmatpush2.msra.mxu0 0.0
      %3907 = vmatprep.subr.mxu0 0.0
      %3908 = vmatpush2.msra.mxu0 0.0
      %3909 = vmatprep.subr.mxu0 0.0
      %3910 = vmatpush2.msra.mxu0 0.0
      %3911 = vmatprep.subr.mxu0 0.0
      %3912 = vmatpush2.msra.mxu0 0.0
      %3913 = vmatprep.mubr.f32.mxu0 0.0
      %3914 = vmatmul.mubr.f32.gmra.mxu0 %v694
      %v3915 = vpop.f32.mrf.mxu0
      %v3916 = vadd.f32 %v615, %v3915
      %v3917 = vpop.f32.mrf.mxu0
      %3918 = vmatprep.mubr.f32.mxu0 0.0
      %3919 = vmatmul.mubr.f32.gmra.mxu0 %v697
      %v3920 = vpop.f32.mrf.mxu0
      %v3921 = vadd.f32 %v620, %v3920
      %v3922 = vpop.f32.mrf.mxu0
      %3923 = vmatprep.mubr.f32.mxu0 0.0
      %3924 = vmatmul.mubr.f32.gmra.mxu0 %v700
      %v3925 = vpop.f32.mrf.mxu0
      %v3926 = vadd.f32 %v625, %v3925
      %v3927 = vpop.f32.mrf.mxu0
      %3928 = vmatprep.mubr.f32.mxu0 0.0
      %3929 = vmatmul.mubr.f32.gmra.mxu0 %v703
      %v3930 = vpop.f32.mrf.mxu0
      %v3931 = vadd.f32 %v630, %v3930
      %v3932 = vpop.f32.mrf.mxu0
      %3933 = vmatprep.mubr.f32.mxu0 0.0
      %3934 = vmatmul.mubr.f32.gmra.mxu0 %v706
      %v3935 = vpop.f32.mrf.mxu0
      %v3936 = vadd.f32 %v635, %v3935
      %v3937 = vpop.f32.mrf.mxu0
      %3938 = vmatprep.mubr.f32.mxu0 0.0
      %3939 = vmatmul.mubr.f32.gmra.mxu0 %v709
      %v3940 = vpop.f32.mrf.mxu0
      %v3941 = vadd.f32 %v640, %v3940
      %v3942 = vpop.f32.mrf.mxu0
      %3943 = vmatprep.mubr.f32.mxu0 0.0
      %3944 = vmatmul.mubr.f32.gmra.mxu0 %v712
      %v3945 = vpop.f32.mrf.mxu0
      %v3946 = vadd.f32 %v645, %v3945
      %v3947 = vpop.f32.mrf.mxu0
      %3948 = vmatprep.mubr.f32.mxu0 0.0
      %3949 = vmatmul.mubr.f32.gmra.mxu0 %v715
      %v3950 = vpop.f32.mrf.mxu0
      %v3951 = vadd.f32 %v650, %v3950
      %v3952 = vpop.f32.mrf.mxu0
      %3953 = vmatprep.mubr.f32.mxu0 0.0
      %3954 = vmatmul.mubr.f32.gmra.mxu0 %v718
      %v3955 = vpop.f32.mrf.mxu0
      %v3956 = vadd.f32 %v655, %v3955
      %v3957 = vpop.f32.mrf.mxu0
      %3958 = vmatprep.mubr.f32.mxu0 0.0
      %3959 = vmatmul.mubr.f32.gmra.mxu0 %v721
      %v3960 = vpop.f32.mrf.mxu0
      %v3961 = vadd.f32 %v660, %v3960
      %v3962 = vpop.f32.mrf.mxu0
      %3963 = vmatprep.mubr.f32.mxu0 0.0
      %3964 = vmatmul.mubr.f32.gmra.mxu0 %v724
      %v3965 = vpop.f32.mrf.mxu0
      %v3966 = vadd.f32 %v665, %v3965
      %v3967 = vpop.f32.mrf.mxu0
      %3968 = vmatprep.mubr.f32.mxu0 0.0
      %3969 = vmatmul.mubr.f32.gmra.mxu0 %v727
      %v3970 = vpop.f32.mrf.mxu0
      %v3971 = vadd.f32 %v670, %v3970
      %v3972 = vpop.f32.mrf.mxu0
      %3973 = vmatprep.mubr.f32.mxu0 0.0
      %3974 = vmatmul.mubr.f32.gmra.mxu0 %v730
      %v3975 = vpop.f32.mrf.mxu0
      %v3976 = vadd.f32 %v675, %v3975
      %v3977 = vpop.f32.mrf.mxu0
      %3978 = vmatprep.mubr.f32.mxu0 0.0
      %3979 = vmatmul.mubr.f32.gmra.mxu0 %v733
      %v3980 = vpop.f32.mrf.mxu0
      %v3981 = vadd.f32 %v680, %v3980
      %v3982 = vpop.f32.mrf.mxu0
      %3983 = vmatprep.mubr.f32.mxu0 0.0
      %3984 = vmatmul.mubr.f32.gmra.mxu0 %v736
      %v3985 = vpop.f32.mrf.mxu0
      %v3986 = vadd.f32 %v685, %v3985
      %v3987 = vpop.f32.mrf.mxu0
      %3988 = vmatprep.mubr.f32.mxu0 0.0
      %3989 = vmatmul.mubr.f32.gmra.mxu0 %v739
      %v3990 = vpop.f32.mrf.mxu0
      %v3991 = vadd.f32 %v690, %v3990
      %v3992 = vpop.f32.mrf.mxu0
      %3993 = vdwg.mxu0
      %v3994 = vxor.u32 %v3916, 2147483648
      %v3995 = vxor.u32 %v3921, 2147483648
      %v3996 = vxor.u32 %v3926, 2147483648
      %v3997 = vxor.u32 %v3931, 2147483648
      %v3998 = vxor.u32 %v3936, 2147483648
      %v3999 = vxor.u32 %v3941, 2147483648
      %v4000 = vxor.u32 %v3946, 2147483648
      %v4001 = vxor.u32 %v3951, 2147483648
      %v4002 = vmul.f32 %v3994, 1.442695
      %v4003 = vpow.pop %v4002
      %v4004 = vmul.f32 %v3995, 1.442695
      %v4005 = vpow.pop %v4004
      %v4006 = vmul.f32 %v3996, 1.442695
      %v4007 = vpow.pop %v4006
      %v4008 = vmul.f32 %v3997, 1.442695
      %v4009 = vpow.pop %v4008
      %v4010 = vmul.f32 %v3998, 1.442695
      %v4011 = vpow.pop %v4010
      %v4012 = vmul.f32 %v3999, 1.442695
      %v4013 = vpow.pop %v4012
      %v4014 = vmul.f32 %v4000, 1.442695
      %v4015 = vpow.pop %v4014
      %v4016 = vmul.f32 %v4001, 1.442695
      %v4017 = vpow.pop %v4016
      %v4018 = vadd.f32 %v4003, 1.0
      %v4019 = vadd.f32 %v4005, 1.0
      %v4020 = vadd.f32 %v4007, 1.0
      %v4021 = vadd.f32 %v4009, 1.0
      %v4022 = vadd.f32 %v4011, 1.0
      %v4023 = vadd.f32 %v4013, 1.0
      %v4024 = vadd.f32 %v4015, 1.0
      %v4025 = vadd.f32 %v4017, 1.0
      %v4026 = vrcp.pop %v4018
      %v4027 = vmul.f32 1.0, %v4026
      %v4028 = vrcp.pop %v4019
      %v4029 = vmul.f32 1.0, %v4028
      %v4030 = vrcp.pop %v4020
      %v4031 = vmul.f32 1.0, %v4030
      %v4032 = vrcp.pop %v4021
      %v4033 = vmul.f32 1.0, %v4032
      %v4034 = vrcp.pop %v4022
      %v4035 = vmul.f32 1.0, %v4034
      %v4036 = vrcp.pop %v4023
      %v4037 = vmul.f32 1.0, %v4036
      %v4038 = vrcp.pop %v4024
      %v4039 = vmul.f32 1.0, %v4038
      %v4040 = vrcp.pop %v4025
      %v4041 = vmul.f32 1.0, %v4040
      %v4042 = vmul.f32 %v4027, %v3976
      %v4043 = vmul.f32 %v4029, %v3981
      %v4044 = vmul.f32 %v4031, %v3986
      %v4045 = vmul.f32 %v4033, %v3991
      %v4046 = vadd.f32 %v3956, %v4042
      %v4047 = vadd.f32 %v3961, %v4043
      %v4048 = vadd.f32 %v3966, %v4044
      %v4049 = vadd.f32 %v3971, %v4045
      %v4050 = vtanh.pop %v4046
      %v4051 = vtanh.pop %v4047
      %v4052 = vtanh.pop %v4048
      %v4053 = vtanh.pop %v4049
      %v4054 = vsub.f32 %v3618, %v4050
      %v4055 = vsub.f32 %v3619, %v4051
      %v4056 = vsub.f32 %v3620, %v4052
      %v4057 = vsub.f32 %v3621, %v4053
      %v4058 = vmul.f32 %v4035, %v4054
      %v4059 = vmul.f32 %v4037, %v4055
      %v4060 = vmul.f32 %v4039, %v4056
      %v4061 = vmul.f32 %v4041, %v4057
      %v4062 = vadd.f32 %v4050, %v4058
      %v4063 = vadd.f32 %v4051, %v4059
      %v4064 = vadd.f32 %v4052, %v4060
      %v4065 = vadd.f32 %v4053, %v4061
      %s4066 = scalar_lea.vmem %s262, 224
      %4067 = vst.msk [vmem:[%s4066] sm:$0xff] %vm958, %v4062
      %4068 = vst.msk [vmem:[%s4066 + $0x8] sm:$0xff] %vm958, %v4063
      %4069 = vst.msk [vmem:[%s4066 + $0x10] sm:$0xff] %vm958, %v4064
      %4070 = vst.msk [vmem:[%s4066 + $0x18] sm:$0xff] %vm958, %v4065
      %4071 = vst.msk [vmem:[#allocation2] sm:$0xff] %vm958, %v3845
      %4072 = vst.msk [vmem:[#allocation2 + $0x8] sm:$0xff] %vm958, %v3846
      %4073 = vst.msk [vmem:[#allocation2 + $0x10] sm:$0xff] %vm958, %v3847
      %4074 = vst.msk [vmem:[#allocation2 + $0x18] sm:$0xff] %vm958, %v3848
      %4075 = vst.msk [vmem:[%s329] sm:$0xff] %vm958, %v4062
      %4076 = vst.msk [vmem:[%s329 + $0x8] sm:$0xff] %vm958, %v4063
      %4077 = vst.msk [vmem:[%s329 + $0x10] sm:$0xff] %vm958, %v4064
      %4078 = vst.msk [vmem:[%s329 + $0x18] sm:$0xff] %vm958, %v4065
      %s4079 = smul.u32 8, %s21
      %p4080 = scmp.lt.s32.totalorder %s4079, 15
      %s4081 = scalar_select %p4080, %s4079, 15
      %p4082 = scmp.lt.s32.totalorder %s20, 0
      %s4083 = scalar_select %p4082, %s20, 0
      %s4084 = smul.addr %s4081, 4
      %s4085 = sadd.s32 %s4083, %s4084
      %s4086 = smul.addr %s4085, 8
      %s4087 = scalar_lea.vmem %s5, %s4086
      // Predicated region
      $region45: #{tpu_custom_call.1} parent=39 // pred_check
        %p4088 = pneg %p160
      $region46: #{tpu_custom_call.1} parent=39 // pred_check_branch
        %4090 = sbr.rel (%p4088) target = $region48
      $region47: #{tpu_custom_call.1} parent=39 // pred_region
        %s4091 = smul.u32 8, %s21
      $region48: #{tpu_custom_call.1} parent=39 // pred_fallthru
        _
    $region40: #{tpu_custom_call.1} parent=5 // pred_fallthru
      _
    %p4092 = scmp.le.s32.totalorder 2, %s11
    // Predicated region
    $region49: #{tpu_custom_call.1} parent=5 // pred_check
      %p4093 = pneg %p4092
    $region50: #{tpu_custom_call.1} parent=5 // pred_check_branch
      %4095 = sbr.rel (%p4093) target = $region52
    $region51: #{tpu_custom_call.1} parent=5 // pred_region
      %s4096 = ssub.s32 %s11, 2
      // Predicated region
      $region53: #{tpu_custom_call.1} parent=51 // pred_check
        %p4097 = pneg %p166
      $region54: #{tpu_custom_call.1} parent=51 // pred_check_branch
        %4099 = sbr.rel (%p4097) target = $region56
      $region55: #{tpu_custom_call.1} parent=51 // pred_region
        %s4100 = smul.u32 8, %s23
        %p4101 = scmp.lt.s32.totalorder %s4100, 15
        %s4102 = scalar_select %p4101, %s4100, 15
        %p4103 = scmp.lt.s32.totalorder %s22, 0
        %s4104 = scalar_select %p4103, %s22, 0
        %s4105 = smul.addr %s4102, 4
        %s4106 = sadd.s32 %s4104, %s4105
        %s4107 = smul.addr %s4106, 8
        %s4108 = scalar_lea.vmem %s5, %s4107
      $region56: #{tpu_custom_call.1} parent=51 // pred_fallthru
        _
    $region52: #{tpu_custom_call.1} parent=5 // pred_fallthru
      _
  $region6: #{tpu_custom_call.1} parent=0 // loop_footer
    %s15 = sadd.s32 1, %s11
  $region7: #{tpu_custom_call.1} parent=0 // loop_footer_branch
    %10 = sbr.rel target = $region3
  $region8: #{tpu_custom_call.1} parent=0 // loop_exit
    _

</llo_original>
